<compile_context>
chip_gen: v7x
topology: tpu7x:2x2x1
jax: 0.10.0
libtpu: 0.0.40
codegen_flags: <defaults>
</compile_context>

<pallas_src>
import functools

import jax
import jax.numpy as jnp
from jax.experimental import pallas as pl
from jax.experimental.pallas import tpu as pltpu


def _embedding_kernel(x_ref, ids_ref, w_ref, b_ref, tag_emb_ref, pred_emb_ref,
                      out_ref, *, tm, tags_num, predicate_num,
                      d_lin, tag_dim, pred_dim, compute_dtype):
    # ---- Linear(input_dim -> 512): in-kernel bf16 cast, f32 accumulation ----
    x = x_ref[...].astype(compute_dtype)                  # VPU cast, under DMA
    y = jnp.dot(x, w_ref[...], preferred_element_type=jnp.float32)
    y = y + b_ref[...]                                    # (1, d_lin) f32 bias
    out_ref[:, :d_lin] = y                                # 512 lanes -> dense vst

    # ---- packed id stream: column 0 = tag id, column 1 = predicate id ----
    ids = ids_ref[...]                                    # (tm, 2) int32
    tag_ids = ids[:, 0:1]                                 # (tm, 1)
    pred_ids = ids[:, 1:2]                                # (tm, 1)

    # ---- tag_embeddings[tag_ids] via one-hot matmul (exact gather, K tiny) ----
    tag_oh = (tag_ids == jax.lax.broadcasted_iota(
        jnp.int32, (tm, tags_num), 1)).astype(jnp.float32)       # (tm, tags_num)
    tag_e = jnp.dot(tag_oh, tag_emb_ref[...],
                    preferred_element_type=jnp.float32)          # (tm, tag_dim)
    out_ref[:, d_lin:d_lin + tag_dim] = tag_e

    # ---- predicate_embeddings[predicate_mask] ----
    if predicate_num == 2:
        # VPU select between the two table rows; co-issues with MXU work.
        row0 = pred_emb_ref[0:1, :]                              # (1, pred_dim)
        row1 = pred_emb_ref[1:2, :]
        pred_e = jnp.where(pred_ids == 1, row1, row0)            # (tm, pred_dim)
    else:
        pred_oh = (pred_ids == jax.lax.broadcasted_iota(
            jnp.int32, (tm, predicate_num), 1)).astype(jnp.float32)
        pred_e = jnp.dot(pred_oh, pred_emb_ref[...],
                         preferred_element_type=jnp.float32)
    out_ref[:, d_lin + tag_dim:] = pred_e


def embedding_layer_concat(input_layer, tag_ids, predicate_mask,
                           w, b, tag_embeddings, predicate_embeddings,
                           *, tm=512):
    """Pallas implementation of EmbeddingLayer.forward with mode='concat'.

    input_layer:    (B, S, input_dim) float32
    tag_ids:        (B, S) int32 in [0, tags_num)
    predicate_mask: (B, S) int32 in [0, predicate_num)
    w:              (input_dim, 512)  -- Linear weight (already transposed).
                    Pass it in bf16 (cast ONCE at parameter-load time) for MXU
                    bf16 throughput; f32 also works.
    b:              (512,) float32
    tag_embeddings:       (tags_num, tag_dim) float32
    predicate_embeddings: (predicate_num, pred_dim) float32
    returns: (B, S, 512 + tag_dim + pred_dim) float32
    """
    B, S, D_in = input_layer.shape
    M = B * S
    tags_num, tag_dim = tag_embeddings.shape
    predicate_num, pred_dim = predicate_embeddings.shape
    D_lin = w.shape[1]
    D_out = D_lin + tag_dim + pred_dim

    # Clamp the row tile if it exceeds the row count (single ragged block).
    if tm > M:
        tm = M if M % 8 == 0 else ((M + 7) // 8) * 8
    num_tiles = pl.cdiv(M, tm)

    # No padding: ragged last block is masked on writeback by Pallas.
    x2 = input_layer.reshape(M, D_in)                       # stays f32
    ids = jnp.stack([tag_ids.reshape(M).astype(jnp.int32),
                     predicate_mask.reshape(M).astype(jnp.int32)],
                    axis=-1)                                 # (M, 2) int32
    b2 = b.reshape(1, D_lin).astype(jnp.float32)

    compute_dtype = w.dtype                                  # bf16 recommended

    kernel = functools.partial(
        _embedding_kernel, tm=tm, tags_num=tags_num,
        predicate_num=predicate_num, d_lin=D_lin,
        tag_dim=tag_dim, pred_dim=pred_dim, compute_dtype=compute_dtype)

    cost = pl.CostEstimate(
        flops=2 * M * D_in * D_lin + 2 * M * tags_num * tag_dim,
        transcendentals=0,
        bytes_accessed=(M * D_in * 4                        # x (f32 in HBM)
                        + M * 2 * 4                         # packed ids
                        + w.size * w.dtype.itemsize         # W (resident)
                        + D_lin * 4                         # bias
                        + tags_num * tag_dim * 4            # tag table
                        + predicate_num * pred_dim * 4      # pred table
                        + M * D_out * 4))                   # output (f32)

    out = pl.pallas_call(
        kernel,
        out_shape=jax.ShapeDtypeStruct((M, D_out), jnp.float32),
        grid_spec=pltpu.PrefetchScalarGridSpec(
            num_scalar_prefetch=0,
            grid=(num_tiles,),
            in_specs=[
                pl.BlockSpec((tm, D_in), lambda i: (i, 0)),               # x rows
                pl.BlockSpec((tm, 2), lambda i: (i, 0)),                  # packed ids
                pl.BlockSpec((D_in, D_lin), lambda i: (0, 0)),            # W (resident)
                pl.BlockSpec((1, D_lin), lambda i: (0, 0)),               # bias
                pl.BlockSpec((tags_num, tag_dim), lambda i: (0, 0)),      # tag table
                pl.BlockSpec((predicate_num, pred_dim), lambda i: (0, 0)),  # pred table
            ],
            out_specs=pl.BlockSpec((tm, D_out), lambda i: (i, 0)),
        ),
        compiler_params=pltpu.CompilerParams(
            dimension_semantics=("parallel",)),
        cost_estimate=cost,
    )(x2, ids, w, b2, tag_embeddings, predicate_embeddings)

    return out.reshape(B, S, D_out)


def _reference(input_layer, tag_ids, predicate_mask,
               w, b, tag_embeddings, predicate_embeddings):
    lin = jnp.einsum("bsd,de->bse", input_layer, w) + b
    tag_e = tag_embeddings[tag_ids]
    pred_e = predicate_embeddings[predicate_mask]
    return jnp.concatenate([lin, tag_e, pred_e], axis=-1)


if __name__ == "__main__":
    # Module hyper-parameters (mode='concat' defaults).
    tags_num = 16
    predicate_num = 2
    input_dim = 768
    tag_embedding_dim = 128
    predicate_embedding_dim = 128

    # Small example shapes: M = 400 tokens, tm=256 -> 2 grid steps, ragged tail.
    B, S = 2, 200

    key = jax.random.PRNGKey(0)
    k_x, k_w, k_b, k_tag_tbl, k_pred_tbl, k_tag_ids, k_pred = jax.random.split(key, 7)

    input_layer = jax.random.normal(k_x, (B, S, input_dim), dtype=jnp.float32)
    tag_ids = jax.random.randint(k_tag_ids, (B, S), 0, tags_num, dtype=jnp.int32)
    predicate_mask = jax.random.randint(k_pred, (B, S), 0, predicate_num,
                                        dtype=jnp.int32)

    # Parameters (deterministic, synthetic -- mirrors torch.randn / nn.Linear shapes).
    w = (jax.random.normal(k_w, (input_dim, 512), dtype=jnp.float32)
         * (1.0 / jnp.sqrt(input_dim)))
    b = jax.random.normal(k_b, (512,), dtype=jnp.float32) * 0.01
    tag_embeddings = jax.random.normal(
        k_tag_tbl, (tags_num, tag_embedding_dim), dtype=jnp.float32)
    predicate_embeddings = jax.random.normal(
        k_pred_tbl, (predicate_num, predicate_embedding_dim), dtype=jnp.float32)

    # One-time parameter prep: cast the Linear weight to bf16 at load time
    # (per perf review -- never per forward call).
    w_bf16 = w.astype(jnp.bfloat16)

    fwd = jax.jit(functools.partial(embedding_layer_concat, tm=256))
    out = fwd(input_layer, tag_ids, predicate_mask,
              w_bf16, b, tag_embeddings, predicate_embeddings)
    out = jax.block_until_ready(out)

    ref = _reference(input_layer, tag_ids, predicate_mask,
                     w, b, tag_embeddings, predicate_embeddings)

    D_out = 512 + tag_embedding_dim + predicate_embedding_dim
    assert out.shape == (B, S, D_out)
    # Embedding gathers are bit-exact (one-hot matmul / select of f32 tables).
    assert jnp.allclose(out[..., 512:], ref[..., 512:], atol=1e-5, rtol=1e-5), \
        "embedding gather mismatch vs. reference"
    # Linear uses bf16 x/W with f32 accumulation -> ~1e-3 abs error vs f32 ref.
    assert jnp.allclose(out[..., :512], ref[..., :512], atol=2e-2, rtol=2e-2), \
        "linear mismatch vs. reference"

    print("KERNEL_OK")
</pallas_src>

<mosaic_0001>
module attributes {stable_mosaic.version = 11 : i64} {
  func.func @_embedding_kernel(%arg0: i32, %arg1: memref<256x768xf32, #tpu.memory_space<vmem>>, %arg2: memref<256x2xi32, #tpu.memory_space<vmem>>, %arg3: memref<768x512xbf16, #tpu.memory_space<vmem>>, %arg4: memref<1x512xf32, #tpu.memory_space<vmem>>, %arg5: memref<16x128xf32, #tpu.memory_space<vmem>>, %arg6: memref<2x128xf32, #tpu.memory_space<vmem>>, %arg7: memref<256x768xf32, #tpu.memory_space<vmem>>) attributes {dimension_semantics = [#tpu.dimension_semantics<parallel>], iteration_bounds = array<i64: 2>, scalar_prefetch = 0 : i64, scratch_operands = 0 : i64, tpu.core_type = #tpu.core_type<tc>, window_params = [{transform_indices = @transform_0, window_bounds = array<i64: 256, 768>}, {transform_indices = @transform_1, window_bounds = array<i64: 256, 2>}, {pipeline_mode = #tpu.pipeline_mode<synchronous>, transform_indices = @transform_2, window_bounds = array<i64: 768, 512>}, {pipeline_mode = #tpu.pipeline_mode<synchronous>, transform_indices = @transform_3, window_bounds = array<i64: 1, 512>}, {pipeline_mode = #tpu.pipeline_mode<synchronous>, transform_indices = @transform_4, window_bounds = array<i64: 16, 128>}, {pipeline_mode = #tpu.pipeline_mode<synchronous>, transform_indices = @transform_5, window_bounds = array<i64: 2, 128>}, {transform_indices = @transform_6, window_bounds = array<i64: 256, 768>}]} {
    %c0 = arith.constant 0 : index
    %c0_0 = arith.constant 0 : index
    %0 = vector.load %arg1[%c0, %c0_0] : memref<256x768xf32, #tpu.memory_space<vmem>>, vector<256x768xf32>
    %1 = arith.truncf %0 : vector<256x768xf32> to vector<256x768xbf16>
    %c0_1 = arith.constant 0 : index
    %c0_2 = arith.constant 0 : index
    %2 = vector.load %arg3[%c0_1, %c0_2] : memref<768x512xbf16, #tpu.memory_space<vmem>>, vector<768x512xbf16>
    %cst = arith.constant dense<0.000000e+00> : vector<256x512xf32>
    %3 = tpu.matmul %1, %2, %cst {dimension_numbers = #tpu.dot_dimension_numbers<[1], [0], [0], [1], [0, 0, 1, 1], [], []>} : vector<256x768xbf16>, vector<768x512xbf16>, vector<256x512xf32> -> vector<256x512xf32>
    %c0_3 = arith.constant 0 : index
    %c0_4 = arith.constant 0 : index
    %4 = vector.load %arg4[%c0_3, %c0_4] : memref<1x512xf32, #tpu.memory_space<vmem>>, vector<1x512xf32>
    %5 = vector.broadcast %4 : vector<1x512xf32> to vector<256x512xf32>
    %6 = arith.addf %3, %5 : vector<256x512xf32>
    %c0_5 = arith.constant 0 : index
    %c0_6 = arith.constant 0 : index
    %7 = vector.load %arg7[%c0_5, %c0_6] : memref<256x768xf32, #tpu.memory_space<vmem>>, vector<256x512xf32>
    tpu.vector_store %arg7[%c0_5, %c0_6], %6 {strides = array<i32>} : memref<256x768xf32, #tpu.memory_space<vmem>>, vector<256x512xf32>,
    %c0_7 = arith.constant 0 : index
    %c0_8 = arith.constant 0 : index
    %8 = vector.load %arg2[%c0_7, %c0_8] : memref<256x2xi32, #tpu.memory_space<vmem>>, vector<256x2xi32>
    %9 = vector.extract_strided_slice %8 {offsets = [0, 0], sizes = [256, 1], strides = [1, 1]} : vector<256x2xi32> to vector<256x1xi32>
    %10 = vector.extract_strided_slice %8 {offsets = [0, 1], sizes = [256, 1], strides = [1, 1]} : vector<256x2xi32> to vector<256x1xi32>
    %11 = tpu.iota {dimensions = array<i32: 1>} : vector<256x16xi32>
    %12 = vector.broadcast %9 : vector<256x1xi32> to vector<256x16xi32>
    %13 = arith.cmpi eq, %12, %11 : vector<256x16xi32>
    %14 = arith.extui %13 : vector<256x16xi1> to vector<256x16xi32>
    %15 = arith.sitofp %14 : vector<256x16xi32> to vector<256x16xf32>
    %c0_9 = arith.constant 0 : index
    %c0_10 = arith.constant 0 : index
    %16 = vector.load %arg5[%c0_9, %c0_10] : memref<16x128xf32, #tpu.memory_space<vmem>>, vector<16x128xf32>
    %cst_11 = arith.constant dense<0.000000e+00> : vector<256x128xf32>
    %17 = tpu.matmul %15, %16, %cst_11 {dimension_numbers = #tpu.dot_dimension_numbers<[1], [0], [0], [1], [0, 0, 1, 1], [], []>} : vector<256x16xf32>, vector<16x128xf32>, vector<256x128xf32> -> vector<256x128xf32>
    %c0_12 = arith.constant 0 : index
    %c512 = arith.constant 512 : index
    %18 = vector.load %arg7[%c0_12, %c512] : memref<256x768xf32, #tpu.memory_space<vmem>>, vector<256x128xf32>
    tpu.vector_store %arg7[%c0_12, %c512], %17 {strides = array<i32>} : memref<256x768xf32, #tpu.memory_space<vmem>>, vector<256x128xf32>,
    %c0_13 = arith.constant 0 : index
    %c0_14 = arith.constant 0 : index
    %19 = vector.load %arg6[%c0_13, %c0_14] : memref<2x128xf32, #tpu.memory_space<vmem>>, vector<1x128xf32>
    %c1 = arith.constant 1 : index
    %c0_15 = arith.constant 0 : index
    %20 = vector.load %arg6[%c1, %c0_15] : memref<2x128xf32, #tpu.memory_space<vmem>>, vector<1x128xf32>
    %c1_i32 = arith.constant 1 : i32
    %21 = vector.broadcast %c1_i32 : i32 to vector<256x1xi32>
    %22 = arith.cmpi eq, %10, %21 : vector<256x1xi32>
    %23 = vector.shape_cast %22 : vector<256x1xi1> to vector<256x1xi1>
    %24 = vector.broadcast %23 : vector<256x1xi1> to vector<256x128xi1>
    %25 = vector.shape_cast %20 : vector<1x128xf32> to vector<1x128xf32>
    %26 = vector.broadcast %25 : vector<1x128xf32> to vector<256x128xf32>
    %27 = vector.shape_cast %19 : vector<1x128xf32> to vector<1x128xf32>
    %28 = vector.broadcast %27 : vector<1x128xf32> to vector<256x128xf32>
    %29 = arith.select %24, %26, %28 : vector<256x128xi1>, vector<256x128xf32>
    %c0_16 = arith.constant 0 : index
    %c640 = arith.constant 640 : index
    %30 = vector.load %arg7[%c0_16, %c640] : memref<256x768xf32, #tpu.memory_space<vmem>>, vector<256x128xf32>
    tpu.vector_store %arg7[%c0_16, %c640], %29 {strides = array<i32>} : memref<256x768xf32, #tpu.memory_space<vmem>>, vector<256x128xf32>,
    return
  }
  func.func @transform_0(%arg0: i32) -> (i32, i32) {
    %c0_i32 = arith.constant 0 : i32
    %c0_i32_0 = arith.constant 0 : i32
    return %arg0, %c0_i32 : i32, i32
  }
  func.func @transform_1(%arg0: i32) -> (i32, i32) {
    %c0_i32 = arith.constant 0 : i32
    %c0_i32_0 = arith.constant 0 : i32
    return %arg0, %c0_i32 : i32, i32
  }
  func.func @transform_2(%arg0: i32) -> (i32, i32) {
    %c0_i32 = arith.constant 0 : i32
    %c0_i32_0 = arith.constant 0 : i32
    %c0_i32_1 = arith.constant 0 : i32
    return %c0_i32, %c0_i32_0 : i32, i32
  }
  func.func @transform_3(%arg0: i32) -> (i32, i32) {
    %c0_i32 = arith.constant 0 : i32
    %c0_i32_0 = arith.constant 0 : i32
    %c0_i32_1 = arith.constant 0 : i32
    return %c0_i32, %c0_i32_0 : i32, i32
  }
  func.func @transform_4(%arg0: i32) -> (i32, i32) {
    %c0_i32 = arith.constant 0 : i32
    %c0_i32_0 = arith.constant 0 : i32
    %c0_i32_1 = arith.constant 0 : i32
    return %c0_i32, %c0_i32_0 : i32, i32
  }
  func.func @transform_5(%arg0: i32) -> (i32, i32) {
    %c0_i32 = arith.constant 0 : i32
    %c0_i32_0 = arith.constant 0 : i32
    %c0_i32_1 = arith.constant 0 : i32
    return %c0_i32, %c0_i32_0 : i32, i32
  }
  func.func @transform_6(%arg0: i32) -> (i32, i32) {
    %c0_i32 = arith.constant 0 : i32
    %c0_i32_0 = arith.constant 0 : i32
    return %arg0, %c0_i32 : i32, i32
  }
}

</mosaic_0001>

<llo_original>
// kernel: embedding_layer_concat.1
$region0: #{embedding_layer_concat.1}
  #allocation0 [shape = 'u32[]', space=smem, size = 0x4, offset = 0x4, fixed_abs, tag = 'smem constant byte address 0x4 - core index']
  #allocation1 [shape = 'u32[144,128]{1,0:T(1,128)}', space=vmem, size = 0x12000, scoped, tag = 'internal scratch']
  %s0 = inlined_call_operand.hbm [shape: f32[400,768], index: 0, kind: input, shape index: {}]
  %s1 = inlined_call_operand.vmem [shape: s32[400,2], index: 1, kind: input, shape index: {}]
  %s2 = inlined_call_operand.hbm [shape: bf16[768,512], index: 2, kind: input, shape index: {}]
  %s3 = inlined_call_operand.hbm [shape: f32[1,512], index: 3, kind: input, shape index: {}]
  %s4 = inlined_call_operand.hbm [shape: f32[16,128], index: 4, kind: input, shape index: {}]
  %s5 = inlined_call_operand.hbm [shape: f32[2,128], index: 5, kind: input, shape index: {}]
  %s6 = inlined_call_operand.hbm [shape: f32[400,768], index: 6, kind: output, shape index: {}]
  %s7 = sld [smem:[#allocation0]]
  $region77: #{embedding_layer_concat.1} parent=0
    _
  %s9 = ssub.s32 1, %s7
  %s10 = scalar_select 0, %s9, %s7
  $region1: #{embedding_layer_concat.1} parent=0
    #allocation2 [shape = 'u8[1572864]{0}', space=vmem, size = 0x180000, scoped, tag = 'input window, operand 0']
    #allocation3 [shape = 's32[2]{0}', space=sflag, size = 0x8, scoped, tag = 'scoped memory for embedding_layer_concat.1']
    #allocation4 [shape = 's32[2]{0}', space=sflag, size = 0x8, scoped, tag = 'scoped memory for embedding_layer_concat.1']
    #allocation5 [shape = 'u8[786432]{0}', space=vmem, size = 0xc0000, scoped, tag = 'input window, operand 2, single buffered']
    #allocation6 [shape = 's32[1]{0}', space=sflag, size = 0x4, scoped, tag = 'scoped memory for embedding_layer_concat.1']
    #allocation7 [shape = 'u8[2048]{0}', space=vmem, size = 0x800, scoped, tag = 'input window, operand 3, single buffered']
    #allocation8 [shape = 'u8[8192]{0}', space=vmem, size = 0x2000, scoped, tag = 'input window, operand 4, single buffered']
    #allocation9 [shape = 's32[1]{0}', space=sflag, size = 0x4, scoped, tag = 'scoped memory for embedding_layer_concat.1']
    #allocation10 [shape = 'u8[1024]{0}', space=vmem, size = 0x400, scoped, tag = 'input window, operand 5, single buffered']
    #allocation11 [shape = 'u8[1572864]{0}', space=vmem, size = 0x180000, scoped, tag = 'output window, operand 0']
    %11 = vsyncpa [#allocation3], 0
    %s12 = scalar_lea.sflag [#allocation3], 1
    %13 = vsyncpa %s12, 0
    %14 = vsyncpa [#allocation6], 0
    %15 = vsyncpa [#allocation9], 0
    %16 = vsyncpa [#allocation4], 0
    %s17 = scalar_lea.sflag [#allocation4], 1
    %18 = vsyncpa %s17, 0
    loop: start=0, step=1, limit=4
    $region2: #{embedding_layer_concat.1} parent=1 // loop_pre_header
      _
    $region3: #{embedding_layer_concat.1} parent=1 // loop_header
      %s20 = sphi 0, %s24
      %p21 = scmp.ge.s32.totalorder %s20, 4
      %s30 = sphi 0, %s32
      %s33 = sphi 0, %s30
      %s34 = sphi 0, %s33
      %s50 = sphi 0, %s34
      %s56 = sphi 0, %s58
      %s59 = sphi 0, %s56
      %s60 = sphi 0, %s59
      %s76 = sphi 0, %s60
      %s80 = sphi 0, %s80
      %s82 = sphi 0, %s80
      %s83 = sphi 0, %s82
      %s97 = sphi 0, %s83
      %s101 = sphi 0, %s101
      %s103 = sphi 0, %s101
      %s104 = sphi 0, %s103
      %s118 = sphi 0, %s104
      %s122 = sphi 0, %s122
      %s124 = sphi 0, %s122
      %s125 = sphi 0, %s124
      %s139 = sphi 0, %s125
      %s143 = sphi 0, %s143
      %s145 = sphi 0, %s143
      %s146 = sphi 0, %s145
      %s160 = sphi 0, %s146
      %s166 = sphi 0, %s168
      %s169 = sphi 0, %s166
      %s170 = sphi 0, %s169
      %s186 = sphi 0, %s170
    $region4: #{embedding_layer_concat.1} parent=1 // loop_header_branch
      %23 = sbr.rel (%p21) target = $region8
    $region5: #{embedding_layer_concat.1} parent=1 // loop_body
      %s25 = ssub.s32 %s20, 1
      %s26 = ssub.s32 %s20, 2
      %s27 = sadd.s32 %s20, 1
      %s28 = ssub.s32 %s20, %s27
      %p29 = scmp.eq.s32.totalorder %s28, 0
      %s31 = sadd.s32 %s30, 1
      %s32 = scalar_select %p29, %s30, %s31
      %p35 = pneg %p29
      %p36 = scmp.eq.s32.totalorder %s20, 1
      %p37 = por %p35, %p36
      %p38 = scmp.ne.s32.totalorder %s30, %s33
      %p39 = scmp.eq.s32.totalorder %s20, 0
      %p40 = por %p38, %p39
      %p41 = scmp.ne.s32.totalorder %s30, %s33
      %p42 = scmp.eq.s32.totalorder %s25, 1
      %p43 = por %p41, %p42
      %p44 = scmp.ne.s32.totalorder %s33, %s34
      %p45 = scmp.eq.s32.totalorder %s25, 0
      %p46 = por %p44, %p45
      %p47 = scmp.ne.s32.totalorder %s33, %s34
      %p48 = scmp.eq.s32.totalorder %s26, 1
      %p49 = por %p47, %p48
      %p51 = scmp.ne.s32.totalorder %s34, %s50
      %p52 = scmp.eq.s32.totalorder %s26, 0
      %p53 = por %p51, %p52
      %s54 = ssub.s32 %s20, %s27
      %p55 = scmp.eq.s32.totalorder %s54, 0
      %s57 = sadd.s32 %s56, 1
      %s58 = scalar_select %p55, %s56, %s57
      %p61 = pneg %p55
      %p62 = scmp.eq.s32.totalorder %s20, 1
      %p63 = por %p61, %p62
      %p64 = scmp.ne.s32.totalorder %s56, %s59
      %p65 = scmp.eq.s32.totalorder %s20, 0
      %p66 = por %p64, %p65
      %p67 = scmp.ne.s32.totalorder %s56, %s59
      %p68 = scmp.eq.s32.totalorder %s25, 1
      %p69 = por %p67, %p68
      %p70 = scmp.ne.s32.totalorder %s59, %s60
      %p71 = scmp.eq.s32.totalorder %s25, 0
      %p72 = por %p70, %p71
      %p73 = scmp.ne.s32.totalorder %s59, %s60
      %p74 = scmp.eq.s32.totalorder %s26, 1
      %p75 = por %p73, %p74
      %p77 = scmp.ne.s32.totalorder %s60, %s76
      %p78 = scmp.eq.s32.totalorder %s26, 0
      %p79 = por %p77, %p78
      %s81 = sadd.s32 %s80, 1
      %p84 = scmp.eq.s32.totalorder %s20, 1
      %p85 = scmp.ne.s32.totalorder %s80, %s82
      %p86 = scmp.eq.s32.totalorder %s20, 0
      %p87 = por %p85, %p86
      %p88 = scmp.ne.s32.totalorder %s80, %s82
      %p89 = scmp.eq.s32.totalorder %s25, 1
      %p90 = por %p88, %p89
      %p91 = scmp.ne.s32.totalorder %s82, %s83
      %p92 = scmp.eq.s32.totalorder %s25, 0
      %p93 = por %p91, %p92
      %p94 = scmp.ne.s32.totalorder %s82, %s83
      %p95 = scmp.eq.s32.totalorder %s26, 1
      %p96 = por %p94, %p95
      %p98 = scmp.ne.s32.totalorder %s83, %s97
      %p99 = scmp.eq.s32.totalorder %s26, 0
      %p100 = por %p98, %p99
      %s102 = sadd.s32 %s101, 1
      %p105 = scmp.eq.s32.totalorder %s20, 1
      %p106 = scmp.ne.s32.totalorder %s101, %s103
      %p107 = scmp.eq.s32.totalorder %s20, 0
      %p108 = por %p106, %p107
      %p109 = scmp.ne.s32.totalorder %s101, %s103
      %p110 = scmp.eq.s32.totalorder %s25, 1
      %p111 = por %p109, %p110
      %p112 = scmp.ne.s32.totalorder %s103, %s104
      %p113 = scmp.eq.s32.totalorder %s25, 0
      %p114 = por %p112, %p113
      %p115 = scmp.ne.s32.totalorder %s103, %s104
      %p116 = scmp.eq.s32.totalorder %s26, 1
      %p117 = por %p115, %p116
      %p119 = scmp.ne.s32.totalorder %s104, %s118
      %p120 = scmp.eq.s32.totalorder %s26, 0
      %p121 = por %p119, %p120
      %s123 = sadd.s32 %s122, 1
      %p126 = scmp.eq.s32.totalorder %s20, 1
      %p127 = scmp.ne.s32.totalorder %s122, %s124
      %p128 = scmp.eq.s32.totalorder %s20, 0
      %p129 = por %p127, %p128
      %p130 = scmp.ne.s32.totalorder %s122, %s124
      %p131 = scmp.eq.s32.totalorder %s25, 1
      %p132 = por %p130, %p131
      %p133 = scmp.ne.s32.totalorder %s124, %s125
      %p134 = scmp.eq.s32.totalorder %s25, 0
      %p135 = por %p133, %p134
      %p136 = scmp.ne.s32.totalorder %s124, %s125
      %p137 = scmp.eq.s32.totalorder %s26, 1
      %p138 = por %p136, %p137
      %p140 = scmp.ne.s32.totalorder %s125, %s139
      %p141 = scmp.eq.s32.totalorder %s26, 0
      %p142 = por %p140, %p141
      %s144 = sadd.s32 %s143, 1
      %p147 = scmp.eq.s32.totalorder %s20, 1
      %p148 = scmp.ne.s32.totalorder %s143, %s145
      %p149 = scmp.eq.s32.totalorder %s20, 0
      %p150 = por %p148, %p149
      %p151 = scmp.ne.s32.totalorder %s143, %s145
      %p152 = scmp.eq.s32.totalorder %s25, 1
      %p153 = por %p151, %p152
      %p154 = scmp.ne.s32.totalorder %s145, %s146
      %p155 = scmp.eq.s32.totalorder %s25, 0
      %p156 = por %p154, %p155
      %p157 = scmp.ne.s32.totalorder %s145, %s146
      %p158 = scmp.eq.s32.totalorder %s26, 1
      %p159 = por %p157, %p158
      %p161 = scmp.ne.s32.totalorder %s146, %s160
      %p162 = scmp.eq.s32.totalorder %s26, 0
      %p163 = por %p161, %p162
      %s164 = ssub.s32 %s20, %s27
      %p165 = scmp.eq.s32.totalorder %s164, 0
      %s167 = sadd.s32 %s166, 1
      %s168 = scalar_select %p165, %s166, %s167
      %p171 = pneg %p165
      %p172 = scmp.eq.s32.totalorder %s20, 1
      %p173 = por %p171, %p172
      %p174 = scmp.ne.s32.totalorder %s166, %s169
      %p175 = scmp.eq.s32.totalorder %s20, 0
      %p176 = por %p174, %p175
      %p177 = scmp.ne.s32.totalorder %s166, %s169
      %p178 = scmp.eq.s32.totalorder %s25, 1
      %p179 = por %p177, %p178
      %p180 = scmp.ne.s32.totalorder %s169, %s170
      %p181 = scmp.eq.s32.totalorder %s25, 0
      %p182 = por %p180, %p181
      %p183 = scmp.ne.s32.totalorder %s169, %s170
      %p184 = scmp.eq.s32.totalorder %s26, 1
      %p185 = por %p183, %p184
      %p187 = scmp.ne.s32.totalorder %s170, %s186
      %p188 = scmp.eq.s32.totalorder %s26, 0
      %p189 = por %p187, %p188
      %p190 = scmp.le.s32.totalorder 1, %s20
      %p191 = scmp.lt.s32.totalorder %s20, 3
      %p192 = pnand %p190, %p191
      %p193 = pneg %p192
      // Predicated region
      $region9: #{embedding_layer_concat.1} parent=5 // pred_check
        _
      $region10: #{embedding_layer_concat.1} parent=5 // pred_check_branch
        %195 = sbr.rel (%p192) target = $region12
      $region11: #{embedding_layer_concat.1} parent=5 // pred_region
        %s196 = ssub.s32 %s20, 1
        // Predicated region
        $region13: #{embedding_layer_concat.1} parent=11 // pred_check
          %p197 = pneg %p93
        $region14: #{embedding_layer_concat.1} parent=11 // pred_check_branch
          %199 = sbr.rel (%p197) target = $region16
        $region15: #{embedding_layer_concat.1} parent=11 // pred_region
          %s201 = ssub.s32 24576, 24576
          %202 = vsyncadd [#allocation6], %s201
          %s203 = sshll.u32 [#allocation5], 4
          %s204 = int_to_ptr.vmem [resolvable:$true] %s203
          %209 = dma.hbm_to_vmem [thread:$0]  %s2, 24576, %s204, [#allocation6], 256, 256, 16
        $region16: #{embedding_layer_concat.1} parent=11 // pred_fallthru
          _
        // Predicated region
        $region17: #{embedding_layer_concat.1} parent=11 // pred_check
          %p210 = pneg %p114
        $region18: #{embedding_layer_concat.1} parent=11 // pred_check_branch
          %212 = sbr.rel (%p210) target = $region20
        $region19: #{embedding_layer_concat.1} parent=11 // pred_region
          %s214 = ssub.s32 64, 64
          %215 = vsyncadd [#allocation6], %s214
          %s217 = sshll.u32 [#allocation7], 4
          %s218 = int_to_ptr.vmem [resolvable:$true] %s217
          %220 = dma.hbm_to_vmem [thread:$0]  %s3, 64, %s218, [#allocation6]
        $region20: #{embedding_layer_concat.1} parent=11 // pred_fallthru
          _
        // Predicated region
        $region21: #{embedding_layer_concat.1} parent=11 // pred_check
          %p221 = pneg %p135
        $region22: #{embedding_layer_concat.1} parent=11 // pred_check_branch
          %223 = sbr.rel (%p221) target = $region24
        $region23: #{embedding_layer_concat.1} parent=11 // pred_region
          %s225 = ssub.s32 256, 256
          %226 = vsyncadd [#allocation9], %s225
          %s227 = sshll.u32 [#allocation8], 4
          %s228 = int_to_ptr.vmem [resolvable:$true] %s227
          %233 = dma.hbm_to_vmem [thread:$0]  %s4, 256, %s228, [#allocation9], 128, 128, 8
        $region24: #{embedding_layer_concat.1} parent=11 // pred_fallthru
          _
        // Predicated region
        $region25: #{embedding_layer_concat.1} parent=11 // pred_check
          %p234 = pneg %p156
        $region26: #{embedding_layer_concat.1} parent=11 // pred_check_branch
          %236 = sbr.rel (%p234) target = $region28
        $region27: #{embedding_layer_concat.1} parent=11 // pred_region
          %s238 = ssub.s32 32, 32
          %239 = vsyncadd [#allocation9], %s238
          %s241 = sshll.u32 [#allocation10], 4
          %s242 = int_to_ptr.vmem [resolvable:$true] %s241
          %244 = dma.hbm_to_vmem [thread:$0]  %s5, 32, %s242, [#allocation9]
        $region28: #{embedding_layer_concat.1} parent=11 // pred_fallthru
          _
      $region12: #{embedding_layer_concat.1} parent=5 // pred_fallthru
        _
      %p245 = scmp.lt.s32.totalorder %s20, 2
      // Predicated region
      $region29: #{embedding_layer_concat.1} parent=5 // pred_check
        %p246 = pneg %p245
      $region30: #{embedding_layer_concat.1} parent=5 // pred_check_branch
        %248 = sbr.rel (%p246) target = $region32
      $region31: #{embedding_layer_concat.1} parent=5 // pred_region
        // Predicated region
        $region33: #{embedding_layer_concat.1} parent=31 // pred_check
          %p249 = pneg %p40
        $region34: #{embedding_layer_concat.1} parent=31 // pred_check_branch
          %251 = sbr.rel (%p249) target = $region36
        $region35: #{embedding_layer_concat.1} parent=31 // pred_region
          %s252 = sand.u32 %s30, 1
          %s253 = scalar_lea.sflag [#allocation3], %s252
          %s254 = sand.u32 %s30, 1
          %s255 = smul.addr %s254, 1536
          %s256 = scalar_lea.vmem [#allocation2], %s255
          %s257 = smul.u32 32, %s20
          %s258 = ssub.s32 50, %s257
          %p259 = scmp.lt.s32.totalorder %s258, 32
          %s260 = scalar_select %p259, %s258, 32
          %s261 = smul.u32 128, %s260
          %s262 = smul.u32 %s261, 6
          %s264 = ssub.s32 24576, %s262
          %265 = vsyncadd %s253, %s264
          %p266 = scmp.ne.s32.totalorder 0, %s262
          %s267 = smul.addr %s257, 6
          %s268 = smul.addr %s267, 128
          %s269 = scalar_lea.hbm %s0, %s268
          %s270 = smul.u32 48, %s260
          %s271 = sshll.u32 %s256, 4
          %s272 = int_to_ptr.vmem [resolvable:$true] %s271
          %s273 = sshll.u32 %s270, 4
          %277 = dma.hbm_to_vmem [thread:$0]  (%p266), %s269, %s273, %s272, %s253, 768, 768, 48
        $region36: #{embedding_layer_concat.1} parent=31 // pred_fallthru
          _
        // Predicated region
        $region37: #{embedding_layer_concat.1} parent=31 // pred_check
          %p278 = pneg %p66
        $region38: #{embedding_layer_concat.1} parent=31 // pred_check_branch
          %280 = sbr.rel (%p278) target = $region40
        $region39: #{embedding_layer_concat.1} parent=31 // pred_region
          %s281 = smul.u32 32, %s20
          %s282 = ssub.s32 50, %s281
          %p283 = scmp.lt.s32.totalorder %s282, 32
          %s284 = scalar_select %p283, %s282, 32
          %s285 = smul.u32 128, %s284
          %p286 = scmp.lt.s32.totalorder %s281, 49
          %s287 = scalar_select %p286, %s281, 49
          %s288 = smul.addr %s287, 8
          %s289 = scalar_lea.vmem %s1, %s288
          %s290 = smul.u32 32, %s20
          %s291 = ssub.s32 50, %s290
          %p292 = scmp.lt.s32.totalorder %s291, 32
          %s293 = scalar_select %p292, %s291, 32
          %s294 = smul.u32 128, %s293
        $region40: #{embedding_layer_concat.1} parent=31 // pred_fallthru
          _
      $region32: #{embedding_layer_concat.1} parent=5 // pred_fallthru
        _
      %p295 = scmp.le.s32.totalorder 1, %s20
      %p296 = scmp.lt.s32.totalorder %s20, 3
      %p297 = pnand %p295, %p296
      %p298 = pneg %p297
      // Predicated region
      $region41: #{embedding_layer_concat.1} parent=5 // pred_check
        _
      $region42: #{embedding_layer_concat.1} parent=5 // pred_check_branch
        %300 = sbr.rel (%p297) target = $region44
      $region43: #{embedding_layer_concat.1} parent=5 // pred_region
        %s301 = ssub.s32 %s20, 1
        %s302 = sand.u32 %s33, 1
        %s303 = scalar_lea.sflag [#allocation3], %s302
        %s304 = sand.u32 %s33, 1
        %s305 = smul.addr %s304, 1536
        %s306 = scalar_lea.vmem [#allocation2], %s305
        // Predicated region
        $region45: #{embedding_layer_concat.1} parent=43 // pred_check
          %p307 = pneg %p46
        $region46: #{embedding_layer_concat.1} parent=43 // pred_check_branch
          %309 = sbr.rel (%p307) target = $region48
        $region47: #{embedding_layer_concat.1} parent=43 // pred_region
          %310 = dma.done %s303, 24576
        $region48: #{embedding_layer_concat.1} parent=43 // pred_fallthru
          _
        // Predicated region
        $region49: #{embedding_layer_concat.1} parent=43 // pred_check
          %p311 = pneg %p93
        $region50: #{embedding_layer_concat.1} parent=43 // pred_check_branch
          %313 = sbr.rel (%p311) target = $region52
        $region51: #{embedding_layer_concat.1} parent=43 // pred_region
          %314 = dma.done [#allocation6], 24576
        $region52: #{embedding_layer_concat.1} parent=43 // pred_fallthru
          _
        // Predicated region
        $region53: #{embedding_layer_concat.1} parent=43 // pred_check
          %p315 = pneg %p114
        $region54: #{embedding_layer_concat.1} parent=43 // pred_check_branch
          %317 = sbr.rel (%p315) target = $region56
        $region55: #{embedding_layer_concat.1} parent=43 // pred_region
          %318 = dma.done [#allocation6], 64
        $region56: #{embedding_layer_concat.1} parent=43 // pred_fallthru
          _
        // Predicated region
        $region57: #{embedding_layer_concat.1} parent=43 // pred_check
          %p319 = pneg %p135
        $region58: #{embedding_layer_concat.1} parent=43 // pred_check_branch
          %321 = sbr.rel (%p319) target = $region60
        $region59: #{embedding_layer_concat.1} parent=43 // pred_region
          %322 = dma.done [#allocation9], 256
        $region60: #{embedding_layer_concat.1} parent=43 // pred_fallthru
          _
        // Predicated region
        $region61: #{embedding_layer_concat.1} parent=43 // pred_check
          %p323 = pneg %p156
        $region62: #{embedding_layer_concat.1} parent=43 // pred_check_branch
          %325 = sbr.rel (%p323) target = $region64
        $region63: #{embedding_layer_concat.1} parent=43 // pred_region
          %326 = dma.done [#allocation9], 32
        $region64: #{embedding_layer_concat.1} parent=43 // pred_fallthru
          _
        %s327 = sand.u32 %s33, 1
        %s328 = scalar_lea.sflag [#allocation3], %s327
        %s329 = sand.u32 %s33, 1
        %s330 = smul.addr %s329, 1536
        %s331 = scalar_lea.vmem [#allocation2], %s330
        %p332 = pneg %p46
        %p333 = pneg %p43
        %s334 = smul.u32 32, %s25
        %s335 = ssub.s32 50, %s334
        %p336 = scmp.lt.s32.totalorder %s335, 32
        %s337 = scalar_select %p336, %s335, 32
        %s338 = smul.u32 128, %s337
        %p339 = scmp.lt.s32.totalorder %s334, 49
        %s340 = scalar_select %p339, %s334, 49
        %s341 = smul.addr %s340, 8
        %s342 = scalar_lea.vmem %s1, %s341
        %p343 = pneg %p72
        %p344 = pneg %p69
        %p345 = pneg %p93
        %p346 = pneg %p90
        %p347 = pneg %p114
        %p348 = pneg %p111
        %p349 = pneg %p135
        %p350 = pneg %p132
        %p351 = pneg %p156
        %p352 = pneg %p153
        %p353 = pneg %p182
        %p354 = pneg %p179
        %s355 = sand.u32 %s169, 1
        %s356 = scalar_lea.sflag [#allocation4], %s355
        %s357 = sand.u32 %s169, 1
        %s358 = smul.addr %s357, 1536
        %s359 = scalar_lea.vmem [#allocation11], %s358
        %s360 = smul.u32 32, %s25
        %s361 = ssub.s32 50, %s360
        %p362 = scmp.lt.s32.totalorder %s361, 32
        %s363 = scalar_select %p362, %s361, 32
        %s364 = smul.u32 128, %s363
        %s365 = smul.u32 %s364, 6
        %s366 = smul.u32 32, %s25
        %s367 = ssub.s32 50, %s366
        %p368 = scmp.lt.s32.totalorder %s367, 32
        %s369 = scalar_select %p368, %s367, 32
        %s370 = smul.u32 128, %s369
        %p371 = scmp.lt.s32.totalorder %s366, 49
        %s372 = scalar_select %p371, %s366, 49
        %s373 = smul.addr %s372, 8
        %s374 = scalar_lea.vmem %s1, %s373
        %s375 = smul.u32 32, %s25
        %s376 = ssub.s32 50, %s375
        %p377 = scmp.lt.s32.totalorder %s376, 32
        %s378 = scalar_select %p377, %s376, 32
        %s379 = smul.u32 128, %s378
        %s380 = smul.u32 32, %s25
        %s381 = ssub.s32 50, %s380
        %p382 = scmp.lt.s32.totalorder %s381, 32
        %s383 = scalar_select %p382, %s381, 32
        %s384 = smul.u32 128, %s383
        %s385 = smul.u32 %s384, 6
        %v386 = vld [vmem:[%s306] sm:$0xff]
        %v387 = vld [vmem:[%s306 + $0x8] sm:$0xff]
        %v388 = vld [vmem:[%s306 + $0x10] sm:$0xff]
        %v389 = vld [vmem:[%s306 + $0x18] sm:$0xff]
        %v390 = vld [vmem:[%s306 + $0x20] sm:$0xff]
        %v391 = vld [vmem:[%s306 + $0x28] sm:$0xff]
        %v392 = vld [vmem:[%s306 + $0x30] sm:$0xff]
        %v393 = vld [vmem:[%s306 + $0x38] sm:$0xff]
        %v394 = vld [vmem:[%s306 + $0x40] sm:$0xff]
        %v395 = vld [vmem:[%s306 + $0x48] sm:$0xff]
        %v396 = vld [vmem:[%s306 + $0x50] sm:$0xff]
        %v397 = vld [vmem:[%s306 + $0x58] sm:$0xff]
        %v398 = vld [vmem:[%s306 + $0x60] sm:$0xff]
        %v399 = vld [vmem:[%s306 + $0x68] sm:$0xff]
        %v400 = vld [vmem:[%s306 + $0x70] sm:$0xff]
        %v401 = vld [vmem:[%s306 + $0x78] sm:$0xff]
        %v402 = vld [vmem:[%s306 + $0x80] sm:$0xff]
        %v403 = vld [vmem:[%s306 + $0x88] sm:$0xff]
        %v404 = vld [vmem:[%s306 + $0x90] sm:$0xff]
        %v405 = vld [vmem:[%s306 + $0x98] sm:$0xff]
        %v406 = vld [vmem:[%s306 + $0xa0] sm:$0xff]
        %v407 = vld [vmem:[%s306 + $0xa8] sm:$0xff]
        %v408 = vld [vmem:[%s306 + $0xb0] sm:$0xff]
        %v409 = vld [vmem:[%s306 + $0xb8] sm:$0xff]
        %v410 = vld [vmem:[%s306 + $0xc0] sm:$0xff]
        %v411 = vld [vmem:[%s306 + $0xc8] sm:$0xff]
        %v412 = vld [vmem:[%s306 + $0xd0] sm:$0xff]
        %v413 = vld [vmem:[%s306 + $0xd8] sm:$0xff]
        %v414 = vld [vmem:[%s306 + $0xe0] sm:$0xff]
        %v415 = vld [vmem:[%s306 + $0xe8] sm:$0xff]
        %v416 = vld [vmem:[%s306 + $0xf0] sm:$0xff]
        %v417 = vld [vmem:[%s306 + $0xf8] sm:$0xff]
        %v418 = vld [vmem:[%s306 + $0x100] sm:$0xff]
        %v419 = vld [vmem:[%s306 + $0x108] sm:$0xff]
        %v420 = vld [vmem:[%s306 + $0x110] sm:$0xff]
        %v421 = vld [vmem:[%s306 + $0x118] sm:$0xff]
        %v422 = vld [vmem:[%s306 + $0x120] sm:$0xff]
        %v423 = vld [vmem:[%s306 + $0x128] sm:$0xff]
        %v424 = vld [vmem:[%s306 + $0x130] sm:$0xff]
        %v425 = vld [vmem:[%s306 + $0x138] sm:$0xff]
        %v426 = vld [vmem:[%s306 + $0x140] sm:$0xff]
        %v427 = vld [vmem:[%s306 + $0x148] sm:$0xff]
        %v428 = vld [vmem:[%s306 + $0x150] sm:$0xff]
        %v429 = vld [vmem:[%s306 + $0x158] sm:$0xff]
        %v430 = vld [vmem:[%s306 + $0x160] sm:$0xff]
        %v431 = vld [vmem:[%s306 + $0x168] sm:$0xff]
        %v432 = vld [vmem:[%s306 + $0x170] sm:$0xff]
        %v433 = vld [vmem:[%s306 + $0x178] sm:$0xff]
        %v434 = vld [vmem:[%s306 + $0x180] sm:$0xff]
        %v435 = vld [vmem:[%s306 + $0x188] sm:$0xff]
        %v436 = vld [vmem:[%s306 + $0x190] sm:$0xff]
        %v437 = vld [vmem:[%s306 + $0x198] sm:$0xff]
        %v438 = vld [vmem:[%s306 + $0x1a0] sm:$0xff]
        %v439 = vld [vmem:[%s306 + $0x1a8] sm:$0xff]
        %v440 = vld [vmem:[%s306 + $0x1b0] sm:$0xff]
        %v441 = vld [vmem:[%s306 + $0x1b8] sm:$0xff]
        %v442 = vld [vmem:[%s306 + $0x1c0] sm:$0xff]
        %v443 = vld [vmem:[%s306 + $0x1c8] sm:$0xff]
        %v444 = vld [vmem:[%s306 + $0x1d0] sm:$0xff]
        %v445 = vld [vmem:[%s306 + $0x1d8] sm:$0xff]
        %v446 = vld [vmem:[%s306 + $0x1e0] sm:$0xff]
        %v447 = vld [vmem:[%s306 + $0x1e8] sm:$0xff]
        %v448 = vld [vmem:[%s306 + $0x1f0] sm:$0xff]
        %v449 = vld [vmem:[%s306 + $0x1f8] sm:$0xff]
        %v450 = vld [vmem:[%s306 + $0x200] sm:$0xff]
        %v451 = vld [vmem:[%s306 + $0x208] sm:$0xff]
        %v452 = vld [vmem:[%s306 + $0x210] sm:$0xff]
        %v453 = vld [vmem:[%s306 + $0x218] sm:$0xff]
        %v454 = vld [vmem:[%s306 + $0x220] sm:$0xff]
        %v455 = vld [vmem:[%s306 + $0x228] sm:$0xff]
        %v456 = vld [vmem:[%s306 + $0x230] sm:$0xff]
        %v457 = vld [vmem:[%s306 + $0x238] sm:$0xff]
        %v458 = vld [vmem:[%s306 + $0x240] sm:$0xff]
        %v459 = vld [vmem:[%s306 + $0x248] sm:$0xff]
        %v460 = vld [vmem:[%s306 + $0x250] sm:$0xff]
        %v461 = vld [vmem:[%s306 + $0x258] sm:$0xff]
        %v462 = vld [vmem:[%s306 + $0x260] sm:$0xff]
        %v463 = vld [vmem:[%s306 + $0x268] sm:$0xff]
        %v464 = vld [vmem:[%s306 + $0x270] sm:$0xff]
        %v465 = vld [vmem:[%s306 + $0x278] sm:$0xff]
        %v466 = vld [vmem:[%s306 + $0x280] sm:$0xff]
        %v467 = vld [vmem:[%s306 + $0x288] sm:$0xff]
        %v468 = vld [vmem:[%s306 + $0x290] sm:$0xff]
        %v469 = vld [vmem:[%s306 + $0x298] sm:$0xff]
        %v470 = vld [vmem:[%s306 + $0x2a0] sm:$0xff]
        %v471 = vld [vmem:[%s306 + $0x2a8] sm:$0xff]
        %v472 = vld [vmem:[%s306 + $0x2b0] sm:$0xff]
        %v473 = vld [vmem:[%s306 + $0x2b8] sm:$0xff]
        %v474 = vld [vmem:[%s306 + $0x2c0] sm:$0xff]
        %v475 = vld [vmem:[%s306 + $0x2c8] sm:$0xff]
        %v476 = vld [vmem:[%s306 + $0x2d0] sm:$0xff]
        %v477 = vld [vmem:[%s306 + $0x2d8] sm:$0xff]
        %v478 = vld [vmem:[%s306 + $0x2e0] sm:$0xff]
        %v479 = vld [vmem:[%s306 + $0x2e8] sm:$0xff]
        %v480 = vld [vmem:[%s306 + $0x2f0] sm:$0xff]
        %v481 = vld [vmem:[%s306 + $0x2f8] sm:$0xff]
        %v482 = vld [vmem:[%s306 + $0x300] sm:$0xff]
        %v483 = vld [vmem:[%s306 + $0x308] sm:$0xff]
        %v484 = vld [vmem:[%s306 + $0x310] sm:$0xff]
        %v485 = vld [vmem:[%s306 + $0x318] sm:$0xff]
        %v486 = vld [vmem:[%s306 + $0x320] sm:$0xff]
        %v487 = vld [vmem:[%s306 + $0x328] sm:$0xff]
        %v488 = vld [vmem:[%s306 + $0x330] sm:$0xff]
        %v489 = vld [vmem:[%s306 + $0x338] sm:$0xff]
        %v490 = vld [vmem:[%s306 + $0x340] sm:$0xff]
        %v491 = vld [vmem:[%s306 + $0x348] sm:$0xff]
        %v492 = vld [vmem:[%s306 + $0x350] sm:$0xff]
        %v493 = vld [vmem:[%s306 + $0x358] sm:$0xff]
        %v494 = vld [vmem:[%s306 + $0x360] sm:$0xff]
        %v495 = vld [vmem:[%s306 + $0x368] sm:$0xff]
        %v496 = vld [vmem:[%s306 + $0x370] sm:$0xff]
        %v497 = vld [vmem:[%s306 + $0x378] sm:$0xff]
        %v498 = vld [vmem:[%s306 + $0x380] sm:$0xff]
        %v499 = vld [vmem:[%s306 + $0x388] sm:$0xff]
        %v500 = vld [vmem:[%s306 + $0x390] sm:$0xff]
        %v501 = vld [vmem:[%s306 + $0x398] sm:$0xff]
        %v502 = vld [vmem:[%s306 + $0x3a0] sm:$0xff]
        %v503 = vld [vmem:[%s306 + $0x3a8] sm:$0xff]
        %v504 = vld [vmem:[%s306 + $0x3b0] sm:$0xff]
        %v505 = vld [vmem:[%s306 + $0x3b8] sm:$0xff]
        %v506 = vld [vmem:[%s306 + $0x3c0] sm:$0xff]
        %v507 = vld [vmem:[%s306 + $0x3c8] sm:$0xff]
        %v508 = vld [vmem:[%s306 + $0x3d0] sm:$0xff]
        %v509 = vld [vmem:[%s306 + $0x3d8] sm:$0xff]
        %v510 = vld [vmem:[%s306 + $0x3e0] sm:$0xff]
        %v511 = vld [vmem:[%s306 + $0x3e8] sm:$0xff]
        %v512 = vld [vmem:[%s306 + $0x3f0] sm:$0xff]
        %v513 = vld [vmem:[%s306 + $0x3f8] sm:$0xff]
        %v514 = vld [vmem:[%s306 + $0x400] sm:$0xff]
        %v515 = vld [vmem:[%s306 + $0x408] sm:$0xff]
        %v516 = vld [vmem:[%s306 + $0x410] sm:$0xff]
        %v517 = vld [vmem:[%s306 + $0x418] sm:$0xff]
        %v518 = vld [vmem:[%s306 + $0x420] sm:$0xff]
        %v519 = vld [vmem:[%s306 + $0x428] sm:$0xff]
        %v520 = vld [vmem:[%s306 + $0x430] sm:$0xff]
        %v521 = vld [vmem:[%s306 + $0x438] sm:$0xff]
        %v522 = vld [vmem:[%s306 + $0x440] sm:$0xff]
        %v523 = vld [vmem:[%s306 + $0x448] sm:$0xff]
        %v524 = vld [vmem:[%s306 + $0x450] sm:$0xff]
        %v525 = vld [vmem:[%s306 + $0x458] sm:$0xff]
        %v526 = vld [vmem:[%s306 + $0x460] sm:$0xff]
        %v527 = vld [vmem:[%s306 + $0x468] sm:$0xff]
        %v528 = vld [vmem:[%s306 + $0x470] sm:$0xff]
        %v529 = vld [vmem:[%s306 + $0x478] sm:$0xff]
        %v530 = vld [vmem:[%s306 + $0x480] sm:$0xff]
        %v531 = vld [vmem:[%s306 + $0x488] sm:$0xff]
        %v532 = vld [vmem:[%s306 + $0x490] sm:$0xff]
        %v533 = vld [vmem:[%s306 + $0x498] sm:$0xff]
        %v534 = vld [vmem:[%s306 + $0x4a0] sm:$0xff]
        %v535 = vld [vmem:[%s306 + $0x4a8] sm:$0xff]
        %v536 = vld [vmem:[%s306 + $0x4b0] sm:$0xff]
        %v537 = vld [vmem:[%s306 + $0x4b8] sm:$0xff]
        %v538 = vld [vmem:[%s306 + $0x4c0] sm:$0xff]
        %v539 = vld [vmem:[%s306 + $0x4c8] sm:$0xff]
        %v540 = vld [vmem:[%s306 + $0x4d0] sm:$0xff]
        %v541 = vld [vmem:[%s306 + $0x4d8] sm:$0xff]
        %v542 = vld [vmem:[%s306 + $0x4e0] sm:$0xff]
        %v543 = vld [vmem:[%s306 + $0x4e8] sm:$0xff]
        %v544 = vld [vmem:[%s306 + $0x4f0] sm:$0xff]
        %v545 = vld [vmem:[%s306 + $0x4f8] sm:$0xff]
        %v546 = vld [vmem:[%s306 + $0x500] sm:$0xff]
        %v547 = vld [vmem:[%s306 + $0x508] sm:$0xff]
        %v548 = vld [vmem:[%s306 + $0x510] sm:$0xff]
        %v549 = vld [vmem:[%s306 + $0x518] sm:$0xff]
        %v550 = vld [vmem:[%s306 + $0x520] sm:$0xff]
        %v551 = vld [vmem:[%s306 + $0x528] sm:$0xff]
        %v552 = vld [vmem:[%s306 + $0x530] sm:$0xff]
        %v553 = vld [vmem:[%s306 + $0x538] sm:$0xff]
        %v554 = vld [vmem:[%s306 + $0x540] sm:$0xff]
        %v555 = vld [vmem:[%s306 + $0x548] sm:$0xff]
        %v556 = vld [vmem:[%s306 + $0x550] sm:$0xff]
        %v557 = vld [vmem:[%s306 + $0x558] sm:$0xff]
        %v558 = vld [vmem:[%s306 + $0x560] sm:$0xff]
        %v559 = vld [vmem:[%s306 + $0x568] sm:$0xff]
        %v560 = vld [vmem:[%s306 + $0x570] sm:$0xff]
        %v561 = vld [vmem:[%s306 + $0x578] sm:$0xff]
        %v562 = vld [vmem:[%s306 + $0x580] sm:$0xff]
        %v563 = vld [vmem:[%s306 + $0x588] sm:$0xff]
        %v564 = vld [vmem:[%s306 + $0x590] sm:$0xff]
        %v565 = vld [vmem:[%s306 + $0x598] sm:$0xff]
        %v566 = vld [vmem:[%s306 + $0x5a0] sm:$0xff]
        %v567 = vld [vmem:[%s306 + $0x5a8] sm:$0xff]
        %v568 = vld [vmem:[%s306 + $0x5b0] sm:$0xff]
        %v569 = vld [vmem:[%s306 + $0x5b8] sm:$0xff]
        %v570 = vld [vmem:[%s306 + $0x5c0] sm:$0xff]
        %v571 = vld [vmem:[%s306 + $0x5c8] sm:$0xff]
        %v572 = vld [vmem:[%s306 + $0x5d0] sm:$0xff]
        %v573 = vld [vmem:[%s306 + $0x5d8] sm:$0xff]
        %v574 = vld [vmem:[%s306 + $0x5e0] sm:$0xff]
        %v575 = vld [vmem:[%s306 + $0x5e8] sm:$0xff]
        %v576 = vld [vmem:[%s306 + $0x5f0] sm:$0xff]
        %v577 = vld [vmem:[%s306 + $0x5f8] sm:$0xff]
        %v578 = vpack.c.bf16 %v392, %v386
        %v579 = vpack.c.bf16 %v393, %v387
        %v580 = vpack.c.bf16 %v394, %v388
        %v581 = vpack.c.bf16 %v395, %v389
        %v582 = vpack.c.bf16 %v396, %v390
        %v583 = vpack.c.bf16 %v397, %v391
        %v584 = vpack.c.bf16 %v404, %v398
        %v585 = vpack.c.bf16 %v405, %v399
        %v586 = vpack.c.bf16 %v406, %v400
        %v587 = vpack.c.bf16 %v407, %v401
        %v588 = vpack.c.bf16 %v408, %v402
        %v589 = vpack.c.bf16 %v409, %v403
        %v590 = vpack.c.bf16 %v416, %v410
        %v591 = vpack.c.bf16 %v417, %v411
        %v592 = vpack.c.bf16 %v418, %v412
        %v593 = vpack.c.bf16 %v419, %v413
        %v594 = vpack.c.bf16 %v420, %v414
        %v595 = vpack.c.bf16 %v421, %v415
        %v596 = vpack.c.bf16 %v428, %v422
        %v597 = vpack.c.bf16 %v429, %v423
        %v598 = vpack.c.bf16 %v430, %v424
        %v599 = vpack.c.bf16 %v431, %v425
        %v600 = vpack.c.bf16 %v432, %v426
        %v601 = vpack.c.bf16 %v433, %v427
        %v602 = vpack.c.bf16 %v440, %v434
        %v603 = vpack.c.bf16 %v441, %v435
        %v604 = vpack.c.bf16 %v442, %v436
        %v605 = vpack.c.bf16 %v443, %v437
        %v606 = vpack.c.bf16 %v444, %v438
        %v607 = vpack.c.bf16 %v445, %v439
        %v608 = vpack.c.bf16 %v452, %v446
        %v609 = vpack.c.bf16 %v453, %v447
        %v610 = vpack.c.bf16 %v454, %v448
        %v611 = vpack.c.bf16 %v455, %v449
        %v612 = vpack.c.bf16 %v456, %v450
        %v613 = vpack.c.bf16 %v457, %v451
        %v614 = vpack.c.bf16 %v464, %v458
        %v615 = vpack.c.bf16 %v465, %v459
        %v616 = vpack.c.bf16 %v466, %v460
        %v617 = vpack.c.bf16 %v467, %v461
        %v618 = vpack.c.bf16 %v468, %v462
        %v619 = vpack.c.bf16 %v469, %v463
        %v620 = vpack.c.bf16 %v476, %v470
        %v621 = vpack.c.bf16 %v477, %v471
        %v622 = vpack.c.bf16 %v478, %v472
        %v623 = vpack.c.bf16 %v479, %v473
        %v624 = vpack.c.bf16 %v480, %v474
        %v625 = vpack.c.bf16 %v481, %v475
        %v626 = vpack.c.bf16 %v488, %v482
        %v627 = vpack.c.bf16 %v489, %v483
        %v628 = vpack.c.bf16 %v490, %v484
        %v629 = vpack.c.bf16 %v491, %v485
        %v630 = vpack.c.bf16 %v492, %v486
        %v631 = vpack.c.bf16 %v493, %v487
        %v632 = vpack.c.bf16 %v500, %v494
        %v633 = vpack.c.bf16 %v501, %v495
        %v634 = vpack.c.bf16 %v502, %v496
        %v635 = vpack.c.bf16 %v503, %v497
        %v636 = vpack.c.bf16 %v504, %v498
        %v637 = vpack.c.bf16 %v505, %v499
        %v638 = vpack.c.bf16 %v512, %v506
        %v639 = vpack.c.bf16 %v513, %v507
        %v640 = vpack.c.bf16 %v514, %v508
        %v641 = vpack.c.bf16 %v515, %v509
        %v642 = vpack.c.bf16 %v516, %v510
        %v643 = vpack.c.bf16 %v517, %v511
        %v644 = vpack.c.bf16 %v524, %v518
        %v645 = vpack.c.bf16 %v525, %v519
        %v646 = vpack.c.bf16 %v526, %v520
        %v647 = vpack.c.bf16 %v527, %v521
        %v648 = vpack.c.bf16 %v528, %v522
        %v649 = vpack.c.bf16 %v529, %v523
        %v650 = vpack.c.bf16 %v536, %v530
        %v651 = vpack.c.bf16 %v537, %v531
        %v652 = vpack.c.bf16 %v538, %v532
        %v653 = vpack.c.bf16 %v539, %v533
        %v654 = vpack.c.bf16 %v540, %v534
        %v655 = vpack.c.bf16 %v541, %v535
        %v656 = vpack.c.bf16 %v548, %v542
        %v657 = vpack.c.bf16 %v549, %v543
        %v658 = vpack.c.bf16 %v550, %v544
        %v659 = vpack.c.bf16 %v551, %v545
        %v660 = vpack.c.bf16 %v552, %v546
        %v661 = vpack.c.bf16 %v553, %v547
        %v662 = vpack.c.bf16 %v560, %v554
        %v663 = vpack.c.bf16 %v561, %v555
        %v664 = vpack.c.bf16 %v562, %v556
        %v665 = vpack.c.bf16 %v563, %v557
        %v666 = vpack.c.bf16 %v564, %v558
        %v667 = vpack.c.bf16 %v565, %v559
        %v668 = vpack.c.bf16 %v572, %v566
        %v669 = vpack.c.bf16 %v573, %v567
        %v670 = vpack.c.bf16 %v574, %v568
        %v671 = vpack.c.bf16 %v575, %v569
        %v672 = vpack.c.bf16 %v576, %v570
        %v673 = vpack.c.bf16 %v577, %v571
        %v674 = vld [vmem:[#allocation5] sm:$0xff]
        %v675 = vld [vmem:[#allocation5 + $0x8] sm:$0xff]
        %v676 = vld [vmem:[#allocation5 + $0x10] sm:$0xff]
        %v677 = vld [vmem:[#allocation5 + $0x18] sm:$0xff]
        %v678 = vld [vmem:[#allocation5 + $0x20] sm:$0xff]
        %v679 = vld [vmem:[#allocation5 + $0x28] sm:$0xff]
        %v680 = vld [vmem:[#allocation5 + $0x30] sm:$0xff]
        %v681 = vld [vmem:[#allocation5 + $0x38] sm:$0xff]
        %v682 = vld [vmem:[#allocation5 + $0x40] sm:$0xff]
        %v683 = vld [vmem:[#allocation5 + $0x48] sm:$0xff]
        %v684 = vld [vmem:[#allocation5 + $0x50] sm:$0xff]
        %v685 = vld [vmem:[#allocation5 + $0x58] sm:$0xff]
        %v686 = vld [vmem:[#allocation5 + $0x60] sm:$0xff]
        %v687 = vld [vmem:[#allocation5 + $0x68] sm:$0xff]
        %v688 = vld [vmem:[#allocation5 + $0x70] sm:$0xff]
        %v689 = vld [vmem:[#allocation5 + $0x78] sm:$0xff]
        %v690 = vld [vmem:[#allocation5 + $0x80] sm:$0xff]
        %v691 = vld [vmem:[#allocation5 + $0x88] sm:$0xff]
        %v692 = vld [vmem:[#allocation5 + $0x90] sm:$0xff]
        %v693 = vld [vmem:[#allocation5 + $0x98] sm:$0xff]
        %v694 = vld [vmem:[#allocation5 + $0xa0] sm:$0xff]
        %v695 = vld [vmem:[#allocation5 + $0xa8] sm:$0xff]
        %v696 = vld [vmem:[#allocation5 + $0xb0] sm:$0xff]
        %v697 = vld [vmem:[#allocation5 + $0xb8] sm:$0xff]
        %v698 = vld [vmem:[#allocation5 + $0xc0] sm:$0xff]
        %v699 = vld [vmem:[#allocation5 + $0xc8] sm:$0xff]
        %v700 = vld [vmem:[#allocation5 + $0xd0] sm:$0xff]
        %v701 = vld [vmem:[#allocation5 + $0xd8] sm:$0xff]
        %v702 = vld [vmem:[#allocation5 + $0xe0] sm:$0xff]
        %v703 = vld [vmem:[#allocation5 + $0xe8] sm:$0xff]
        %v704 = vld [vmem:[#allocation5 + $0xf0] sm:$0xff]
        %v705 = vld [vmem:[#allocation5 + $0xf8] sm:$0xff]
        %v706 = vld [vmem:[#allocation5 + $0x100] sm:$0xff]
        %v707 = vld [vmem:[#allocation5 + $0x108] sm:$0xff]
        %v708 = vld [vmem:[#allocation5 + $0x110] sm:$0xff]
        %v709 = vld [vmem:[#allocation5 + $0x118] sm:$0xff]
        %v710 = vld [vmem:[#allocation5 + $0x120] sm:$0xff]
        %v711 = vld [vmem:[#allocation5 + $0x128] sm:$0xff]
        %v712 = vld [vmem:[#allocation5 + $0x130] sm:$0xff]
        %v713 = vld [vmem:[#allocation5 + $0x138] sm:$0xff]
        %v714 = vld [vmem:[#allocation5 + $0x140] sm:$0xff]
        %v715 = vld [vmem:[#allocation5 + $0x148] sm:$0xff]
        %v716 = vld [vmem:[#allocation5 + $0x150] sm:$0xff]
        %v717 = vld [vmem:[#allocation5 + $0x158] sm:$0xff]
        %v718 = vld [vmem:[#allocation5 + $0x160] sm:$0xff]
        %v719 = vld [vmem:[#allocation5 + $0x168] sm:$0xff]
        %v720 = vld [vmem:[#allocation5 + $0x170] sm:$0xff]
        %v721 = vld [vmem:[#allocation5 + $0x178] sm:$0xff]
        %v722 = vld [vmem:[#allocation5 + $0x180] sm:$0xff]
        %v723 = vld [vmem:[#allocation5 + $0x188] sm:$0xff]
        %v724 = vld [vmem:[#allocation5 + $0x190] sm:$0xff]
        %v725 = vld [vmem:[#allocation5 + $0x198] sm:$0xff]
        %v726 = vld [vmem:[#allocation5 + $0x1a0] sm:$0xff]
        %v727 = vld [vmem:[#allocation5 + $0x1a8] sm:$0xff]
        %v728 = vld [vmem:[#allocation5 + $0x1b0] sm:$0xff]
        %v729 = vld [vmem:[#allocation5 + $0x1b8] sm:$0xff]
        %v730 = vld [vmem:[#allocation5 + $0x1c0] sm:$0xff]
        %v731 = vld [vmem:[#allocation5 + $0x1c8] sm:$0xff]
        %v732 = vld [vmem:[#allocation5 + $0x1d0] sm:$0xff]
        %v733 = vld [vmem:[#allocation5 + $0x1d8] sm:$0xff]
        %v734 = vld [vmem:[#allocation5 + $0x1e0] sm:$0xff]
        %v735 = vld [vmem:[#allocation5 + $0x1e8] sm:$0xff]
        %v736 = vld [vmem:[#allocation5 + $0x1f0] sm:$0xff]
        %v737 = vld [vmem:[#allocation5 + $0x1f8] sm:$0xff]
        %v738 = vld [vmem:[#allocation5 + $0x200] sm:$0xff]
        %v739 = vld [vmem:[#allocation5 + $0x208] sm:$0xff]
        %v740 = vld [vmem:[#allocation5 + $0x210] sm:$0xff]
        %v741 = vld [vmem:[#allocation5 + $0x218] sm:$0xff]
        %v742 = vld [vmem:[#allocation5 + $0x220] sm:$0xff]
        %v743 = vld [vmem:[#allocation5 + $0x228] sm:$0xff]
        %v744 = vld [vmem:[#allocation5 + $0x230] sm:$0xff]
        %v745 = vld [vmem:[#allocation5 + $0x238] sm:$0xff]
        %v746 = vld [vmem:[#allocation5 + $0x240] sm:$0xff]
        %v747 = vld [vmem:[#allocation5 + $0x248] sm:$0xff]
        %v748 = vld [vmem:[#allocation5 + $0x250] sm:$0xff]
        %v749 = vld [vmem:[#allocation5 + $0x258] sm:$0xff]
        %v750 = vld [vmem:[#allocation5 + $0x260] sm:$0xff]
        %v751 = vld [vmem:[#allocation5 + $0x268] sm:$0xff]
        %v752 = vld [vmem:[#allocation5 + $0x270] sm:$0xff]
        %v753 = vld [vmem:[#allocation5 + $0x278] sm:$0xff]
        %v754 = vld [vmem:[#allocation5 + $0x280] sm:$0xff]
        %v755 = vld [vmem:[#allocation5 + $0x288] sm:$0xff]
        %v756 = vld [vmem:[#allocation5 + $0x290] sm:$0xff]
        %v757 = vld [vmem:[#allocation5 + $0x298] sm:$0xff]
        %v758 = vld [vmem:[#allocation5 + $0x2a0] sm:$0xff]
        %v759 = vld [vmem:[#allocation5 + $0x2a8] sm:$0xff]
        %v760 = vld [vmem:[#allocation5 + $0x2b0] sm:$0xff]
        %v761 = vld [vmem:[#allocation5 + $0x2b8] sm:$0xff]
        %v762 = vld [vmem:[#allocation5 + $0x2c0] sm:$0xff]
        %v763 = vld [vmem:[#allocation5 + $0x2c8] sm:$0xff]
        %v764 = vld [vmem:[#allocation5 + $0x2d0] sm:$0xff]
        %v765 = vld [vmem:[#allocation5 + $0x2d8] sm:$0xff]
        %v766 = vld [vmem:[#allocation5 + $0x2e0] sm:$0xff]
        %v767 = vld [vmem:[#allocation5 + $0x2e8] sm:$0xff]
        %v768 = vld [vmem:[#allocation5 + $0x2f0] sm:$0xff]
        %v769 = vld [vmem:[#allocation5 + $0x2f8] sm:$0xff]
        %v770 = vld [vmem:[#allocation5 + $0x300] sm:$0xff]
        %v771 = vld [vmem:[#allocation5 + $0x308] sm:$0xff]
        %v772 = vld [vmem:[#allocation5 + $0x310] sm:$0xff]
        %v773 = vld [vmem:[#allocation5 + $0x318] sm:$0xff]
        %v774 = vld [vmem:[#allocation5 + $0x320] sm:$0xff]
        %v775 = vld [vmem:[#allocation5 + $0x328] sm:$0xff]
        %v776 = vld [vmem:[#allocation5 + $0x330] sm:$0xff]
        %v777 = vld [vmem:[#allocation5 + $0x338] sm:$0xff]
        %v778 = vld [vmem:[#allocation5 + $0x340] sm:$0xff]
        %v779 = vld [vmem:[#allocation5 + $0x348] sm:$0xff]
        %v780 = vld [vmem:[#allocation5 + $0x350] sm:$0xff]
        %v781 = vld [vmem:[#allocation5 + $0x358] sm:$0xff]
        %v782 = vld [vmem:[#allocation5 + $0x360] sm:$0xff]
        %v783 = vld [vmem:[#allocation5 + $0x368] sm:$0xff]
        %v784 = vld [vmem:[#allocation5 + $0x370] sm:$0xff]
        %v785 = vld [vmem:[#allocation5 + $0x378] sm:$0xff]
        %v786 = vld [vmem:[#allocation5 + $0x380] sm:$0xff]
        %v787 = vld [vmem:[#allocation5 + $0x388] sm:$0xff]
        %v788 = vld [vmem:[#allocation5 + $0x390] sm:$0xff]
        %v789 = vld [vmem:[#allocation5 + $0x398] sm:$0xff]
        %v790 = vld [vmem:[#allocation5 + $0x3a0] sm:$0xff]
        %v791 = vld [vmem:[#allocation5 + $0x3a8] sm:$0xff]
        %v792 = vld [vmem:[#allocation5 + $0x3b0] sm:$0xff]
        %v793 = vld [vmem:[#allocation5 + $0x3b8] sm:$0xff]
        %v794 = vld [vmem:[#allocation5 + $0x3c0] sm:$0xff]
        %v795 = vld [vmem:[#allocation5 + $0x3c8] sm:$0xff]
        %v796 = vld [vmem:[#allocation5 + $0x3d0] sm:$0xff]
        %v797 = vld [vmem:[#allocation5 + $0x3d8] sm:$0xff]
        %v798 = vld [vmem:[#allocation5 + $0x3e0] sm:$0xff]
        %v799 = vld [vmem:[#allocation5 + $0x3e8] sm:$0xff]
        %v800 = vld [vmem:[#allocation5 + $0x3f0] sm:$0xff]
        %v801 = vld [vmem:[#allocation5 + $0x3f8] sm:$0xff]
        %v802 = vld [vmem:[#allocation5 + $0x400] sm:$0xff]
        %v803 = vld [vmem:[#allocation5 + $0x408] sm:$0xff]
        %v804 = vld [vmem:[#allocation5 + $0x410] sm:$0xff]
        %v805 = vld [vmem:[#allocation5 + $0x418] sm:$0xff]
        %v806 = vld [vmem:[#allocation5 + $0x420] sm:$0xff]
        %v807 = vld [vmem:[#allocation5 + $0x428] sm:$0xff]
        %v808 = vld [vmem:[#allocation5 + $0x430] sm:$0xff]
        %v809 = vld [vmem:[#allocation5 + $0x438] sm:$0xff]
        %v810 = vld [vmem:[#allocation5 + $0x440] sm:$0xff]
        %v811 = vld [vmem:[#allocation5 + $0x448] sm:$0xff]
        %v812 = vld [vmem:[#allocation5 + $0x450] sm:$0xff]
        %v813 = vld [vmem:[#allocation5 + $0x458] sm:$0xff]
        %v814 = vld [vmem:[#allocation5 + $0x460] sm:$0xff]
        %v815 = vld [vmem:[#allocation5 + $0x468] sm:$0xff]
        %v816 = vld [vmem:[#allocation5 + $0x470] sm:$0xff]
        %v817 = vld [vmem:[#allocation5 + $0x478] sm:$0xff]
        %v818 = vld [vmem:[#allocation5 + $0x480] sm:$0xff]
        %v819 = vld [vmem:[#allocation5 + $0x488] sm:$0xff]
        %v820 = vld [vmem:[#allocation5 + $0x490] sm:$0xff]
        %v821 = vld [vmem:[#allocation5 + $0x498] sm:$0xff]
        %v822 = vld [vmem:[#allocation5 + $0x4a0] sm:$0xff]
        %v823 = vld [vmem:[#allocation5 + $0x4a8] sm:$0xff]
        %v824 = vld [vmem:[#allocation5 + $0x4b0] sm:$0xff]
        %v825 = vld [vmem:[#allocation5 + $0x4b8] sm:$0xff]
        %v826 = vld [vmem:[#allocation5 + $0x4c0] sm:$0xff]
        %v827 = vld [vmem:[#allocation5 + $0x4c8] sm:$0xff]
        %v828 = vld [vmem:[#allocation5 + $0x4d0] sm:$0xff]
        %v829 = vld [vmem:[#allocation5 + $0x4d8] sm:$0xff]
        %v830 = vld [vmem:[#allocation5 + $0x4e0] sm:$0xff]
        %v831 = vld [vmem:[#allocation5 + $0x4e8] sm:$0xff]
        %v832 = vld [vmem:[#allocation5 + $0x4f0] sm:$0xff]
        %v833 = vld [vmem:[#allocation5 + $0x4f8] sm:$0xff]
        %v834 = vld [vmem:[#allocation5 + $0x500] sm:$0xff]
        %v835 = vld [vmem:[#allocation5 + $0x508] sm:$0xff]
        %v836 = vld [vmem:[#allocation5 + $0x510] sm:$0xff]
        %v837 = vld [vmem:[#allocation5 + $0x518] sm:$0xff]
        %v838 = vld [vmem:[#allocation5 + $0x520] sm:$0xff]
        %v839 = vld [vmem:[#allocation5 + $0x528] sm:$0xff]
        %v840 = vld [vmem:[#allocation5 + $0x530] sm:$0xff]
        %v841 = vld [vmem:[#allocation5 + $0x538] sm:$0xff]
        %v842 = vld [vmem:[#allocation5 + $0x540] sm:$0xff]
        %v843 = vld [vmem:[#allocation5 + $0x548] sm:$0xff]
        %v844 = vld [vmem:[#allocation5 + $0x550] sm:$0xff]
        %v845 = vld [vmem:[#allocation5 + $0x558] sm:$0xff]
        %v846 = vld [vmem:[#allocation5 + $0x560] sm:$0xff]
        %v847 = vld [vmem:[#allocation5 + $0x568] sm:$0xff]
        %v848 = vld [vmem:[#allocation5 + $0x570] sm:$0xff]
        %v849 = vld [vmem:[#allocation5 + $0x578] sm:$0xff]
        %v850 = vld [vmem:[#allocation5 + $0x580] sm:$0xff]
        %v851 = vld [vmem:[#allocation5 + $0x588] sm:$0xff]
        %v852 = vld [vmem:[#allocation5 + $0x590] sm:$0xff]
        %v853 = vld [vmem:[#allocation5 + $0x598] sm:$0xff]
        %v854 = vld [vmem:[#allocation5 + $0x5a0] sm:$0xff]
        %v855 = vld [vmem:[#allocation5 + $0x5a8] sm:$0xff]
        %v856 = vld [vmem:[#allocation5 + $0x5b0] sm:$0xff]
        %v857 = vld [vmem:[#allocation5 + $0x5b8] sm:$0xff]
        %v858 = vld [vmem:[#allocation5 + $0x5c0] sm:$0xff]
        %v859 = vld [vmem:[#allocation5 + $0x5c8] sm:$0xff]
        %v860 = vld [vmem:[#allocation5 + $0x5d0] sm:$0xff]
        %v861 = vld [vmem:[#allocation5 + $0x5d8] sm:$0xff]
        %v862 = vld [vmem:[#allocation5 + $0x5e0] sm:$0xff]
        %v863 = vld [vmem:[#allocation5 + $0x5e8] sm:$0xff]
        %v864 = vld [vmem:[#allocation5 + $0x5f0] sm:$0xff]
        %v865 = vld [vmem:[#allocation5 + $0x5f8] sm:$0xff]
        %v866 = vld [vmem:[#allocation7] sm:$0xf]
        %v868 = vlaneseq
        %v869 = vshrl.u32 %v868, 7
        %v870 = vsub.s32 0, %v869
        %v871 = vrot.slane %v866, %v870
        %v872 = vlaneseq
        %v873 = vshrl.u32 %v872, 7
        %v874 = vsub.s32 1, %v873
        %v875 = vrot.slane %v866, %v874
        %v876 = vlaneseq
        %v877 = vshrl.u32 %v876, 7
        %v878 = vsub.s32 2, %v877
        %v879 = vrot.slane %v866, %v878
        %v880 = vlaneseq
        %v881 = vshrl.u32 %v880, 7
        %v882 = vsub.s32 3, %v881
        %v883 = vrot.slane %v866, %v882
        %v1080 = vunpack.c.l.b16 %v674
        %v1081 = vunpack.c.h.b16 %v674
        %v1082 = vunpack.c.l.b16 %v675
        %v1083 = vunpack.c.h.b16 %v675
        %v1084 = vunpack.c.l.b16 %v676
        %v1085 = vunpack.c.h.b16 %v676
        %v1086 = vunpack.c.l.b16 %v677
        %v1087 = vunpack.c.h.b16 %v677
        %v1088 = vunpack.c.l.b16 %v678
        %v1089 = vunpack.c.h.b16 %v678
        %v1090 = vunpack.c.l.b16 %v679
        %v1091 = vunpack.c.h.b16 %v679
        %v1092 = vunpack.c.l.b16 %v680
        %v1093 = vunpack.c.h.b16 %v680
        %v1094 = vunpack.c.l.b16 %v681
        %v1095 = vunpack.c.h.b16 %v681
        %v1096 = vunpack.c.l.b16 %v682
        %v1097 = vunpack.c.h.b16 %v682
        %v1098 = vunpack.c.l.b16 %v683
        %v1099 = vunpack.c.h.b16 %v683
        %v1100 = vunpack.c.l.b16 %v684
        %v1101 = vunpack.c.h.b16 %v684
        %v1102 = vunpack.c.l.b16 %v685
        %v1103 = vunpack.c.h.b16 %v685
        %v1104 = vunpack.c.l.b16 %v686
        %v1105 = vunpack.c.h.b16 %v686
        %v1106 = vunpack.c.l.b16 %v687
        %v1107 = vunpack.c.h.b16 %v687
        %v1108 = vunpack.c.l.b16 %v688
        %v1109 = vunpack.c.h.b16 %v688
        %v1110 = vunpack.c.l.b16 %v689
        %v1111 = vunpack.c.h.b16 %v689
        %v1112 = vunpack.c.l.b16 %v690
        %v1113 = vunpack.c.h.b16 %v690
        %v1114 = vunpack.c.l.b16 %v691
        %v1115 = vunpack.c.h.b16 %v691
        %v1116 = vunpack.c.l.b16 %v692
        %v1117 = vunpack.c.h.b16 %v692
        %v1118 = vunpack.c.l.b16 %v693
        %v1119 = vunpack.c.h.b16 %v693
        %v1120 = vunpack.c.l.b16 %v694
        %v1121 = vunpack.c.h.b16 %v694
        %v1122 = vunpack.c.l.b16 %v695
        %v1123 = vunpack.c.h.b16 %v695
        %v1124 = vunpack.c.l.b16 %v696
        %v1125 = vunpack.c.h.b16 %v696
        %v1126 = vunpack.c.l.b16 %v697
        %v1127 = vunpack.c.h.b16 %v697
        %v1128 = vunpack.c.l.b16 %v698
        %v1129 = vunpack.c.h.b16 %v698
        %v1130 = vunpack.c.l.b16 %v699
        %v1131 = vunpack.c.h.b16 %v699
        %v1132 = vunpack.c.l.b16 %v700
        %v1133 = vunpack.c.h.b16 %v700
        %v1134 = vunpack.c.l.b16 %v701
        %v1135 = vunpack.c.h.b16 %v701
        %v1136 = vunpack.c.l.b16 %v702
        %v1137 = vunpack.c.h.b16 %v702
        %v1138 = vunpack.c.l.b16 %v703
        %v1139 = vunpack.c.h.b16 %v703
        %v1140 = vunpack.c.l.b16 %v704
        %v1141 = vunpack.c.h.b16 %v704
        %v1142 = vunpack.c.l.b16 %v705
        %v1143 = vunpack.c.h.b16 %v705
        %v1144 = vunpack.c.l.b16 %v706
        %v1145 = vunpack.c.h.b16 %v706
        %v1146 = vunpack.c.l.b16 %v707
        %v1147 = vunpack.c.h.b16 %v707
        %v1148 = vunpack.c.l.b16 %v708
        %v1149 = vunpack.c.h.b16 %v708
        %v1150 = vunpack.c.l.b16 %v709
        %v1151 = vunpack.c.h.b16 %v709
        %v1152 = vunpack.c.l.b16 %v710
        %v1153 = vunpack.c.h.b16 %v710
        %v1154 = vunpack.c.l.b16 %v711
        %v1155 = vunpack.c.h.b16 %v711
        %v1156 = vunpack.c.l.b16 %v712
        %v1157 = vunpack.c.h.b16 %v712
        %v1158 = vunpack.c.l.b16 %v713
        %v1159 = vunpack.c.h.b16 %v713
        %v1160 = vunpack.c.l.b16 %v714
        %v1161 = vunpack.c.h.b16 %v714
        %v1162 = vunpack.c.l.b16 %v715
        %v1163 = vunpack.c.h.b16 %v715
        %v1164 = vunpack.c.l.b16 %v716
        %v1165 = vunpack.c.h.b16 %v716
        %v1166 = vunpack.c.l.b16 %v717
        %v1167 = vunpack.c.h.b16 %v717
        %v1168 = vunpack.c.l.b16 %v718
        %v1169 = vunpack.c.h.b16 %v718
        %v1170 = vunpack.c.l.b16 %v719
        %v1171 = vunpack.c.h.b16 %v719
        %v1172 = vunpack.c.l.b16 %v720
        %v1173 = vunpack.c.h.b16 %v720
        %v1174 = vunpack.c.l.b16 %v721
        %v1175 = vunpack.c.h.b16 %v721
        %v1176 = vunpack.c.l.b16 %v722
        %v1177 = vunpack.c.h.b16 %v722
        %v1178 = vunpack.c.l.b16 %v723
        %v1179 = vunpack.c.h.b16 %v723
        %v1180 = vunpack.c.l.b16 %v724
        %v1181 = vunpack.c.h.b16 %v724
        %v1182 = vunpack.c.l.b16 %v725
        %v1183 = vunpack.c.h.b16 %v725
        %v1184 = vunpack.c.l.b16 %v726
        %v1185 = vunpack.c.h.b16 %v726
        %v1186 = vunpack.c.l.b16 %v727
        %v1187 = vunpack.c.h.b16 %v727
        %v1188 = vunpack.c.l.b16 %v728
        %v1189 = vunpack.c.h.b16 %v728
        %v1190 = vunpack.c.l.b16 %v729
        %v1191 = vunpack.c.h.b16 %v729
        %v1192 = vunpack.c.l.b16 %v730
        %v1193 = vunpack.c.h.b16 %v730
        %v1194 = vunpack.c.l.b16 %v731
        %v1195 = vunpack.c.h.b16 %v731
        %v1196 = vunpack.c.l.b16 %v732
        %v1197 = vunpack.c.h.b16 %v732
        %v1198 = vunpack.c.l.b16 %v733
        %v1199 = vunpack.c.h.b16 %v733
        %v1200 = vunpack.c.l.b16 %v734
        %v1201 = vunpack.c.h.b16 %v734
        %v1202 = vunpack.c.l.b16 %v735
        %v1203 = vunpack.c.h.b16 %v735
        %v1204 = vunpack.c.l.b16 %v736
        %v1205 = vunpack.c.h.b16 %v736
        %v1206 = vunpack.c.l.b16 %v737
        %v1207 = vunpack.c.h.b16 %v737
        %v1208 = vunpack.c.l.b16 %v738
        %v1209 = vunpack.c.h.b16 %v738
        %v1210 = vunpack.c.l.b16 %v739
        %v1211 = vunpack.c.h.b16 %v739
        %v1212 = vunpack.c.l.b16 %v740
        %v1213 = vunpack.c.h.b16 %v740
        %v1214 = vunpack.c.l.b16 %v741
        %v1215 = vunpack.c.h.b16 %v741
        %v1216 = vunpack.c.l.b16 %v742
        %v1217 = vunpack.c.h.b16 %v742
        %v1218 = vunpack.c.l.b16 %v743
        %v1219 = vunpack.c.h.b16 %v743
        %v1220 = vunpack.c.l.b16 %v744
        %v1221 = vunpack.c.h.b16 %v744
        %v1222 = vunpack.c.l.b16 %v745
        %v1223 = vunpack.c.h.b16 %v745
        %v1224 = vunpack.c.l.b16 %v746
        %v1225 = vunpack.c.h.b16 %v746
        %v1226 = vunpack.c.l.b16 %v747
        %v1227 = vunpack.c.h.b16 %v747
        %v1228 = vunpack.c.l.b16 %v748
        %v1229 = vunpack.c.h.b16 %v748
        %v1230 = vunpack.c.l.b16 %v749
        %v1231 = vunpack.c.h.b16 %v749
        %v1232 = vunpack.c.l.b16 %v750
        %v1233 = vunpack.c.h.b16 %v750
        %v1234 = vunpack.c.l.b16 %v751
        %v1235 = vunpack.c.h.b16 %v751
        %v1236 = vunpack.c.l.b16 %v752
        %v1237 = vunpack.c.h.b16 %v752
        %v1238 = vunpack.c.l.b16 %v753
        %v1239 = vunpack.c.h.b16 %v753
        %v1240 = vunpack.c.l.b16 %v754
        %v1241 = vunpack.c.h.b16 %v754
        %v1242 = vunpack.c.l.b16 %v755
        %v1243 = vunpack.c.h.b16 %v755
        %v1244 = vunpack.c.l.b16 %v756
        %v1245 = vunpack.c.h.b16 %v756
        %v1246 = vunpack.c.l.b16 %v757
        %v1247 = vunpack.c.h.b16 %v757
        %v1248 = vunpack.c.l.b16 %v758
        %v1249 = vunpack.c.h.b16 %v758
        %v1250 = vunpack.c.l.b16 %v759
        %v1251 = vunpack.c.h.b16 %v759
        %v1252 = vunpack.c.l.b16 %v760
        %v1253 = vunpack.c.h.b16 %v760
        %v1254 = vunpack.c.l.b16 %v761
        %v1255 = vunpack.c.h.b16 %v761
        %v1256 = vunpack.c.l.b16 %v762
        %v1257 = vunpack.c.h.b16 %v762
        %v1258 = vunpack.c.l.b16 %v763
        %v1259 = vunpack.c.h.b16 %v763
        %v1260 = vunpack.c.l.b16 %v764
        %v1261 = vunpack.c.h.b16 %v764
        %v1262 = vunpack.c.l.b16 %v765
        %v1263 = vunpack.c.h.b16 %v765
        %v1264 = vunpack.c.l.b16 %v766
        %v1265 = vunpack.c.h.b16 %v766
        %v1266 = vunpack.c.l.b16 %v767
        %v1267 = vunpack.c.h.b16 %v767
        %v1268 = vunpack.c.l.b16 %v768
        %v1269 = vunpack.c.h.b16 %v768
        %v1270 = vunpack.c.l.b16 %v769
        %v1271 = vunpack.c.h.b16 %v769
        %v1272 = vunpack.c.l.b16 %v770
        %v1273 = vunpack.c.h.b16 %v770
        %v1274 = vunpack.c.l.b16 %v771
        %v1275 = vunpack.c.h.b16 %v771
        %v1276 = vunpack.c.l.b16 %v772
        %v1277 = vunpack.c.h.b16 %v772
        %v1278 = vunpack.c.l.b16 %v773
        %v1279 = vunpack.c.h.b16 %v773
        %v1280 = vunpack.c.l.b16 %v774
        %v1281 = vunpack.c.h.b16 %v774
        %v1282 = vunpack.c.l.b16 %v775
        %v1283 = vunpack.c.h.b16 %v775
        %v1284 = vunpack.c.l.b16 %v776
        %v1285 = vunpack.c.h.b16 %v776
        %v1286 = vunpack.c.l.b16 %v777
        %v1287 = vunpack.c.h.b16 %v777
        %v1288 = vunpack.c.l.b16 %v778
        %v1289 = vunpack.c.h.b16 %v778
        %v1290 = vunpack.c.l.b16 %v779
        %v1291 = vunpack.c.h.b16 %v779
        %v1292 = vunpack.c.l.b16 %v780
        %v1293 = vunpack.c.h.b16 %v780
        %v1294 = vunpack.c.l.b16 %v781
        %v1295 = vunpack.c.h.b16 %v781
        %v1296 = vunpack.c.l.b16 %v782
        %v1297 = vunpack.c.h.b16 %v782
        %v1298 = vunpack.c.l.b16 %v783
        %v1299 = vunpack.c.h.b16 %v783
        %v1300 = vunpack.c.l.b16 %v784
        %v1301 = vunpack.c.h.b16 %v784
        %v1302 = vunpack.c.l.b16 %v785
        %v1303 = vunpack.c.h.b16 %v785
        %v1304 = vunpack.c.l.b16 %v786
        %v1305 = vunpack.c.h.b16 %v786
        %v1306 = vunpack.c.l.b16 %v787
        %v1307 = vunpack.c.h.b16 %v787
        %v1308 = vunpack.c.l.b16 %v788
        %v1309 = vunpack.c.h.b16 %v788
        %v1310 = vunpack.c.l.b16 %v789
        %v1311 = vunpack.c.h.b16 %v789
        %v1312 = vunpack.c.l.b16 %v790
        %v1313 = vunpack.c.h.b16 %v790
        %v1314 = vunpack.c.l.b16 %v791
        %v1315 = vunpack.c.h.b16 %v791
        %v1316 = vunpack.c.l.b16 %v792
        %v1317 = vunpack.c.h.b16 %v792
        %v1318 = vunpack.c.l.b16 %v793
        %v1319 = vunpack.c.h.b16 %v793
        %v1320 = vunpack.c.l.b16 %v794
        %v1321 = vunpack.c.h.b16 %v794
        %v1322 = vunpack.c.l.b16 %v795
        %v1323 = vunpack.c.h.b16 %v795
        %v1324 = vunpack.c.l.b16 %v796
        %v1325 = vunpack.c.h.b16 %v796
        %v1326 = vunpack.c.l.b16 %v797
        %v1327 = vunpack.c.h.b16 %v797
        %v1328 = vunpack.c.l.b16 %v798
        %v1329 = vunpack.c.h.b16 %v798
        %v1330 = vunpack.c.l.b16 %v799
        %v1331 = vunpack.c.h.b16 %v799
        %v1332 = vunpack.c.l.b16 %v800
        %v1333 = vunpack.c.h.b16 %v800
        %v1334 = vunpack.c.l.b16 %v801
        %v1335 = vunpack.c.h.b16 %v801
        %v1336 = vunpack.c.l.b16 %v802
        %v1337 = vunpack.c.h.b16 %v802
        %v1338 = vunpack.c.l.b16 %v803
        %v1339 = vunpack.c.h.b16 %v803
        %v1340 = vunpack.c.l.b16 %v804
        %v1341 = vunpack.c.h.b16 %v804
        %v1342 = vunpack.c.l.b16 %v805
        %v1343 = vunpack.c.h.b16 %v805
        %v1344 = vunpack.c.l.b16 %v806
        %v1345 = vunpack.c.h.b16 %v806
        %v1346 = vunpack.c.l.b16 %v807
        %v1347 = vunpack.c.h.b16 %v807
        %v1348 = vunpack.c.l.b16 %v808
        %v1349 = vunpack.c.h.b16 %v808
        %v1350 = vunpack.c.l.b16 %v809
        %v1351 = vunpack.c.h.b16 %v809
        %v1352 = vunpack.c.l.b16 %v810
        %v1353 = vunpack.c.h.b16 %v810
        %v1354 = vunpack.c.l.b16 %v811
        %v1355 = vunpack.c.h.b16 %v811
        %v1356 = vunpack.c.l.b16 %v812
        %v1357 = vunpack.c.h.b16 %v812
        %v1358 = vunpack.c.l.b16 %v813
        %v1359 = vunpack.c.h.b16 %v813
        %v1360 = vunpack.c.l.b16 %v814
        %v1361 = vunpack.c.h.b16 %v814
        %v1362 = vunpack.c.l.b16 %v815
        %v1363 = vunpack.c.h.b16 %v815
        %v1364 = vunpack.c.l.b16 %v816
        %v1365 = vunpack.c.h.b16 %v816
        %v1366 = vunpack.c.l.b16 %v817
        %v1367 = vunpack.c.h.b16 %v817
        %v1368 = vunpack.c.l.b16 %v818
        %v1369 = vunpack.c.h.b16 %v818
        %v1370 = vunpack.c.l.b16 %v819
        %v1371 = vunpack.c.h.b16 %v819
        %v1372 = vunpack.c.l.b16 %v820
        %v1373 = vunpack.c.h.b16 %v820
        %v1374 = vunpack.c.l.b16 %v821
        %v1375 = vunpack.c.h.b16 %v821
        %v1376 = vunpack.c.l.b16 %v822
        %v1377 = vunpack.c.h.b16 %v822
        %v1378 = vunpack.c.l.b16 %v823
        %v1379 = vunpack.c.h.b16 %v823
        %v1380 = vunpack.c.l.b16 %v824
        %v1381 = vunpack.c.h.b16 %v824
        %v1382 = vunpack.c.l.b16 %v825
        %v1383 = vunpack.c.h.b16 %v825
        %v1384 = vunpack.c.l.b16 %v826
        %v1385 = vunpack.c.h.b16 %v826
        %v1386 = vunpack.c.l.b16 %v827
        %v1387 = vunpack.c.h.b16 %v827
        %v1388 = vunpack.c.l.b16 %v828
        %v1389 = vunpack.c.h.b16 %v828
        %v1390 = vunpack.c.l.b16 %v829
        %v1391 = vunpack.c.h.b16 %v829
        %v1392 = vunpack.c.l.b16 %v830
        %v1393 = vunpack.c.h.b16 %v830
        %v1394 = vunpack.c.l.b16 %v831
        %v1395 = vunpack.c.h.b16 %v831
        %v1396 = vunpack.c.l.b16 %v832
        %v1397 = vunpack.c.h.b16 %v832
        %v1398 = vunpack.c.l.b16 %v833
        %v1399 = vunpack.c.h.b16 %v833
        %v1400 = vunpack.c.l.b16 %v834
        %v1401 = vunpack.c.h.b16 %v834
        %v1402 = vunpack.c.l.b16 %v835
        %v1403 = vunpack.c.h.b16 %v835
        %v1404 = vunpack.c.l.b16 %v836
        %v1405 = vunpack.c.h.b16 %v836
        %v1406 = vunpack.c.l.b16 %v837
        %v1407 = vunpack.c.h.b16 %v837
        %v1408 = vunpack.c.l.b16 %v838
        %v1409 = vunpack.c.h.b16 %v838
        %v1410 = vunpack.c.l.b16 %v839
        %v1411 = vunpack.c.h.b16 %v839
        %v1412 = vunpack.c.l.b16 %v840
        %v1413 = vunpack.c.h.b16 %v840
        %v1414 = vunpack.c.l.b16 %v841
        %v1415 = vunpack.c.h.b16 %v841
        %v1416 = vunpack.c.l.b16 %v842
        %v1417 = vunpack.c.h.b16 %v842
        %v1418 = vunpack.c.l.b16 %v843
        %v1419 = vunpack.c.h.b16 %v843
        %v1420 = vunpack.c.l.b16 %v844
        %v1421 = vunpack.c.h.b16 %v844
        %v1422 = vunpack.c.l.b16 %v845
        %v1423 = vunpack.c.h.b16 %v845
        %v1424 = vunpack.c.l.b16 %v846
        %v1425 = vunpack.c.h.b16 %v846
        %v1426 = vunpack.c.l.b16 %v847
        %v1427 = vunpack.c.h.b16 %v847
        %v1428 = vunpack.c.l.b16 %v848
        %v1429 = vunpack.c.h.b16 %v848
        %v1430 = vunpack.c.l.b16 %v849
        %v1431 = vunpack.c.h.b16 %v849
        %v1432 = vunpack.c.l.b16 %v850
        %v1433 = vunpack.c.h.b16 %v850
        %v1434 = vunpack.c.l.b16 %v851
        %v1435 = vunpack.c.h.b16 %v851
        %v1436 = vunpack.c.l.b16 %v852
        %v1437 = vunpack.c.h.b16 %v852
        %v1438 = vunpack.c.l.b16 %v853
        %v1439 = vunpack.c.h.b16 %v853
        %v1440 = vunpack.c.l.b16 %v854
        %v1441 = vunpack.c.h.b16 %v854
        %v1442 = vunpack.c.l.b16 %v855
        %v1443 = vunpack.c.h.b16 %v855
        %v1444 = vunpack.c.l.b16 %v856
        %v1445 = vunpack.c.h.b16 %v856
        %v1446 = vunpack.c.l.b16 %v857
        %v1447 = vunpack.c.h.b16 %v857
        %v1448 = vunpack.c.l.b16 %v858
        %v1449 = vunpack.c.h.b16 %v858
        %v1450 = vunpack.c.l.b16 %v859
        %v1451 = vunpack.c.h.b16 %v859
        %v1452 = vunpack.c.l.b16 %v860
        %v1453 = vunpack.c.h.b16 %v860
        %v1454 = vunpack.c.l.b16 %v861
        %v1455 = vunpack.c.h.b16 %v861
        %v1456 = vunpack.c.l.b16 %v862
        %v1457 = vunpack.c.h.b16 %v862
        %v1458 = vunpack.c.l.b16 %v863
        %v1459 = vunpack.c.h.b16 %v863
        %v1460 = vunpack.c.l.b16 %v864
        %v1461 = vunpack.c.h.b16 %v864
        %v1462 = vunpack.c.l.b16 %v865
        %v1463 = vunpack.c.h.b16 %v865
        %v1464 = vpack.c.b16 %v1084, %v1080
        %v1465 = vpack.c.b16 %v1085, %v1081
        %v1466 = vpack.c.b16 %v1086, %v1082
        %v1467 = vpack.c.b16 %v1087, %v1083
        %v1468 = vpack.c.b16 %v1092, %v1088
        %v1469 = vpack.c.b16 %v1093, %v1089
        %v1470 = vpack.c.b16 %v1094, %v1090
        %v1471 = vpack.c.b16 %v1095, %v1091
        %v1472 = vpack.c.b16 %v1100, %v1096
        %v1473 = vpack.c.b16 %v1101, %v1097
        %v1474 = vpack.c.b16 %v1102, %v1098
        %v1475 = vpack.c.b16 %v1103, %v1099
        %v1476 = vpack.c.b16 %v1108, %v1104
        %v1477 = vpack.c.b16 %v1109, %v1105
        %v1478 = vpack.c.b16 %v1110, %v1106
        %v1479 = vpack.c.b16 %v1111, %v1107
        %v1480 = vpack.c.b16 %v1116, %v1112
        %v1481 = vpack.c.b16 %v1117, %v1113
        %v1482 = vpack.c.b16 %v1118, %v1114
        %v1483 = vpack.c.b16 %v1119, %v1115
        %v1484 = vpack.c.b16 %v1124, %v1120
        %v1485 = vpack.c.b16 %v1125, %v1121
        %v1486 = vpack.c.b16 %v1126, %v1122
        %v1487 = vpack.c.b16 %v1127, %v1123
        %v1488 = vpack.c.b16 %v1132, %v1128
        %v1489 = vpack.c.b16 %v1133, %v1129
        %v1490 = vpack.c.b16 %v1134, %v1130
        %v1491 = vpack.c.b16 %v1135, %v1131
        %v1492 = vpack.c.b16 %v1140, %v1136
        %v1493 = vpack.c.b16 %v1141, %v1137
        %v1494 = vpack.c.b16 %v1142, %v1138
        %v1495 = vpack.c.b16 %v1143, %v1139
        %v1496 = vpack.c.b16 %v1148, %v1144
        %v1497 = vpack.c.b16 %v1149, %v1145
        %v1498 = vpack.c.b16 %v1150, %v1146
        %v1499 = vpack.c.b16 %v1151, %v1147
        %v1500 = vpack.c.b16 %v1156, %v1152
        %v1501 = vpack.c.b16 %v1157, %v1153
        %v1502 = vpack.c.b16 %v1158, %v1154
        %v1503 = vpack.c.b16 %v1159, %v1155
        %v1504 = vpack.c.b16 %v1164, %v1160
        %v1505 = vpack.c.b16 %v1165, %v1161
        %v1506 = vpack.c.b16 %v1166, %v1162
        %v1507 = vpack.c.b16 %v1167, %v1163
        %v1508 = vpack.c.b16 %v1172, %v1168
        %v1509 = vpack.c.b16 %v1173, %v1169
        %v1510 = vpack.c.b16 %v1174, %v1170
        %v1511 = vpack.c.b16 %v1175, %v1171
        %v1512 = vpack.c.b16 %v1180, %v1176
        %v1513 = vpack.c.b16 %v1181, %v1177
        %v1514 = vpack.c.b16 %v1182, %v1178
        %v1515 = vpack.c.b16 %v1183, %v1179
        %v1516 = vpack.c.b16 %v1188, %v1184
        %v1517 = vpack.c.b16 %v1189, %v1185
        %v1518 = vpack.c.b16 %v1190, %v1186
        %v1519 = vpack.c.b16 %v1191, %v1187
        %v1520 = vpack.c.b16 %v1196, %v1192
        %v1521 = vpack.c.b16 %v1197, %v1193
        %v1522 = vpack.c.b16 %v1198, %v1194
        %v1523 = vpack.c.b16 %v1199, %v1195
        %v1524 = vpack.c.b16 %v1204, %v1200
        %v1525 = vpack.c.b16 %v1205, %v1201
        %v1526 = vpack.c.b16 %v1206, %v1202
        %v1527 = vpack.c.b16 %v1207, %v1203
        %v1528 = vpack.c.b16 %v1212, %v1208
        %v1529 = vpack.c.b16 %v1213, %v1209
        %v1530 = vpack.c.b16 %v1214, %v1210
        %v1531 = vpack.c.b16 %v1215, %v1211
        %v1532 = vpack.c.b16 %v1220, %v1216
        %v1533 = vpack.c.b16 %v1221, %v1217
        %v1534 = vpack.c.b16 %v1222, %v1218
        %v1535 = vpack.c.b16 %v1223, %v1219
        %v1536 = vpack.c.b16 %v1228, %v1224
        %v1537 = vpack.c.b16 %v1229, %v1225
        %v1538 = vpack.c.b16 %v1230, %v1226
        %v1539 = vpack.c.b16 %v1231, %v1227
        %v1540 = vpack.c.b16 %v1236, %v1232
        %v1541 = vpack.c.b16 %v1237, %v1233
        %v1542 = vpack.c.b16 %v1238, %v1234
        %v1543 = vpack.c.b16 %v1239, %v1235
        %v1544 = vpack.c.b16 %v1244, %v1240
        %v1545 = vpack.c.b16 %v1245, %v1241
        %v1546 = vpack.c.b16 %v1246, %v1242
        %v1547 = vpack.c.b16 %v1247, %v1243
        %v1548 = vpack.c.b16 %v1252, %v1248
        %v1549 = vpack.c.b16 %v1253, %v1249
        %v1550 = vpack.c.b16 %v1254, %v1250
        %v1551 = vpack.c.b16 %v1255, %v1251
        %v1552 = vpack.c.b16 %v1260, %v1256
        %v1553 = vpack.c.b16 %v1261, %v1257
        %v1554 = vpack.c.b16 %v1262, %v1258
        %v1555 = vpack.c.b16 %v1263, %v1259
        %v1556 = vpack.c.b16 %v1268, %v1264
        %v1557 = vpack.c.b16 %v1269, %v1265
        %v1558 = vpack.c.b16 %v1270, %v1266
        %v1559 = vpack.c.b16 %v1271, %v1267
        %v1560 = vpack.c.b16 %v1276, %v1272
        %v1561 = vpack.c.b16 %v1277, %v1273
        %v1562 = vpack.c.b16 %v1278, %v1274
        %v1563 = vpack.c.b16 %v1279, %v1275
        %v1564 = vpack.c.b16 %v1284, %v1280
        %v1565 = vpack.c.b16 %v1285, %v1281
        %v1566 = vpack.c.b16 %v1286, %v1282
        %v1567 = vpack.c.b16 %v1287, %v1283
        %v1568 = vpack.c.b16 %v1292, %v1288
        %v1569 = vpack.c.b16 %v1293, %v1289
        %v1570 = vpack.c.b16 %v1294, %v1290
        %v1571 = vpack.c.b16 %v1295, %v1291
        %v1572 = vpack.c.b16 %v1300, %v1296
        %v1573 = vpack.c.b16 %v1301, %v1297
        %v1574 = vpack.c.b16 %v1302, %v1298
        %v1575 = vpack.c.b16 %v1303, %v1299
        %v1576 = vpack.c.b16 %v1308, %v1304
        %v1577 = vpack.c.b16 %v1309, %v1305
        %v1578 = vpack.c.b16 %v1310, %v1306
        %v1579 = vpack.c.b16 %v1311, %v1307
        %v1580 = vpack.c.b16 %v1316, %v1312
        %v1581 = vpack.c.b16 %v1317, %v1313
        %v1582 = vpack.c.b16 %v1318, %v1314
        %v1583 = vpack.c.b16 %v1319, %v1315
        %v1584 = vpack.c.b16 %v1324, %v1320
        %v1585 = vpack.c.b16 %v1325, %v1321
        %v1586 = vpack.c.b16 %v1326, %v1322
        %v1587 = vpack.c.b16 %v1327, %v1323
        %v1588 = vpack.c.b16 %v1332, %v1328
        %v1589 = vpack.c.b16 %v1333, %v1329
        %v1590 = vpack.c.b16 %v1334, %v1330
        %v1591 = vpack.c.b16 %v1335, %v1331
        %v1592 = vpack.c.b16 %v1340, %v1336
        %v1593 = vpack.c.b16 %v1341, %v1337
        %v1594 = vpack.c.b16 %v1342, %v1338
        %v1595 = vpack.c.b16 %v1343, %v1339
        %v1596 = vpack.c.b16 %v1348, %v1344
        %v1597 = vpack.c.b16 %v1349, %v1345
        %v1598 = vpack.c.b16 %v1350, %v1346
        %v1599 = vpack.c.b16 %v1351, %v1347
        %v1600 = vpack.c.b16 %v1356, %v1352
        %v1601 = vpack.c.b16 %v1357, %v1353
        %v1602 = vpack.c.b16 %v1358, %v1354
        %v1603 = vpack.c.b16 %v1359, %v1355
        %v1604 = vpack.c.b16 %v1364, %v1360
        %v1605 = vpack.c.b16 %v1365, %v1361
        %v1606 = vpack.c.b16 %v1366, %v1362
        %v1607 = vpack.c.b16 %v1367, %v1363
        %v1608 = vpack.c.b16 %v1372, %v1368
        %v1609 = vpack.c.b16 %v1373, %v1369
        %v1610 = vpack.c.b16 %v1374, %v1370
        %v1611 = vpack.c.b16 %v1375, %v1371
        %v1612 = vpack.c.b16 %v1380, %v1376
        %v1613 = vpack.c.b16 %v1381, %v1377
        %v1614 = vpack.c.b16 %v1382, %v1378
        %v1615 = vpack.c.b16 %v1383, %v1379
        %v1616 = vpack.c.b16 %v1388, %v1384
        %v1617 = vpack.c.b16 %v1389, %v1385
        %v1618 = vpack.c.b16 %v1390, %v1386
        %v1619 = vpack.c.b16 %v1391, %v1387
        %v1620 = vpack.c.b16 %v1396, %v1392
        %v1621 = vpack.c.b16 %v1397, %v1393
        %v1622 = vpack.c.b16 %v1398, %v1394
        %v1623 = vpack.c.b16 %v1399, %v1395
        %v1624 = vpack.c.b16 %v1404, %v1400
        %v1625 = vpack.c.b16 %v1405, %v1401
        %v1626 = vpack.c.b16 %v1406, %v1402
        %v1627 = vpack.c.b16 %v1407, %v1403
        %v1628 = vpack.c.b16 %v1412, %v1408
        %v1629 = vpack.c.b16 %v1413, %v1409
        %v1630 = vpack.c.b16 %v1414, %v1410
        %v1631 = vpack.c.b16 %v1415, %v1411
        %v1632 = vpack.c.b16 %v1420, %v1416
        %v1633 = vpack.c.b16 %v1421, %v1417
        %v1634 = vpack.c.b16 %v1422, %v1418
        %v1635 = vpack.c.b16 %v1423, %v1419
        %v1636 = vpack.c.b16 %v1428, %v1424
        %v1637 = vpack.c.b16 %v1429, %v1425
        %v1638 = vpack.c.b16 %v1430, %v1426
        %v1639 = vpack.c.b16 %v1431, %v1427
        %v1640 = vpack.c.b16 %v1436, %v1432
        %v1641 = vpack.c.b16 %v1437, %v1433
        %v1642 = vpack.c.b16 %v1438, %v1434
        %v1643 = vpack.c.b16 %v1439, %v1435
        %v1644 = vpack.c.b16 %v1444, %v1440
        %v1645 = vpack.c.b16 %v1445, %v1441
        %v1646 = vpack.c.b16 %v1446, %v1442
        %v1647 = vpack.c.b16 %v1447, %v1443
        %v1648 = vpack.c.b16 %v1452, %v1448
        %v1649 = vpack.c.b16 %v1453, %v1449
        %v1650 = vpack.c.b16 %v1454, %v1450
        %v1651 = vpack.c.b16 %v1455, %v1451
        %v1652 = vpack.c.b16 %v1460, %v1456
        %v1653 = vpack.c.b16 %v1461, %v1457
        %v1654 = vpack.c.b16 %v1462, %v1458
        %v1655 = vpack.c.b16 %v1463, %v1459
        %1848 = vmatprep.subr.bf16.mxu0 %v1465
        %1849 = vmatpush1.bf16.msra.mxu0 %v1464
        %1850 = vmatprep.subr.bf16.mxu0 %v1469
        %1851 = vmatpush1.bf16.msra.mxu0 %v1468
        %1852 = vmatprep.subr.bf16.mxu0 %v1473
        %1853 = vmatpush1.bf16.msra.mxu0 %v1472
        %1854 = vmatprep.subr.bf16.mxu0 %v1477
        %1855 = vmatpush1.bf16.msra.mxu0 %v1476
        %1856 = vmatprep.subr.bf16.mxu0 %v1481
        %1857 = vmatpush1.bf16.msra.mxu0 %v1480
        %1858 = vmatprep.subr.bf16.mxu0 %v1485
        %1859 = vmatpush1.bf16.msra.mxu0 %v1484
        %1860 = vmatprep.subr.bf16.mxu0 %v1489
        %1861 = vmatpush1.bf16.msra.mxu0 %v1488
        %1862 = vmatprep.subr.bf16.mxu0 %v1493
        %1863 = vmatpush1.bf16.msra.mxu0 %v1492
        %1864 = vmatprep.subr.bf16.mxu0 %v1497
        %1865 = vmatpush1.bf16.msra.mxu0 %v1496
        %1866 = vmatprep.subr.bf16.mxu0 %v1501
        %1867 = vmatpush1.bf16.msra.mxu0 %v1500
        %1868 = vmatprep.subr.bf16.mxu0 %v1505
        %1869 = vmatpush1.bf16.msra.mxu0 %v1504
        %1870 = vmatprep.subr.bf16.mxu0 %v1509
        %1871 = vmatpush1.bf16.msra.mxu0 %v1508
        %1872 = vmatprep.subr.bf16.mxu0 %v1513
        %1873 = vmatpush1.bf16.msra.mxu0 %v1512
        %1874 = vmatprep.subr.bf16.mxu0 %v1517
        %1875 = vmatpush1.bf16.msra.mxu0 %v1516
        %1876 = vmatprep.subr.bf16.mxu0 %v1521
        %1877 = vmatpush1.bf16.msra.mxu0 %v1520
        %1878 = vmatprep.subr.bf16.mxu0 %v1525
        %1879 = vmatpush1.bf16.msra.mxu0 %v1524
        %1880 = vmatprep.mubr.bf16.mxu0 %v579
        %1881 = vmatmul.mubr.bf16.gmra.mrb[0].mxu0 %v578
        %v1882 = vpop.f32.mrb[0].mxu0
        %v1883 = vadd.f32 %v871, %v1882
        %v1884 = vpop.f32.mrb[0].mxu0
        %v1885 = vadd.f32 %v875, %v1884
        %v1886 = vpop.f32.mrb[0].mxu0
        %v1887 = vadd.f32 %v871, %v1886
        %v1888 = vpop.f32.mrb[0].mxu0
        %v1889 = vadd.f32 %v875, %v1888
        %1890 = vmatprep.mubr.bf16.mxu0 %v585
        %1891 = vmatmul.mubr.bf16.gmra.mrb[0].mxu0 %v584
        %v1892 = vpop.f32.mrb[0].mxu0
        %v1893 = vadd.f32 %v871, %v1892
        %v1894 = vpop.f32.mrb[0].mxu0
        %v1895 = vadd.f32 %v875, %v1894
        %v1896 = vpop.f32.mrb[0].mxu0
        %v1897 = vadd.f32 %v871, %v1896
        %v1898 = vpop.f32.mrb[0].mxu0
        %v1899 = vadd.f32 %v875, %v1898
        %1900 = vmatprep.mubr.bf16.mxu0 %v591
        %1901 = vmatmul.mubr.bf16.gmra.mrb[0].mxu0 %v590
        %v1902 = vpop.f32.mrb[0].mxu0
        %v1903 = vadd.f32 %v871, %v1902
        %v1904 = vpop.f32.mrb[0].mxu0
        %v1905 = vadd.f32 %v875, %v1904
        %v1906 = vpop.f32.mrb[0].mxu0
        %v1907 = vadd.f32 %v871, %v1906
        %v1908 = vpop.f32.mrb[0].mxu0
        %v1909 = vadd.f32 %v875, %v1908
        %1910 = vmatprep.mubr.bf16.mxu0 %v597
        %1911 = vmatmul.mubr.bf16.gmra.mrb[0].mxu0 %v596
        %v1912 = vpop.f32.mrb[0].mxu0
        %v1913 = vadd.f32 %v871, %v1912
        %v1914 = vpop.f32.mrb[0].mxu0
        %v1915 = vadd.f32 %v875, %v1914
        %v1916 = vpop.f32.mrb[0].mxu0
        %v1917 = vadd.f32 %v871, %v1916
        %v1918 = vpop.f32.mrb[0].mxu0
        %v1919 = vadd.f32 %v875, %v1918
        %1920 = vmatprep.mubr.bf16.mxu0 %v603
        %1921 = vmatmul.mubr.bf16.gmra.mrb[0].mxu0 %v602
        %v1922 = vpop.f32.mrb[0].mxu0
        %v1923 = vadd.f32 %v871, %v1922
        %v1924 = vpop.f32.mrb[0].mxu0
        %v1925 = vadd.f32 %v875, %v1924
        %v1926 = vpop.f32.mrb[0].mxu0
        %v1927 = vadd.f32 %v871, %v1926
        %v1928 = vpop.f32.mrb[0].mxu0
        %v1929 = vadd.f32 %v875, %v1928
        %1930 = vmatprep.mubr.bf16.mxu0 %v609
        %1931 = vmatmul.mubr.bf16.gmra.mrb[0].mxu0 %v608
        %v1932 = vpop.f32.mrb[0].mxu0
        %v1933 = vadd.f32 %v871, %v1932
        %v1934 = vpop.f32.mrb[0].mxu0
        %v1935 = vadd.f32 %v875, %v1934
        %v1936 = vpop.f32.mrb[0].mxu0
        %v1937 = vadd.f32 %v871, %v1936
        %v1938 = vpop.f32.mrb[0].mxu0
        %v1939 = vadd.f32 %v875, %v1938
        %1940 = vmatprep.mubr.bf16.mxu0 %v615
        %1941 = vmatmul.mubr.bf16.gmra.mrb[0].mxu0 %v614
        %v1942 = vpop.f32.mrb[0].mxu0
        %v1943 = vadd.f32 %v871, %v1942
        %v1944 = vpop.f32.mrb[0].mxu0
        %v1945 = vadd.f32 %v875, %v1944
        %v1946 = vpop.f32.mrb[0].mxu0
        %v1947 = vadd.f32 %v871, %v1946
        %v1948 = vpop.f32.mrb[0].mxu0
        %v1949 = vadd.f32 %v875, %v1948
        %1950 = vmatprep.mubr.bf16.mxu0 %v621
        %1951 = vmatmul.mubr.bf16.gmra.mrb[0].mxu0 %v620
        %v1952 = vpop.f32.mrb[0].mxu0
        %v1953 = vadd.f32 %v871, %v1952
        %v1954 = vpop.f32.mrb[0].mxu0
        %v1955 = vadd.f32 %v875, %v1954
        %v1956 = vpop.f32.mrb[0].mxu0
        %v1957 = vadd.f32 %v871, %v1956
        %v1958 = vpop.f32.mrb[0].mxu0
        %v1959 = vadd.f32 %v875, %v1958
        %1960 = vmatprep.mubr.bf16.mxu0 %v627
        %1961 = vmatmul.mubr.bf16.gmra.mrb[0].mxu0 %v626
        %v1962 = vpop.f32.mrb[0].mxu0
        %v1963 = vadd.f32 %v871, %v1962
        %v1964 = vpop.f32.mrb[0].mxu0
        %v1965 = vadd.f32 %v875, %v1964
        %v1966 = vpop.f32.mrb[0].mxu0
        %v1967 = vadd.f32 %v871, %v1966
        %v1968 = vpop.f32.mrb[0].mxu0
        %v1969 = vadd.f32 %v875, %v1968
        %1970 = vmatprep.mubr.bf16.mxu0 %v633
        %1971 = vmatmul.mubr.bf16.gmra.mrb[0].mxu0 %v632
        %v1972 = vpop.f32.mrb[0].mxu0
        %v1973 = vadd.f32 %v871, %v1972
        %v1974 = vpop.f32.mrb[0].mxu0
        %v1975 = vadd.f32 %v875, %v1974
        %v1976 = vpop.f32.mrb[0].mxu0
        %v1977 = vadd.f32 %v871, %v1976
        %v1978 = vpop.f32.mrb[0].mxu0
        %v1979 = vadd.f32 %v875, %v1978
        %1980 = vmatprep.mubr.bf16.mxu0 %v639
        %1981 = vmatmul.mubr.bf16.gmra.mrb[0].mxu0 %v638
        %v1982 = vpop.f32.mrb[0].mxu0
        %v1983 = vadd.f32 %v871, %v1982
        %v1984 = vpop.f32.mrb[0].mxu0
        %v1985 = vadd.f32 %v875, %v1984
        %v1986 = vpop.f32.mrb[0].mxu0
        %v1987 = vadd.f32 %v871, %v1986
        %v1988 = vpop.f32.mrb[0].mxu0
        %v1989 = vadd.f32 %v875, %v1988
        %1990 = vmatprep.mubr.bf16.mxu0 %v645
        %1991 = vmatmul.mubr.bf16.gmra.mrb[0].mxu0 %v644
        %v1992 = vpop.f32.mrb[0].mxu0
        %v1993 = vadd.f32 %v871, %v1992
        %v1994 = vpop.f32.mrb[0].mxu0
        %v1995 = vadd.f32 %v875, %v1994
        %v1996 = vpop.f32.mrb[0].mxu0
        %v1997 = vadd.f32 %v871, %v1996
        %v1998 = vpop.f32.mrb[0].mxu0
        %v1999 = vadd.f32 %v875, %v1998
        %2000 = vmatprep.mubr.bf16.mxu0 %v651
        %2001 = vmatmul.mubr.bf16.gmra.mrb[0].mxu0 %v650
        %v2002 = vpop.f32.mrb[0].mxu0
        %v2003 = vadd.f32 %v871, %v2002
        %v2004 = vpop.f32.mrb[0].mxu0
        %v2005 = vadd.f32 %v875, %v2004
        %v2006 = vpop.f32.mrb[0].mxu0
        %v2007 = vadd.f32 %v871, %v2006
        %v2008 = vpop.f32.mrb[0].mxu0
        %v2009 = vadd.f32 %v875, %v2008
        %2010 = vmatprep.mubr.bf16.mxu0 %v657
        %2011 = vmatmul.mubr.bf16.gmra.mrb[0].mxu0 %v656
        %v2012 = vpop.f32.mrb[0].mxu0
        %v2013 = vadd.f32 %v871, %v2012
        %v2014 = vpop.f32.mrb[0].mxu0
        %v2015 = vadd.f32 %v875, %v2014
        %v2016 = vpop.f32.mrb[0].mxu0
        %v2017 = vadd.f32 %v871, %v2016
        %v2018 = vpop.f32.mrb[0].mxu0
        %v2019 = vadd.f32 %v875, %v2018
        %2020 = vmatprep.mubr.bf16.mxu0 %v663
        %2021 = vmatmul.mubr.bf16.gmra.mrb[0].mxu0 %v662
        %v2022 = vpop.f32.mrb[0].mxu0
        %v2023 = vadd.f32 %v871, %v2022
        %v2024 = vpop.f32.mrb[0].mxu0
        %v2025 = vadd.f32 %v875, %v2024
        %v2026 = vpop.f32.mrb[0].mxu0
        %v2027 = vadd.f32 %v871, %v2026
        %v2028 = vpop.f32.mrb[0].mxu0
        %v2029 = vadd.f32 %v875, %v2028
        %2030 = vmatprep.mubr.bf16.mxu0 %v669
        %2031 = vmatmul.mubr.bf16.gmra.mrb[0].mxu0 %v668
        %v2032 = vpop.f32.mrb[0].mxu0
        %v2033 = vadd.f32 %v871, %v2032
        %v2034 = vpop.f32.mrb[0].mxu0
        %v2035 = vadd.f32 %v875, %v2034
        %v2036 = vpop.f32.mrb[0].mxu0
        %v2037 = vadd.f32 %v871, %v2036
        %v2038 = vpop.f32.mrb[0].mxu0
        %v2039 = vadd.f32 %v875, %v2038
        %2040 = vdwg.mxu0
        %2041 = vmatprep.subr.bf16.mxu0 %v1529
        %2042 = vmatpush1.bf16.msra.mxu0 %v1528
        %2043 = vmatprep.subr.bf16.mxu0 %v1533
        %2044 = vmatpush1.bf16.msra.mxu0 %v1532
        %2045 = vmatprep.subr.bf16.mxu0 %v1537
        %2046 = vmatpush1.bf16.msra.mxu0 %v1536
        %2047 = vmatprep.subr.bf16.mxu0 %v1541
        %2048 = vmatpush1.bf16.msra.mxu0 %v1540
        %2049 = vmatprep.subr.bf16.mxu0 %v1545
        %2050 = vmatpush1.bf16.msra.mxu0 %v1544
        %2051 = vmatprep.subr.bf16.mxu0 %v1549
        %2052 = vmatpush1.bf16.msra.mxu0 %v1548
        %2053 = vmatprep.subr.bf16.mxu0 %v1553
        %2054 = vmatpush1.bf16.msra.mxu0 %v1552
        %2055 = vmatprep.subr.bf16.mxu0 %v1557
        %2056 = vmatpush1.bf16.msra.mxu0 %v1556
        %2057 = vmatprep.subr.bf16.mxu0 %v1561
        %2058 = vmatpush1.bf16.msra.mxu0 %v1560
        %2059 = vmatprep.subr.bf16.mxu0 %v1565
        %2060 = vmatpush1.bf16.msra.mxu0 %v1564
        %2061 = vmatprep.subr.bf16.mxu0 %v1569
        %2062 = vmatpush1.bf16.msra.mxu0 %v1568
        %2063 = vmatprep.subr.bf16.mxu0 %v1573
        %2064 = vmatpush1.bf16.msra.mxu0 %v1572
        %2065 = vmatprep.subr.bf16.mxu0 %v1577
        %2066 = vmatpush1.bf16.msra.mxu0 %v1576
        %2067 = vmatprep.subr.bf16.mxu0 %v1581
        %2068 = vmatpush1.bf16.msra.mxu0 %v1580
        %2069 = vmatprep.subr.bf16.mxu0 %v1585
        %2070 = vmatpush1.bf16.msra.mxu0 %v1584
        %2071 = vmatprep.subr.bf16.mxu0 %v1589
        %2072 = vmatpush1.bf16.msra.mxu0 %v1588
        %2073 = vmatprep.mubr.bf16.mxu0 %v581
        %2074 = vmatmul.mubr.bf16.gmra.mrb[0].mxu0 %v580
        %v2075 = vpop.f32.mrb[0].mxu0
        %v2076 = vadd.f32 %v1883, %v2075
        %v2077 = vpop.f32.mrb[0].mxu0
        %v2078 = vadd.f32 %v1885, %v2077
        %v2079 = vpop.f32.mrb[0].mxu0
        %v2080 = vadd.f32 %v1887, %v2079
        %v2081 = vpop.f32.mrb[0].mxu0
        %v2082 = vadd.f32 %v1889, %v2081
        %2083 = vmatprep.mubr.bf16.mxu0 %v587
        %2084 = vmatmul.mubr.bf16.gmra.mrb[0].mxu0 %v586
        %v2085 = vpop.f32.mrb[0].mxu0
        %v2086 = vadd.f32 %v1893, %v2085
        %v2087 = vpop.f32.mrb[0].mxu0
        %v2088 = vadd.f32 %v1895, %v2087
        %v2089 = vpop.f32.mrb[0].mxu0
        %v2090 = vadd.f32 %v1897, %v2089
        %v2091 = vpop.f32.mrb[0].mxu0
        %v2092 = vadd.f32 %v1899, %v2091
        %2093 = vmatprep.mubr.bf16.mxu0 %v593
        %2094 = vmatmul.mubr.bf16.gmra.mrb[0].mxu0 %v592
        %v2095 = vpop.f32.mrb[0].mxu0
        %v2096 = vadd.f32 %v1903, %v2095
        %v2097 = vpop.f32.mrb[0].mxu0
        %v2098 = vadd.f32 %v1905, %v2097
        %v2099 = vpop.f32.mrb[0].mxu0
        %v2100 = vadd.f32 %v1907, %v2099
        %v2101 = vpop.f32.mrb[0].mxu0
        %v2102 = vadd.f32 %v1909, %v2101
        %2103 = vmatprep.mubr.bf16.mxu0 %v599
        %2104 = vmatmul.mubr.bf16.gmra.mrb[0].mxu0 %v598
        %v2105 = vpop.f32.mrb[0].mxu0
        %v2106 = vadd.f32 %v1913, %v2105
        %v2107 = vpop.f32.mrb[0].mxu0
        %v2108 = vadd.f32 %v1915, %v2107
        %v2109 = vpop.f32.mrb[0].mxu0
        %v2110 = vadd.f32 %v1917, %v2109
        %v2111 = vpop.f32.mrb[0].mxu0
        %v2112 = vadd.f32 %v1919, %v2111
        %2113 = vmatprep.mubr.bf16.mxu0 %v605
        %2114 = vmatmul.mubr.bf16.gmra.mrb[0].mxu0 %v604
        %v2115 = vpop.f32.mrb[0].mxu0
        %v2116 = vadd.f32 %v1923, %v2115
        %v2117 = vpop.f32.mrb[0].mxu0
        %v2118 = vadd.f32 %v1925, %v2117
        %v2119 = vpop.f32.mrb[0].mxu0
        %v2120 = vadd.f32 %v1927, %v2119
        %v2121 = vpop.f32.mrb[0].mxu0
        %v2122 = vadd.f32 %v1929, %v2121
        %2123 = vmatprep.mubr.bf16.mxu0 %v611
        %2124 = vmatmul.mubr.bf16.gmra.mrb[0].mxu0 %v610
        %v2125 = vpop.f32.mrb[0].mxu0
        %v2126 = vadd.f32 %v1933, %v2125
        %v2127 = vpop.f32.mrb[0].mxu0
        %v2128 = vadd.f32 %v1935, %v2127
        %v2129 = vpop.f32.mrb[0].mxu0
        %v2130 = vadd.f32 %v1937, %v2129
        %v2131 = vpop.f32.mrb[0].mxu0
        %v2132 = vadd.f32 %v1939, %v2131
        %2133 = vmatprep.mubr.bf16.mxu0 %v617
        %2134 = vmatmul.mubr.bf16.gmra.mrb[0].mxu0 %v616
        %v2135 = vpop.f32.mrb[0].mxu0
        %v2136 = vadd.f32 %v1943, %v2135
        %v2137 = vpop.f32.mrb[0].mxu0
        %v2138 = vadd.f32 %v1945, %v2137
        %v2139 = vpop.f32.mrb[0].mxu0
        %v2140 = vadd.f32 %v1947, %v2139
        %v2141 = vpop.f32.mrb[0].mxu0
        %v2142 = vadd.f32 %v1949, %v2141
        %2143 = vmatprep.mubr.bf16.mxu0 %v623
        %2144 = vmatmul.mubr.bf16.gmra.mrb[0].mxu0 %v622
        %v2145 = vpop.f32.mrb[0].mxu0
        %v2146 = vadd.f32 %v1953, %v2145
        %v2147 = vpop.f32.mrb[0].mxu0
        %v2148 = vadd.f32 %v1955, %v2147
        %v2149 = vpop.f32.mrb[0].mxu0
        %v2150 = vadd.f32 %v1957, %v2149
        %v2151 = vpop.f32.mrb[0].mxu0
        %v2152 = vadd.f32 %v1959, %v2151
        %2153 = vmatprep.mubr.bf16.mxu0 %v629
        %2154 = vmatmul.mubr.bf16.gmra.mrb[0].mxu0 %v628
        %v2155 = vpop.f32.mrb[0].mxu0
        %v2156 = vadd.f32 %v1963, %v2155
        %v2157 = vpop.f32.mrb[0].mxu0
        %v2158 = vadd.f32 %v1965, %v2157
        %v2159 = vpop.f32.mrb[0].mxu0
        %v2160 = vadd.f32 %v1967, %v2159
        %v2161 = vpop.f32.mrb[0].mxu0
        %v2162 = vadd.f32 %v1969, %v2161
        %2163 = vmatprep.mubr.bf16.mxu0 %v635
        %2164 = vmatmul.mubr.bf16.gmra.mrb[0].mxu0 %v634
        %v2165 = vpop.f32.mrb[0].mxu0
        %v2166 = vadd.f32 %v1973, %v2165
        %v2167 = vpop.f32.mrb[0].mxu0
        %v2168 = vadd.f32 %v1975, %v2167
        %v2169 = vpop.f32.mrb[0].mxu0
        %v2170 = vadd.f32 %v1977, %v2169
        %v2171 = vpop.f32.mrb[0].mxu0
        %v2172 = vadd.f32 %v1979, %v2171
        %2173 = vmatprep.mubr.bf16.mxu0 %v641
        %2174 = vmatmul.mubr.bf16.gmra.mrb[0].mxu0 %v640
        %v2175 = vpop.f32.mrb[0].mxu0
        %v2176 = vadd.f32 %v1983, %v2175
        %v2177 = vpop.f32.mrb[0].mxu0
        %v2178 = vadd.f32 %v1985, %v2177
        %v2179 = vpop.f32.mrb[0].mxu0
        %v2180 = vadd.f32 %v1987, %v2179
        %v2181 = vpop.f32.mrb[0].mxu0
        %v2182 = vadd.f32 %v1989, %v2181
        %2183 = vmatprep.mubr.bf16.mxu0 %v647
        %2184 = vmatmul.mubr.bf16.gmra.mrb[0].mxu0 %v646
        %v2185 = vpop.f32.mrb[0].mxu0
        %v2186 = vadd.f32 %v1993, %v2185
        %v2187 = vpop.f32.mrb[0].mxu0
        %v2188 = vadd.f32 %v1995, %v2187
        %v2189 = vpop.f32.mrb[0].mxu0
        %v2190 = vadd.f32 %v1997, %v2189
        %v2191 = vpop.f32.mrb[0].mxu0
        %v2192 = vadd.f32 %v1999, %v2191
        %2193 = vmatprep.mubr.bf16.mxu0 %v653
        %2194 = vmatmul.mubr.bf16.gmra.mrb[0].mxu0 %v652
        %v2195 = vpop.f32.mrb[0].mxu0
        %v2196 = vadd.f32 %v2003, %v2195
        %v2197 = vpop.f32.mrb[0].mxu0
        %v2198 = vadd.f32 %v2005, %v2197
        %v2199 = vpop.f32.mrb[0].mxu0
        %v2200 = vadd.f32 %v2007, %v2199
        %v2201 = vpop.f32.mrb[0].mxu0
        %v2202 = vadd.f32 %v2009, %v2201
        %2203 = vmatprep.mubr.bf16.mxu0 %v659
        %2204 = vmatmul.mubr.bf16.gmra.mrb[0].mxu0 %v658
        %v2205 = vpop.f32.mrb[0].mxu0
        %v2206 = vadd.f32 %v2013, %v2205
        %v2207 = vpop.f32.mrb[0].mxu0
        %v2208 = vadd.f32 %v2015, %v2207
        %v2209 = vpop.f32.mrb[0].mxu0
        %v2210 = vadd.f32 %v2017, %v2209
        %v2211 = vpop.f32.mrb[0].mxu0
        %v2212 = vadd.f32 %v2019, %v2211
        %2213 = vmatprep.mubr.bf16.mxu0 %v665
        %2214 = vmatmul.mubr.bf16.gmra.mrb[0].mxu0 %v664
        %v2215 = vpop.f32.mrb[0].mxu0
        %v2216 = vadd.f32 %v2023, %v2215
        %v2217 = vpop.f32.mrb[0].mxu0
        %v2218 = vadd.f32 %v2025, %v2217
        %v2219 = vpop.f32.mrb[0].mxu0
        %v2220 = vadd.f32 %v2027, %v2219
        %v2221 = vpop.f32.mrb[0].mxu0
        %v2222 = vadd.f32 %v2029, %v2221
        %2223 = vmatprep.mubr.bf16.mxu0 %v671
        %2224 = vmatmul.mubr.bf16.gmra.mrb[0].mxu0 %v670
        %v2225 = vpop.f32.mrb[0].mxu0
        %v2226 = vadd.f32 %v2033, %v2225
        %v2227 = vpop.f32.mrb[0].mxu0
        %v2228 = vadd.f32 %v2035, %v2227
        %v2229 = vpop.f32.mrb[0].mxu0
        %v2230 = vadd.f32 %v2037, %v2229
        %v2231 = vpop.f32.mrb[0].mxu0
        %v2232 = vadd.f32 %v2039, %v2231
        %2233 = vdwg.mxu0
        %2234 = vmatprep.subr.bf16.mxu0 %v1593
        %2235 = vmatpush1.bf16.msra.mxu0 %v1592
        %2236 = vmatprep.subr.bf16.mxu0 %v1597
        %2237 = vmatpush1.bf16.msra.mxu0 %v1596
        %2238 = vmatprep.subr.bf16.mxu0 %v1601
        %2239 = vmatpush1.bf16.msra.mxu0 %v1600
        %2240 = vmatprep.subr.bf16.mxu0 %v1605
        %2241 = vmatpush1.bf16.msra.mxu0 %v1604
        %2242 = vmatprep.subr.bf16.mxu0 %v1609
        %2243 = vmatpush1.bf16.msra.mxu0 %v1608
        %2244 = vmatprep.subr.bf16.mxu0 %v1613
        %2245 = vmatpush1.bf16.msra.mxu0 %v1612
        %2246 = vmatprep.subr.bf16.mxu0 %v1617
        %2247 = vmatpush1.bf16.msra.mxu0 %v1616
        %2248 = vmatprep.subr.bf16.mxu0 %v1621
        %2249 = vmatpush1.bf16.msra.mxu0 %v1620
        %2250 = vmatprep.subr.bf16.mxu0 %v1625
        %2251 = vmatpush1.bf16.msra.mxu0 %v1624
        %2252 = vmatprep.subr.bf16.mxu0 %v1629
        %2253 = vmatpush1.bf16.msra.mxu0 %v1628
        %2254 = vmatprep.subr.bf16.mxu0 %v1633
        %2255 = vmatpush1.bf16.msra.mxu0 %v1632
        %2256 = vmatprep.subr.bf16.mxu0 %v1637
        %2257 = vmatpush1.bf16.msra.mxu0 %v1636
        %2258 = vmatprep.subr.bf16.mxu0 %v1641
        %2259 = vmatpush1.bf16.msra.mxu0 %v1640
        %2260 = vmatprep.subr.bf16.mxu0 %v1645
        %2261 = vmatpush1.bf16.msra.mxu0 %v1644
        %2262 = vmatprep.subr.bf16.mxu0 %v1649
        %2263 = vmatpush1.bf16.msra.mxu0 %v1648
        %2264 = vmatprep.subr.bf16.mxu0 %v1653
        %2265 = vmatpush1.bf16.msra.mxu0 %v1652
        %2266 = vmatprep.mubr.bf16.mxu0 %v583
        %2267 = vmatmul.mubr.bf16.gmra.mrb[0].mxu0 %v582
        %v2268 = vpop.f32.mrb[0].mxu0
        %v2269 = vadd.f32 %v2076, %v2268
        %v2270 = vpop.f32.mrb[0].mxu0
        %v2271 = vadd.f32 %v2078, %v2270
        %v2272 = vpop.f32.mrb[0].mxu0
        %v2273 = vadd.f32 %v2080, %v2272
        %v2274 = vpop.f32.mrb[0].mxu0
        %v2275 = vadd.f32 %v2082, %v2274
        %2276 = vmatprep.mubr.bf16.mxu0 %v589
        %2277 = vmatmul.mubr.bf16.gmra.mrb[0].mxu0 %v588
        %v2278 = vpop.f32.mrb[0].mxu0
        %v2279 = vadd.f32 %v2086, %v2278
        %v2280 = vpop.f32.mrb[0].mxu0
        %v2281 = vadd.f32 %v2088, %v2280
        %v2282 = vpop.f32.mrb[0].mxu0
        %v2283 = vadd.f32 %v2090, %v2282
        %v2284 = vpop.f32.mrb[0].mxu0
        %v2285 = vadd.f32 %v2092, %v2284
        %2286 = vmatprep.mubr.bf16.mxu0 %v595
        %2287 = vmatmul.mubr.bf16.gmra.mrb[0].mxu0 %v594
        %v2288 = vpop.f32.mrb[0].mxu0
        %v2289 = vadd.f32 %v2096, %v2288
        %v2290 = vpop.f32.mrb[0].mxu0
        %v2291 = vadd.f32 %v2098, %v2290
        %v2292 = vpop.f32.mrb[0].mxu0
        %v2293 = vadd.f32 %v2100, %v2292
        %v2294 = vpop.f32.mrb[0].mxu0
        %v2295 = vadd.f32 %v2102, %v2294
        %2296 = vmatprep.mubr.bf16.mxu0 %v601
        %2297 = vmatmul.mubr.bf16.gmra.mrb[0].mxu0 %v600
        %v2298 = vpop.f32.mrb[0].mxu0
        %v2299 = vadd.f32 %v2106, %v2298
        %v2300 = vpop.f32.mrb[0].mxu0
        %v2301 = vadd.f32 %v2108, %v2300
        %v2302 = vpop.f32.mrb[0].mxu0
        %v2303 = vadd.f32 %v2110, %v2302
        %v2304 = vpop.f32.mrb[0].mxu0
        %v2305 = vadd.f32 %v2112, %v2304
        %2306 = vmatprep.mubr.bf16.mxu0 %v607
        %2307 = vmatmul.mubr.bf16.gmra.mrb[0].mxu0 %v606
        %v2308 = vpop.f32.mrb[0].mxu0
        %v2309 = vadd.f32 %v2116, %v2308
        %v2310 = vpop.f32.mrb[0].mxu0
        %v2311 = vadd.f32 %v2118, %v2310
        %v2312 = vpop.f32.mrb[0].mxu0
        %v2313 = vadd.f32 %v2120, %v2312
        %v2314 = vpop.f32.mrb[0].mxu0
        %v2315 = vadd.f32 %v2122, %v2314
        %2316 = vmatprep.mubr.bf16.mxu0 %v613
        %2317 = vmatmul.mubr.bf16.gmra.mrb[0].mxu0 %v612
        %v2318 = vpop.f32.mrb[0].mxu0
        %v2319 = vadd.f32 %v2126, %v2318
        %v2320 = vpop.f32.mrb[0].mxu0
        %v2321 = vadd.f32 %v2128, %v2320
        %v2322 = vpop.f32.mrb[0].mxu0
        %v2323 = vadd.f32 %v2130, %v2322
        %v2324 = vpop.f32.mrb[0].mxu0
        %v2325 = vadd.f32 %v2132, %v2324
        %2326 = vmatprep.mubr.bf16.mxu0 %v619
        %2327 = vmatmul.mubr.bf16.gmra.mrb[0].mxu0 %v618
        %v2328 = vpop.f32.mrb[0].mxu0
        %v2329 = vadd.f32 %v2136, %v2328
        %v2330 = vpop.f32.mrb[0].mxu0
        %v2331 = vadd.f32 %v2138, %v2330
        %v2332 = vpop.f32.mrb[0].mxu0
        %v2333 = vadd.f32 %v2140, %v2332
        %v2334 = vpop.f32.mrb[0].mxu0
        %v2335 = vadd.f32 %v2142, %v2334
        %2336 = vmatprep.mubr.bf16.mxu0 %v625
        %2337 = vmatmul.mubr.bf16.gmra.mrb[0].mxu0 %v624
        %v2338 = vpop.f32.mrb[0].mxu0
        %v2339 = vadd.f32 %v2146, %v2338
        %v2340 = vpop.f32.mrb[0].mxu0
        %v2341 = vadd.f32 %v2148, %v2340
        %v2342 = vpop.f32.mrb[0].mxu0
        %v2343 = vadd.f32 %v2150, %v2342
        %v2344 = vpop.f32.mrb[0].mxu0
        %v2345 = vadd.f32 %v2152, %v2344
        %2346 = vmatprep.mubr.bf16.mxu0 %v631
        %2347 = vmatmul.mubr.bf16.gmra.mrb[0].mxu0 %v630
        %v2348 = vpop.f32.mrb[0].mxu0
        %v2349 = vadd.f32 %v2156, %v2348
        %v2350 = vpop.f32.mrb[0].mxu0
        %v2351 = vadd.f32 %v2158, %v2350
        %v2352 = vpop.f32.mrb[0].mxu0
        %v2353 = vadd.f32 %v2160, %v2352
        %v2354 = vpop.f32.mrb[0].mxu0
        %v2355 = vadd.f32 %v2162, %v2354
        %2356 = vmatprep.mubr.bf16.mxu0 %v637
        %2357 = vmatmul.mubr.bf16.gmra.mrb[0].mxu0 %v636
        %v2358 = vpop.f32.mrb[0].mxu0
        %v2359 = vadd.f32 %v2166, %v2358
        %v2360 = vpop.f32.mrb[0].mxu0
        %v2361 = vadd.f32 %v2168, %v2360
        %v2362 = vpop.f32.mrb[0].mxu0
        %v2363 = vadd.f32 %v2170, %v2362
        %v2364 = vpop.f32.mrb[0].mxu0
        %v2365 = vadd.f32 %v2172, %v2364
        %2366 = vmatprep.mubr.bf16.mxu0 %v643
        %2367 = vmatmul.mubr.bf16.gmra.mrb[0].mxu0 %v642
        %v2368 = vpop.f32.mrb[0].mxu0
        %v2369 = vadd.f32 %v2176, %v2368
        %v2370 = vpop.f32.mrb[0].mxu0
        %v2371 = vadd.f32 %v2178, %v2370
        %v2372 = vpop.f32.mrb[0].mxu0
        %v2373 = vadd.f32 %v2180, %v2372
        %v2374 = vpop.f32.mrb[0].mxu0
        %v2375 = vadd.f32 %v2182, %v2374
        %2376 = vmatprep.mubr.bf16.mxu0 %v649
        %2377 = vmatmul.mubr.bf16.gmra.mrb[0].mxu0 %v648
        %v2378 = vpop.f32.mrb[0].mxu0
        %v2379 = vadd.f32 %v2186, %v2378
        %v2380 = vpop.f32.mrb[0].mxu0
        %v2381 = vadd.f32 %v2188, %v2380
        %v2382 = vpop.f32.mrb[0].mxu0
        %v2383 = vadd.f32 %v2190, %v2382
        %v2384 = vpop.f32.mrb[0].mxu0
        %v2385 = vadd.f32 %v2192, %v2384
        %2386 = vmatprep.mubr.bf16.mxu0 %v655
        %2387 = vmatmul.mubr.bf16.gmra.mrb[0].mxu0 %v654
        %v2388 = vpop.f32.mrb[0].mxu0
        %v2389 = vadd.f32 %v2196, %v2388
        %v2390 = vpop.f32.mrb[0].mxu0
        %v2391 = vadd.f32 %v2198, %v2390
        %v2392 = vpop.f32.mrb[0].mxu0
        %v2393 = vadd.f32 %v2200, %v2392
        %v2394 = vpop.f32.mrb[0].mxu0
        %v2395 = vadd.f32 %v2202, %v2394
        %2396 = vmatprep.mubr.bf16.mxu0 %v661
        %2397 = vmatmul.mubr.bf16.gmra.mrb[0].mxu0 %v660
        %v2398 = vpop.f32.mrb[0].mxu0
        %v2399 = vadd.f32 %v2206, %v2398
        %v2400 = vpop.f32.mrb[0].mxu0
        %v2401 = vadd.f32 %v2208, %v2400
        %v2402 = vpop.f32.mrb[0].mxu0
        %v2403 = vadd.f32 %v2210, %v2402
        %v2404 = vpop.f32.mrb[0].mxu0
        %v2405 = vadd.f32 %v2212, %v2404
        %2406 = vmatprep.mubr.bf16.mxu0 %v667
        %2407 = vmatmul.mubr.bf16.gmra.mrb[0].mxu0 %v666
        %v2408 = vpop.f32.mrb[0].mxu0
        %v2409 = vadd.f32 %v2216, %v2408
        %v2410 = vpop.f32.mrb[0].mxu0
        %v2411 = vadd.f32 %v2218, %v2410
        %v2412 = vpop.f32.mrb[0].mxu0
        %v2413 = vadd.f32 %v2220, %v2412
        %v2414 = vpop.f32.mrb[0].mxu0
        %v2415 = vadd.f32 %v2222, %v2414
        %2416 = vmatprep.mubr.bf16.mxu0 %v673
        %2417 = vmatmul.mubr.bf16.gmra.mrb[0].mxu0 %v672
        %v2418 = vpop.f32.mrb[0].mxu0
        %v2419 = vadd.f32 %v2226, %v2418
        %v2420 = vpop.f32.mrb[0].mxu0
        %v2421 = vadd.f32 %v2228, %v2420
        %v2422 = vpop.f32.mrb[0].mxu0
        %v2423 = vadd.f32 %v2230, %v2422
        %v2424 = vpop.f32.mrb[0].mxu0
        %v2425 = vadd.f32 %v2232, %v2424
        %2426 = vdwg.mxu0
        %2427 = vmatprep.subr.bf16.mxu0 %v1467
        %2428 = vmatpush1.bf16.msra.mxu0 %v1466
        %2429 = vmatprep.subr.bf16.mxu0 %v1471
        %2430 = vmatpush1.bf16.msra.mxu0 %v1470
        %2431 = vmatprep.subr.bf16.mxu0 %v1475
        %2432 = vmatpush1.bf16.msra.mxu0 %v1474
        %2433 = vmatprep.subr.bf16.mxu0 %v1479
        %2434 = vmatpush1.bf16.msra.mxu0 %v1478
        %2435 = vmatprep.subr.bf16.mxu0 %v1483
        %2436 = vmatpush1.bf16.msra.mxu0 %v1482
        %2437 = vmatprep.subr.bf16.mxu0 %v1487
        %2438 = vmatpush1.bf16.msra.mxu0 %v1486
        %2439 = vmatprep.subr.bf16.mxu0 %v1491
        %2440 = vmatpush1.bf16.msra.mxu0 %v1490
        %2441 = vmatprep.subr.bf16.mxu0 %v1495
        %2442 = vmatpush1.bf16.msra.mxu0 %v1494
        %2443 = vmatprep.subr.bf16.mxu0 %v1499
        %2444 = vmatpush1.bf16.msra.mxu0 %v1498
        %2445 = vmatprep.subr.bf16.mxu0 %v1503
        %2446 = vmatpush1.bf16.msra.mxu0 %v1502
        %2447 = vmatprep.subr.bf16.mxu0 %v1507
        %2448 = vmatpush1.bf16.msra.mxu0 %v1506
        %2449 = vmatprep.subr.bf16.mxu0 %v1511
        %2450 = vmatpush1.bf16.msra.mxu0 %v1510
        %2451 = vmatprep.subr.bf16.mxu0 %v1515
        %2452 = vmatpush1.bf16.msra.mxu0 %v1514
        %2453 = vmatprep.subr.bf16.mxu0 %v1519
        %2454 = vmatpush1.bf16.msra.mxu0 %v1518
        %2455 = vmatprep.subr.bf16.mxu0 %v1523
        %2456 = vmatpush1.bf16.msra.mxu0 %v1522
        %2457 = vmatprep.subr.bf16.mxu0 %v1527
        %2458 = vmatpush1.bf16.msra.mxu0 %v1526
        %2459 = vmatprep.mubr.bf16.mxu0 %v579
        %2460 = vmatmul.mubr.bf16.gmra.mrb[0].mxu0 %v578
        %v2461 = vpop.f32.mrb[0].mxu0
        %v2462 = vadd.f32 %v879, %v2461
        %v2463 = vpop.f32.mrb[0].mxu0
        %v2464 = vadd.f32 %v883, %v2463
        %v2465 = vpop.f32.mrb[0].mxu0
        %v2466 = vadd.f32 %v879, %v2465
        %v2467 = vpop.f32.mrb[0].mxu0
        %v2468 = vadd.f32 %v883, %v2467
        %2469 = vmatprep.mubr.bf16.mxu0 %v585
        %2470 = vmatmul.mubr.bf16.gmra.mrb[0].mxu0 %v584
        %v2471 = vpop.f32.mrb[0].mxu0
        %v2472 = vadd.f32 %v879, %v2471
        %v2473 = vpop.f32.mrb[0].mxu0
        %v2474 = vadd.f32 %v883, %v2473
        %v2475 = vpop.f32.mrb[0].mxu0
        %v2476 = vadd.f32 %v879, %v2475
        %v2477 = vpop.f32.mrb[0].mxu0
        %v2478 = vadd.f32 %v883, %v2477
        %2479 = vmatprep.mubr.bf16.mxu0 %v591
        %2480 = vmatmul.mubr.bf16.gmra.mrb[0].mxu0 %v590
        %v2481 = vpop.f32.mrb[0].mxu0
        %v2482 = vadd.f32 %v879, %v2481
        %v2483 = vpop.f32.mrb[0].mxu0
        %v2484 = vadd.f32 %v883, %v2483
        %v2485 = vpop.f32.mrb[0].mxu0
        %v2486 = vadd.f32 %v879, %v2485
        %v2487 = vpop.f32.mrb[0].mxu0
        %v2488 = vadd.f32 %v883, %v2487
        %2489 = vmatprep.mubr.bf16.mxu0 %v597
        %2490 = vmatmul.mubr.bf16.gmra.mrb[0].mxu0 %v596
        %v2491 = vpop.f32.mrb[0].mxu0
        %v2492 = vadd.f32 %v879, %v2491
        %v2493 = vpop.f32.mrb[0].mxu0
        %v2494 = vadd.f32 %v883, %v2493
        %v2495 = vpop.f32.mrb[0].mxu0
        %v2496 = vadd.f32 %v879, %v2495
        %v2497 = vpop.f32.mrb[0].mxu0
        %v2498 = vadd.f32 %v883, %v2497
        %2499 = vmatprep.mubr.bf16.mxu0 %v603
        %2500 = vmatmul.mubr.bf16.gmra.mrb[0].mxu0 %v602
        %v2501 = vpop.f32.mrb[0].mxu0
        %v2502 = vadd.f32 %v879, %v2501
        %v2503 = vpop.f32.mrb[0].mxu0
        %v2504 = vadd.f32 %v883, %v2503
        %v2505 = vpop.f32.mrb[0].mxu0
        %v2506 = vadd.f32 %v879, %v2505
        %v2507 = vpop.f32.mrb[0].mxu0
        %v2508 = vadd.f32 %v883, %v2507
        %2509 = vmatprep.mubr.bf16.mxu0 %v609
        %2510 = vmatmul.mubr.bf16.gmra.mrb[0].mxu0 %v608
        %v2511 = vpop.f32.mrb[0].mxu0
        %v2512 = vadd.f32 %v879, %v2511
        %v2513 = vpop.f32.mrb[0].mxu0
        %v2514 = vadd.f32 %v883, %v2513
        %v2515 = vpop.f32.mrb[0].mxu0
        %v2516 = vadd.f32 %v879, %v2515
        %v2517 = vpop.f32.mrb[0].mxu0
        %v2518 = vadd.f32 %v883, %v2517
        %2519 = vmatprep.mubr.bf16.mxu0 %v615
        %2520 = vmatmul.mubr.bf16.gmra.mrb[0].mxu0 %v614
        %v2521 = vpop.f32.mrb[0].mxu0
        %v2522 = vadd.f32 %v879, %v2521
        %v2523 = vpop.f32.mrb[0].mxu0
        %v2524 = vadd.f32 %v883, %v2523
        %v2525 = vpop.f32.mrb[0].mxu0
        %v2526 = vadd.f32 %v879, %v2525
        %v2527 = vpop.f32.mrb[0].mxu0
        %v2528 = vadd.f32 %v883, %v2527
        %2529 = vmatprep.mubr.bf16.mxu0 %v621
        %2530 = vmatmul.mubr.bf16.gmra.mrb[0].mxu0 %v620
        %v2531 = vpop.f32.mrb[0].mxu0
        %v2532 = vadd.f32 %v879, %v2531
        %v2533 = vpop.f32.mrb[0].mxu0
        %v2534 = vadd.f32 %v883, %v2533
        %v2535 = vpop.f32.mrb[0].mxu0
        %v2536 = vadd.f32 %v879, %v2535
        %v2537 = vpop.f32.mrb[0].mxu0
        %v2538 = vadd.f32 %v883, %v2537
        %2539 = vmatprep.mubr.bf16.mxu0 %v627
        %2540 = vmatmul.mubr.bf16.gmra.mrb[0].mxu0 %v626
        %v2541 = vpop.f32.mrb[0].mxu0
        %v2542 = vadd.f32 %v879, %v2541
        %v2543 = vpop.f32.mrb[0].mxu0
        %v2544 = vadd.f32 %v883, %v2543
        %v2545 = vpop.f32.mrb[0].mxu0
        %v2546 = vadd.f32 %v879, %v2545
        %v2547 = vpop.f32.mrb[0].mxu0
        %v2548 = vadd.f32 %v883, %v2547
        %2549 = vmatprep.mubr.bf16.mxu0 %v633
        %2550 = vmatmul.mubr.bf16.gmra.mrb[0].mxu0 %v632
        %v2551 = vpop.f32.mrb[0].mxu0
        %v2552 = vadd.f32 %v879, %v2551
        %v2553 = vpop.f32.mrb[0].mxu0
        %v2554 = vadd.f32 %v883, %v2553
        %v2555 = vpop.f32.mrb[0].mxu0
        %v2556 = vadd.f32 %v879, %v2555
        %v2557 = vpop.f32.mrb[0].mxu0
        %v2558 = vadd.f32 %v883, %v2557
        %2559 = vmatprep.mubr.bf16.mxu0 %v639
        %2560 = vmatmul.mubr.bf16.gmra.mrb[0].mxu0 %v638
        %v2561 = vpop.f32.mrb[0].mxu0
        %v2562 = vadd.f32 %v879, %v2561
        %v2563 = vpop.f32.mrb[0].mxu0
        %v2564 = vadd.f32 %v883, %v2563
        %v2565 = vpop.f32.mrb[0].mxu0
        %v2566 = vadd.f32 %v879, %v2565
        %v2567 = vpop.f32.mrb[0].mxu0
        %v2568 = vadd.f32 %v883, %v2567
        %2569 = vmatprep.mubr.bf16.mxu0 %v645
        %2570 = vmatmul.mubr.bf16.gmra.mrb[0].mxu0 %v644
        %v2571 = vpop.f32.mrb[0].mxu0
        %v2572 = vadd.f32 %v879, %v2571
        %v2573 = vpop.f32.mrb[0].mxu0
        %v2574 = vadd.f32 %v883, %v2573
        %v2575 = vpop.f32.mrb[0].mxu0
        %v2576 = vadd.f32 %v879, %v2575
        %v2577 = vpop.f32.mrb[0].mxu0
        %v2578 = vadd.f32 %v883, %v2577
        %2579 = vmatprep.mubr.bf16.mxu0 %v651
        %2580 = vmatmul.mubr.bf16.gmra.mrb[0].mxu0 %v650
        %v2581 = vpop.f32.mrb[0].mxu0
        %v2582 = vadd.f32 %v879, %v2581
        %v2583 = vpop.f32.mrb[0].mxu0
        %v2584 = vadd.f32 %v883, %v2583
        %v2585 = vpop.f32.mrb[0].mxu0
        %v2586 = vadd.f32 %v879, %v2585
        %v2587 = vpop.f32.mrb[0].mxu0
        %v2588 = vadd.f32 %v883, %v2587
        %2589 = vmatprep.mubr.bf16.mxu0 %v657
        %2590 = vmatmul.mubr.bf16.gmra.mrb[0].mxu0 %v656
        %v2591 = vpop.f32.mrb[0].mxu0
        %v2592 = vadd.f32 %v879, %v2591
        %v2593 = vpop.f32.mrb[0].mxu0
        %v2594 = vadd.f32 %v883, %v2593
        %v2595 = vpop.f32.mrb[0].mxu0
        %v2596 = vadd.f32 %v879, %v2595
        %v2597 = vpop.f32.mrb[0].mxu0
        %v2598 = vadd.f32 %v883, %v2597
        %2599 = vmatprep.mubr.bf16.mxu0 %v663
        %2600 = vmatmul.mubr.bf16.gmra.mrb[0].mxu0 %v662
        %v2601 = vpop.f32.mrb[0].mxu0
        %v2602 = vadd.f32 %v879, %v2601
        %v2603 = vpop.f32.mrb[0].mxu0
        %v2604 = vadd.f32 %v883, %v2603
        %v2605 = vpop.f32.mrb[0].mxu0
        %v2606 = vadd.f32 %v879, %v2605
        %v2607 = vpop.f32.mrb[0].mxu0
        %v2608 = vadd.f32 %v883, %v2607
        %2609 = vmatprep.mubr.bf16.mxu0 %v669
        %2610 = vmatmul.mubr.bf16.gmra.mrb[0].mxu0 %v668
        %v2611 = vpop.f32.mrb[0].mxu0
        %v2612 = vadd.f32 %v879, %v2611
        %v2613 = vpop.f32.mrb[0].mxu0
        %v2614 = vadd.f32 %v883, %v2613
        %v2615 = vpop.f32.mrb[0].mxu0
        %v2616 = vadd.f32 %v879, %v2615
        %v2617 = vpop.f32.mrb[0].mxu0
        %v2618 = vadd.f32 %v883, %v2617
        %2619 = vdwg.mxu0
        %2620 = vmatprep.subr.bf16.mxu0 %v1531
        %2621 = vmatpush1.bf16.msra.mxu0 %v1530
        %2622 = vmatprep.subr.bf16.mxu0 %v1535
        %2623 = vmatpush1.bf16.msra.mxu0 %v1534
        %2624 = vmatprep.subr.bf16.mxu0 %v1539
        %2625 = vmatpush1.bf16.msra.mxu0 %v1538
        %2626 = vmatprep.subr.bf16.mxu0 %v1543
        %2627 = vmatpush1.bf16.msra.mxu0 %v1542
        %2628 = vmatprep.subr.bf16.mxu0 %v1547
        %2629 = vmatpush1.bf16.msra.mxu0 %v1546
        %2630 = vmatprep.subr.bf16.mxu0 %v1551
        %2631 = vmatpush1.bf16.msra.mxu0 %v1550
        %2632 = vmatprep.subr.bf16.mxu0 %v1555
        %2633 = vmatpush1.bf16.msra.mxu0 %v1554
        %2634 = vmatprep.subr.bf16.mxu0 %v1559
        %2635 = vmatpush1.bf16.msra.mxu0 %v1558
        %2636 = vmatprep.subr.bf16.mxu0 %v1563
        %2637 = vmatpush1.bf16.msra.mxu0 %v1562
        %2638 = vmatprep.subr.bf16.mxu0 %v1567
        %2639 = vmatpush1.bf16.msra.mxu0 %v1566
        %2640 = vmatprep.subr.bf16.mxu0 %v1571
        %2641 = vmatpush1.bf16.msra.mxu0 %v1570
        %2642 = vmatprep.subr.bf16.mxu0 %v1575
        %2643 = vmatpush1.bf16.msra.mxu0 %v1574
        %2644 = vmatprep.subr.bf16.mxu0 %v1579
        %2645 = vmatpush1.bf16.msra.mxu0 %v1578
        %2646 = vmatprep.subr.bf16.mxu0 %v1583
        %2647 = vmatpush1.bf16.msra.mxu0 %v1582
        %2648 = vmatprep.subr.bf16.mxu0 %v1587
        %2649 = vmatpush1.bf16.msra.mxu0 %v1586
        %2650 = vmatprep.subr.bf16.mxu0 %v1591
        %2651 = vmatpush1.bf16.msra.mxu0 %v1590
        %2652 = vmatprep.mubr.bf16.mxu0 %v581
        %2653 = vmatmul.mubr.bf16.gmra.mrb[0].mxu0 %v580
        %v2654 = vpop.f32.mrb[0].mxu0
        %v2655 = vadd.f32 %v2462, %v2654
        %v2656 = vpop.f32.mrb[0].mxu0
        %v2657 = vadd.f32 %v2464, %v2656
        %v2658 = vpop.f32.mrb[0].mxu0
        %v2659 = vadd.f32 %v2466, %v2658
        %v2660 = vpop.f32.mrb[0].mxu0
        %v2661 = vadd.f32 %v2468, %v2660
        %2662 = vmatprep.mubr.bf16.mxu0 %v587
        %2663 = vmatmul.mubr.bf16.gmra.mrb[0].mxu0 %v586
        %v2664 = vpop.f32.mrb[0].mxu0
        %v2665 = vadd.f32 %v2472, %v2664
        %v2666 = vpop.f32.mrb[0].mxu0
        %v2667 = vadd.f32 %v2474, %v2666
        %v2668 = vpop.f32.mrb[0].mxu0
        %v2669 = vadd.f32 %v2476, %v2668
        %v2670 = vpop.f32.mrb[0].mxu0
        %v2671 = vadd.f32 %v2478, %v2670
        %2672 = vmatprep.mubr.bf16.mxu0 %v593
        %2673 = vmatmul.mubr.bf16.gmra.mrb[0].mxu0 %v592
        %v2674 = vpop.f32.mrb[0].mxu0
        %v2675 = vadd.f32 %v2482, %v2674
        %v2676 = vpop.f32.mrb[0].mxu0
        %v2677 = vadd.f32 %v2484, %v2676
        %v2678 = vpop.f32.mrb[0].mxu0
        %v2679 = vadd.f32 %v2486, %v2678
        %v2680 = vpop.f32.mrb[0].mxu0
        %v2681 = vadd.f32 %v2488, %v2680
        %2682 = vmatprep.mubr.bf16.mxu0 %v599
        %2683 = vmatmul.mubr.bf16.gmra.mrb[0].mxu0 %v598
        %v2684 = vpop.f32.mrb[0].mxu0
        %v2685 = vadd.f32 %v2492, %v2684
        %v2686 = vpop.f32.mrb[0].mxu0
        %v2687 = vadd.f32 %v2494, %v2686
        %v2688 = vpop.f32.mrb[0].mxu0
        %v2689 = vadd.f32 %v2496, %v2688
        %v2690 = vpop.f32.mrb[0].mxu0
        %v2691 = vadd.f32 %v2498, %v2690
        %2692 = vmatprep.mubr.bf16.mxu0 %v605
        %2693 = vmatmul.mubr.bf16.gmra.mrb[0].mxu0 %v604
        %v2694 = vpop.f32.mrb[0].mxu0
        %v2695 = vadd.f32 %v2502, %v2694
        %v2696 = vpop.f32.mrb[0].mxu0
        %v2697 = vadd.f32 %v2504, %v2696
        %v2698 = vpop.f32.mrb[0].mxu0
        %v2699 = vadd.f32 %v2506, %v2698
        %v2700 = vpop.f32.mrb[0].mxu0
        %v2701 = vadd.f32 %v2508, %v2700
        %2702 = vmatprep.mubr.bf16.mxu0 %v611
        %2703 = vmatmul.mubr.bf16.gmra.mrb[0].mxu0 %v610
        %v2704 = vpop.f32.mrb[0].mxu0
        %v2705 = vadd.f32 %v2512, %v2704
        %v2706 = vpop.f32.mrb[0].mxu0
        %v2707 = vadd.f32 %v2514, %v2706
        %v2708 = vpop.f32.mrb[0].mxu0
        %v2709 = vadd.f32 %v2516, %v2708
        %v2710 = vpop.f32.mrb[0].mxu0
        %v2711 = vadd.f32 %v2518, %v2710
        %2712 = vmatprep.mubr.bf16.mxu0 %v617
        %2713 = vmatmul.mubr.bf16.gmra.mrb[0].mxu0 %v616
        %v2714 = vpop.f32.mrb[0].mxu0
        %v2715 = vadd.f32 %v2522, %v2714
        %v2716 = vpop.f32.mrb[0].mxu0
        %v2717 = vadd.f32 %v2524, %v2716
        %v2718 = vpop.f32.mrb[0].mxu0
        %v2719 = vadd.f32 %v2526, %v2718
        %v2720 = vpop.f32.mrb[0].mxu0
        %v2721 = vadd.f32 %v2528, %v2720
        %2722 = vmatprep.mubr.bf16.mxu0 %v623
        %2723 = vmatmul.mubr.bf16.gmra.mrb[0].mxu0 %v622
        %v2724 = vpop.f32.mrb[0].mxu0
        %v2725 = vadd.f32 %v2532, %v2724
        %v2726 = vpop.f32.mrb[0].mxu0
        %v2727 = vadd.f32 %v2534, %v2726
        %v2728 = vpop.f32.mrb[0].mxu0
        %v2729 = vadd.f32 %v2536, %v2728
        %v2730 = vpop.f32.mrb[0].mxu0
        %v2731 = vadd.f32 %v2538, %v2730
        %2732 = vmatprep.mubr.bf16.mxu0 %v629
        %2733 = vmatmul.mubr.bf16.gmra.mrb[0].mxu0 %v628
        %v2734 = vpop.f32.mrb[0].mxu0
        %v2735 = vadd.f32 %v2542, %v2734
        %v2736 = vpop.f32.mrb[0].mxu0
        %v2737 = vadd.f32 %v2544, %v2736
        %v2738 = vpop.f32.mrb[0].mxu0
        %v2739 = vadd.f32 %v2546, %v2738
        %v2740 = vpop.f32.mrb[0].mxu0
        %v2741 = vadd.f32 %v2548, %v2740
        %2742 = vmatprep.mubr.bf16.mxu0 %v635
        %2743 = vmatmul.mubr.bf16.gmra.mrb[0].mxu0 %v634
        %v2744 = vpop.f32.mrb[0].mxu0
        %v2745 = vadd.f32 %v2552, %v2744
        %v2746 = vpop.f32.mrb[0].mxu0
        %v2747 = vadd.f32 %v2554, %v2746
        %v2748 = vpop.f32.mrb[0].mxu0
        %v2749 = vadd.f32 %v2556, %v2748
        %v2750 = vpop.f32.mrb[0].mxu0
        %v2751 = vadd.f32 %v2558, %v2750
        %2752 = vmatprep.mubr.bf16.mxu0 %v641
        %2753 = vmatmul.mubr.bf16.gmra.mrb[0].mxu0 %v640
        %v2754 = vpop.f32.mrb[0].mxu0
        %v2755 = vadd.f32 %v2562, %v2754
        %v2756 = vpop.f32.mrb[0].mxu0
        %v2757 = vadd.f32 %v2564, %v2756
        %v2758 = vpop.f32.mrb[0].mxu0
        %v2759 = vadd.f32 %v2566, %v2758
        %v2760 = vpop.f32.mrb[0].mxu0
        %v2761 = vadd.f32 %v2568, %v2760
        %2762 = vmatprep.mubr.bf16.mxu0 %v647
        %2763 = vmatmul.mubr.bf16.gmra.mrb[0].mxu0 %v646
        %v2764 = vpop.f32.mrb[0].mxu0
        %v2765 = vadd.f32 %v2572, %v2764
        %v2766 = vpop.f32.mrb[0].mxu0
        %v2767 = vadd.f32 %v2574, %v2766
        %v2768 = vpop.f32.mrb[0].mxu0
        %v2769 = vadd.f32 %v2576, %v2768
        %v2770 = vpop.f32.mrb[0].mxu0
        %v2771 = vadd.f32 %v2578, %v2770
        %2772 = vmatprep.mubr.bf16.mxu0 %v653
        %2773 = vmatmul.mubr.bf16.gmra.mrb[0].mxu0 %v652
        %v2774 = vpop.f32.mrb[0].mxu0
        %v2775 = vadd.f32 %v2582, %v2774
        %v2776 = vpop.f32.mrb[0].mxu0
        %v2777 = vadd.f32 %v2584, %v2776
        %v2778 = vpop.f32.mrb[0].mxu0
        %v2779 = vadd.f32 %v2586, %v2778
        %v2780 = vpop.f32.mrb[0].mxu0
        %v2781 = vadd.f32 %v2588, %v2780
        %2782 = vmatprep.mubr.bf16.mxu0 %v659
        %2783 = vmatmul.mubr.bf16.gmra.mrb[0].mxu0 %v658
        %v2784 = vpop.f32.mrb[0].mxu0
        %v2785 = vadd.f32 %v2592, %v2784
        %v2786 = vpop.f32.mrb[0].mxu0
        %v2787 = vadd.f32 %v2594, %v2786
        %v2788 = vpop.f32.mrb[0].mxu0
        %v2789 = vadd.f32 %v2596, %v2788
        %v2790 = vpop.f32.mrb[0].mxu0
        %v2791 = vadd.f32 %v2598, %v2790
        %2792 = vmatprep.mubr.bf16.mxu0 %v665
        %2793 = vmatmul.mubr.bf16.gmra.mrb[0].mxu0 %v664
        %v2794 = vpop.f32.mrb[0].mxu0
        %v2795 = vadd.f32 %v2602, %v2794
        %v2796 = vpop.f32.mrb[0].mxu0
        %v2797 = vadd.f32 %v2604, %v2796
        %v2798 = vpop.f32.mrb[0].mxu0
        %v2799 = vadd.f32 %v2606, %v2798
        %v2800 = vpop.f32.mrb[0].mxu0
        %v2801 = vadd.f32 %v2608, %v2800
        %2802 = vmatprep.mubr.bf16.mxu0 %v671
        %2803 = vmatmul.mubr.bf16.gmra.mrb[0].mxu0 %v670
        %v2804 = vpop.f32.mrb[0].mxu0
        %v2805 = vadd.f32 %v2612, %v2804
        %v2806 = vpop.f32.mrb[0].mxu0
        %v2807 = vadd.f32 %v2614, %v2806
        %v2808 = vpop.f32.mrb[0].mxu0
        %v2809 = vadd.f32 %v2616, %v2808
        %v2810 = vpop.f32.mrb[0].mxu0
        %v2811 = vadd.f32 %v2618, %v2810
        %2812 = vdwg.mxu0
        %2813 = vmatprep.subr.bf16.mxu0 %v1595
        %2814 = vmatpush1.bf16.msra.mxu0 %v1594
        %2815 = vmatprep.subr.bf16.mxu0 %v1599
        %2816 = vmatpush1.bf16.msra.mxu0 %v1598
        %2817 = vmatprep.subr.bf16.mxu0 %v1603
        %2818 = vmatpush1.bf16.msra.mxu0 %v1602
        %2819 = vmatprep.subr.bf16.mxu0 %v1607
        %2820 = vmatpush1.bf16.msra.mxu0 %v1606
        %2821 = vmatprep.subr.bf16.mxu0 %v1611
        %2822 = vmatpush1.bf16.msra.mxu0 %v1610
        %2823 = vmatprep.subr.bf16.mxu0 %v1615
        %2824 = vmatpush1.bf16.msra.mxu0 %v1614
        %2825 = vmatprep.subr.bf16.mxu0 %v1619
        %2826 = vmatpush1.bf16.msra.mxu0 %v1618
        %2827 = vmatprep.subr.bf16.mxu0 %v1623
        %2828 = vmatpush1.bf16.msra.mxu0 %v1622
        %2829 = vmatprep.subr.bf16.mxu0 %v1627
        %2830 = vmatpush1.bf16.msra.mxu0 %v1626
        %2831 = vmatprep.subr.bf16.mxu0 %v1631
        %2832 = vmatpush1.bf16.msra.mxu0 %v1630
        %2833 = vmatprep.subr.bf16.mxu0 %v1635
        %2834 = vmatpush1.bf16.msra.mxu0 %v1634
        %2835 = vmatprep.subr.bf16.mxu0 %v1639
        %2836 = vmatpush1.bf16.msra.mxu0 %v1638
        %2837 = vmatprep.subr.bf16.mxu0 %v1643
        %2838 = vmatpush1.bf16.msra.mxu0 %v1642
        %2839 = vmatprep.subr.bf16.mxu0 %v1647
        %2840 = vmatpush1.bf16.msra.mxu0 %v1646
        %2841 = vmatprep.subr.bf16.mxu0 %v1651
        %2842 = vmatpush1.bf16.msra.mxu0 %v1650
        %2843 = vmatprep.subr.bf16.mxu0 %v1655
        %2844 = vmatpush1.bf16.msra.mxu0 %v1654
        %2845 = vmatprep.mubr.bf16.mxu0 %v583
        %2846 = vmatmul.mubr.bf16.gmra.mrb[0].mxu0 %v582
        %v2847 = vpop.f32.mrb[0].mxu0
        %v2848 = vadd.f32 %v2655, %v2847
        %v2849 = vpop.f32.mrb[0].mxu0
        %v2850 = vadd.f32 %v2657, %v2849
        %v2851 = vpop.f32.mrb[0].mxu0
        %v2852 = vadd.f32 %v2659, %v2851
        %v2853 = vpop.f32.mrb[0].mxu0
        %v2854 = vadd.f32 %v2661, %v2853
        %2855 = vmatprep.mubr.bf16.mxu0 %v589
        %2856 = vmatmul.mubr.bf16.gmra.mrb[0].mxu0 %v588
        %v2857 = vpop.f32.mrb[0].mxu0
        %v2858 = vadd.f32 %v2665, %v2857
        %v2859 = vpop.f32.mrb[0].mxu0
        %v2860 = vadd.f32 %v2667, %v2859
        %v2861 = vpop.f32.mrb[0].mxu0
        %v2862 = vadd.f32 %v2669, %v2861
        %v2863 = vpop.f32.mrb[0].mxu0
        %v2864 = vadd.f32 %v2671, %v2863
        %2865 = vmatprep.mubr.bf16.mxu0 %v595
        %2866 = vmatmul.mubr.bf16.gmra.mrb[0].mxu0 %v594
        %v2867 = vpop.f32.mrb[0].mxu0
        %v2868 = vadd.f32 %v2675, %v2867
        %v2869 = vpop.f32.mrb[0].mxu0
        %v2870 = vadd.f32 %v2677, %v2869
        %v2871 = vpop.f32.mrb[0].mxu0
        %v2872 = vadd.f32 %v2679, %v2871
        %v2873 = vpop.f32.mrb[0].mxu0
        %v2874 = vadd.f32 %v2681, %v2873
        %2875 = vmatprep.mubr.bf16.mxu0 %v601
        %2876 = vmatmul.mubr.bf16.gmra.mrb[0].mxu0 %v600
        %v2877 = vpop.f32.mrb[0].mxu0
        %v2878 = vadd.f32 %v2685, %v2877
        %v2879 = vpop.f32.mrb[0].mxu0
        %v2880 = vadd.f32 %v2687, %v2879
        %v2881 = vpop.f32.mrb[0].mxu0
        %v2882 = vadd.f32 %v2689, %v2881
        %v2883 = vpop.f32.mrb[0].mxu0
        %v2884 = vadd.f32 %v2691, %v2883
        %2885 = vmatprep.mubr.bf16.mxu0 %v607
        %2886 = vmatmul.mubr.bf16.gmra.mrb[0].mxu0 %v606
        %v2887 = vpop.f32.mrb[0].mxu0
        %v2888 = vadd.f32 %v2695, %v2887
        %v2889 = vpop.f32.mrb[0].mxu0
        %v2890 = vadd.f32 %v2697, %v2889
        %v2891 = vpop.f32.mrb[0].mxu0
        %v2892 = vadd.f32 %v2699, %v2891
        %v2893 = vpop.f32.mrb[0].mxu0
        %v2894 = vadd.f32 %v2701, %v2893
        %2895 = vmatprep.mubr.bf16.mxu0 %v613
        %2896 = vmatmul.mubr.bf16.gmra.mrb[0].mxu0 %v612
        %v2897 = vpop.f32.mrb[0].mxu0
        %v2898 = vadd.f32 %v2705, %v2897
        %v2899 = vpop.f32.mrb[0].mxu0
        %v2900 = vadd.f32 %v2707, %v2899
        %v2901 = vpop.f32.mrb[0].mxu0
        %v2902 = vadd.f32 %v2709, %v2901
        %v2903 = vpop.f32.mrb[0].mxu0
        %v2904 = vadd.f32 %v2711, %v2903
        %2905 = vmatprep.mubr.bf16.mxu0 %v619
        %2906 = vmatmul.mubr.bf16.gmra.mrb[0].mxu0 %v618
        %v2907 = vpop.f32.mrb[0].mxu0
        %v2908 = vadd.f32 %v2715, %v2907
        %v2909 = vpop.f32.mrb[0].mxu0
        %v2910 = vadd.f32 %v2717, %v2909
        %v2911 = vpop.f32.mrb[0].mxu0
        %v2912 = vadd.f32 %v2719, %v2911
        %v2913 = vpop.f32.mrb[0].mxu0
        %v2914 = vadd.f32 %v2721, %v2913
        %2915 = vmatprep.mubr.bf16.mxu0 %v625
        %2916 = vmatmul.mubr.bf16.gmra.mrb[0].mxu0 %v624
        %v2917 = vpop.f32.mrb[0].mxu0
        %v2918 = vadd.f32 %v2725, %v2917
        %v2919 = vpop.f32.mrb[0].mxu0
        %v2920 = vadd.f32 %v2727, %v2919
        %v2921 = vpop.f32.mrb[0].mxu0
        %v2922 = vadd.f32 %v2729, %v2921
        %v2923 = vpop.f32.mrb[0].mxu0
        %v2924 = vadd.f32 %v2731, %v2923
        %2925 = vmatprep.mubr.bf16.mxu0 %v631
        %2926 = vmatmul.mubr.bf16.gmra.mrb[0].mxu0 %v630
        %v2927 = vpop.f32.mrb[0].mxu0
        %v2928 = vadd.f32 %v2735, %v2927
        %v2929 = vpop.f32.mrb[0].mxu0
        %v2930 = vadd.f32 %v2737, %v2929
        %v2931 = vpop.f32.mrb[0].mxu0
        %v2932 = vadd.f32 %v2739, %v2931
        %v2933 = vpop.f32.mrb[0].mxu0
        %v2934 = vadd.f32 %v2741, %v2933
        %2935 = vmatprep.mubr.bf16.mxu0 %v637
        %2936 = vmatmul.mubr.bf16.gmra.mrb[0].mxu0 %v636
        %v2937 = vpop.f32.mrb[0].mxu0
        %v2938 = vadd.f32 %v2745, %v2937
        %v2939 = vpop.f32.mrb[0].mxu0
        %v2940 = vadd.f32 %v2747, %v2939
        %v2941 = vpop.f32.mrb[0].mxu0
        %v2942 = vadd.f32 %v2749, %v2941
        %v2943 = vpop.f32.mrb[0].mxu0
        %v2944 = vadd.f32 %v2751, %v2943
        %2945 = vmatprep.mubr.bf16.mxu0 %v643
        %2946 = vmatmul.mubr.bf16.gmra.mrb[0].mxu0 %v642
        %v2947 = vpop.f32.mrb[0].mxu0
        %v2948 = vadd.f32 %v2755, %v2947
        %v2949 = vpop.f32.mrb[0].mxu0
        %v2950 = vadd.f32 %v2757, %v2949
        %v2951 = vpop.f32.mrb[0].mxu0
        %v2952 = vadd.f32 %v2759, %v2951
        %v2953 = vpop.f32.mrb[0].mxu0
        %v2954 = vadd.f32 %v2761, %v2953
        %2955 = vmatprep.mubr.bf16.mxu0 %v649
        %2956 = vmatmul.mubr.bf16.gmra.mrb[0].mxu0 %v648
        %v2957 = vpop.f32.mrb[0].mxu0
        %v2958 = vadd.f32 %v2765, %v2957
        %v2959 = vpop.f32.mrb[0].mxu0
        %v2960 = vadd.f32 %v2767, %v2959
        %v2961 = vpop.f32.mrb[0].mxu0
        %v2962 = vadd.f32 %v2769, %v2961
        %v2963 = vpop.f32.mrb[0].mxu0
        %v2964 = vadd.f32 %v2771, %v2963
        %2965 = vmatprep.mubr.bf16.mxu0 %v655
        %2966 = vmatmul.mubr.bf16.gmra.mrb[0].mxu0 %v654
        %v2967 = vpop.f32.mrb[0].mxu0
        %v2968 = vadd.f32 %v2775, %v2967
        %v2969 = vpop.f32.mrb[0].mxu0
        %v2970 = vadd.f32 %v2777, %v2969
        %v2971 = vpop.f32.mrb[0].mxu0
        %v2972 = vadd.f32 %v2779, %v2971
        %v2973 = vpop.f32.mrb[0].mxu0
        %v2974 = vadd.f32 %v2781, %v2973
        %2975 = vmatprep.mubr.bf16.mxu0 %v661
        %2976 = vmatmul.mubr.bf16.gmra.mrb[0].mxu0 %v660
        %v2977 = vpop.f32.mrb[0].mxu0
        %v2978 = vadd.f32 %v2785, %v2977
        %v2979 = vpop.f32.mrb[0].mxu0
        %v2980 = vadd.f32 %v2787, %v2979
        %v2981 = vpop.f32.mrb[0].mxu0
        %v2982 = vadd.f32 %v2789, %v2981
        %v2983 = vpop.f32.mrb[0].mxu0
        %v2984 = vadd.f32 %v2791, %v2983
        %2985 = vmatprep.mubr.bf16.mxu0 %v667
        %2986 = vmatmul.mubr.bf16.gmra.mrb[0].mxu0 %v666
        %v2987 = vpop.f32.mrb[0].mxu0
        %v2988 = vadd.f32 %v2795, %v2987
        %v2989 = vpop.f32.mrb[0].mxu0
        %v2990 = vadd.f32 %v2797, %v2989
        %v2991 = vpop.f32.mrb[0].mxu0
        %v2992 = vadd.f32 %v2799, %v2991
        %v2993 = vpop.f32.mrb[0].mxu0
        %v2994 = vadd.f32 %v2801, %v2993
        %2995 = vmatprep.mubr.bf16.mxu0 %v673
        %2996 = vmatmul.mubr.bf16.gmra.mrb[0].mxu0 %v672
        %v2997 = vpop.f32.mrb[0].mxu0
        %v2998 = vadd.f32 %v2805, %v2997
        %v2999 = vpop.f32.mrb[0].mxu0
        %v3000 = vadd.f32 %v2807, %v2999
        %v3001 = vpop.f32.mrb[0].mxu0
        %v3002 = vadd.f32 %v2809, %v3001
        %v3003 = vpop.f32.mrb[0].mxu0
        %v3004 = vadd.f32 %v2811, %v3003
        %3005 = vdwg.mxu0
        %3006 = vst [vmem:[%s359] sm:$0xff] %v2269
        %3007 = vst [vmem:[%s359 + $0x8] sm:$0xff] %v2271
        %3008 = vst [vmem:[%s359 + $0x10] sm:$0xff] %v2848
        %3009 = vst [vmem:[%s359 + $0x18] sm:$0xff] %v2850
        %3010 = vst [vmem:[%s359 + $0x30] sm:$0xff] %v2273
        %3011 = vst [vmem:[%s359 + $0x38] sm:$0xff] %v2275
        %3012 = vst [vmem:[%s359 + $0x40] sm:$0xff] %v2852
        %3013 = vst [vmem:[%s359 + $0x48] sm:$0xff] %v2854
        %3014 = vst [vmem:[%s359 + $0x60] sm:$0xff] %v2279
        %3015 = vst [vmem:[%s359 + $0x68] sm:$0xff] %v2281
        %3016 = vst [vmem:[%s359 + $0x70] sm:$0xff] %v2858
        %3017 = vst [vmem:[%s359 + $0x78] sm:$0xff] %v2860
        %3018 = vst [vmem:[%s359 + $0x90] sm:$0xff] %v2283
        %3019 = vst [vmem:[%s359 + $0x98] sm:$0xff] %v2285
        %3020 = vst [vmem:[%s359 + $0xa0] sm:$0xff] %v2862
        %3021 = vst [vmem:[%s359 + $0xa8] sm:$0xff] %v2864
        %3022 = vst [vmem:[%s359 + $0xc0] sm:$0xff] %v2289
        %3023 = vst [vmem:[%s359 + $0xc8] sm:$0xff] %v2291
        %3024 = vst [vmem:[%s359 + $0xd0] sm:$0xff] %v2868
        %3025 = vst [vmem:[%s359 + $0xd8] sm:$0xff] %v2870
        %3026 = vst [vmem:[%s359 + $0xf0] sm:$0xff] %v2293
        %3027 = vst [vmem:[%s359 + $0xf8] sm:$0xff] %v2295
        %3028 = vst [vmem:[%s359 + $0x100] sm:$0xff] %v2872
        %3029 = vst [vmem:[%s359 + $0x108] sm:$0xff] %v2874
        %3030 = vst [vmem:[%s359 + $0x120] sm:$0xff] %v2299
        %3031 = vst [vmem:[%s359 + $0x128] sm:$0xff] %v2301
        %3032 = vst [vmem:[%s359 + $0x130] sm:$0xff] %v2878
        %3033 = vst [vmem:[%s359 + $0x138] sm:$0xff] %v2880
        %3034 = vst [vmem:[%s359 + $0x150] sm:$0xff] %v2303
        %3035 = vst [vmem:[%s359 + $0x158] sm:$0xff] %v2305
        %3036 = vst [vmem:[%s359 + $0x160] sm:$0xff] %v2882
        %3037 = vst [vmem:[%s359 + $0x168] sm:$0xff] %v2884
        %3038 = vst [vmem:[%s359 + $0x180] sm:$0xff] %v2309
        %3039 = vst [vmem:[%s359 + $0x188] sm:$0xff] %v2311
        %3040 = vst [vmem:[%s359 + $0x190] sm:$0xff] %v2888
        %3041 = vst [vmem:[%s359 + $0x198] sm:$0xff] %v2890
        %3042 = vst [vmem:[%s359 + $0x1b0] sm:$0xff] %v2313
        %3043 = vst [vmem:[%s359 + $0x1b8] sm:$0xff] %v2315
        %3044 = vst [vmem:[%s359 + $0x1c0] sm:$0xff] %v2892
        %3045 = vst [vmem:[%s359 + $0x1c8] sm:$0xff] %v2894
        %3046 = vst [vmem:[%s359 + $0x1e0] sm:$0xff] %v2319
        %3047 = vst [vmem:[%s359 + $0x1e8] sm:$0xff] %v2321
        %3048 = vst [vmem:[%s359 + $0x1f0] sm:$0xff] %v2898
        %3049 = vst [vmem:[%s359 + $0x1f8] sm:$0xff] %v2900
        %3050 = vst [vmem:[%s359 + $0x210] sm:$0xff] %v2323
        %3051 = vst [vmem:[%s359 + $0x218] sm:$0xff] %v2325
        %3052 = vst [vmem:[%s359 + $0x220] sm:$0xff] %v2902
        %3053 = vst [vmem:[%s359 + $0x228] sm:$0xff] %v2904
        %3054 = vst [vmem:[%s359 + $0x240] sm:$0xff] %v2329
        %3055 = vst [vmem:[%s359 + $0x248] sm:$0xff] %v2331
        %3056 = vst [vmem:[%s359 + $0x250] sm:$0xff] %v2908
        %3057 = vst [vmem:[%s359 + $0x258] sm:$0xff] %v2910
        %3058 = vst [vmem:[%s359 + $0x270] sm:$0xff] %v2333
        %3059 = vst [vmem:[%s359 + $0x278] sm:$0xff] %v2335
        %3060 = vst [vmem:[%s359 + $0x280] sm:$0xff] %v2912
        %3061 = vst [vmem:[%s359 + $0x288] sm:$0xff] %v2914
        %3062 = vst [vmem:[%s359 + $0x2a0] sm:$0xff] %v2339
        %3063 = vst [vmem:[%s359 + $0x2a8] sm:$0xff] %v2341
        %3064 = vst [vmem:[%s359 + $0x2b0] sm:$0xff] %v2918
        %3065 = vst [vmem:[%s359 + $0x2b8] sm:$0xff] %v2920
        %3066 = vst [vmem:[%s359 + $0x2d0] sm:$0xff] %v2343
        %3067 = vst [vmem:[%s359 + $0x2d8] sm:$0xff] %v2345
        %3068 = vst [vmem:[%s359 + $0x2e0] sm:$0xff] %v2922
        %3069 = vst [vmem:[%s359 + $0x2e8] sm:$0xff] %v2924
        %3070 = vst [vmem:[%s359 + $0x300] sm:$0xff] %v2349
        %3071 = vst [vmem:[%s359 + $0x308] sm:$0xff] %v2351
        %3072 = vst [vmem:[%s359 + $0x310] sm:$0xff] %v2928
        %3073 = vst [vmem:[%s359 + $0x318] sm:$0xff] %v2930
        %3074 = vst [vmem:[%s359 + $0x330] sm:$0xff] %v2353
        %3075 = vst [vmem:[%s359 + $0x338] sm:$0xff] %v2355
        %3076 = vst [vmem:[%s359 + $0x340] sm:$0xff] %v2932
        %3077 = vst [vmem:[%s359 + $0x348] sm:$0xff] %v2934
        %3078 = vst [vmem:[%s359 + $0x360] sm:$0xff] %v2359
        %3079 = vst [vmem:[%s359 + $0x368] sm:$0xff] %v2361
        %3080 = vst [vmem:[%s359 + $0x370] sm:$0xff] %v2938
        %3081 = vst [vmem:[%s359 + $0x378] sm:$0xff] %v2940
        %3082 = vst [vmem:[%s359 + $0x390] sm:$0xff] %v2363
        %3083 = vst [vmem:[%s359 + $0x398] sm:$0xff] %v2365
        %3084 = vst [vmem:[%s359 + $0x3a0] sm:$0xff] %v2942
        %3085 = vst [vmem:[%s359 + $0x3a8] sm:$0xff] %v2944
        %3086 = vst [vmem:[%s359 + $0x3c0] sm:$0xff] %v2369
        %3087 = vst [vmem:[%s359 + $0x3c8] sm:$0xff] %v2371
        %3088 = vst [vmem:[%s359 + $0x3d0] sm:$0xff] %v2948
        %3089 = vst [vmem:[%s359 + $0x3d8] sm:$0xff] %v2950
        %3090 = vst [vmem:[%s359 + $0x3f0] sm:$0xff] %v2373
        %3091 = vst [vmem:[%s359 + $0x3f8] sm:$0xff] %v2375
        %3092 = vst [vmem:[%s359 + $0x400] sm:$0xff] %v2952
        %3093 = vst [vmem:[%s359 + $0x408] sm:$0xff] %v2954
        %3094 = vst [vmem:[%s359 + $0x420] sm:$0xff] %v2379
        %3095 = vst [vmem:[%s359 + $0x428] sm:$0xff] %v2381
        %3096 = vst [vmem:[%s359 + $0x430] sm:$0xff] %v2958
        %3097 = vst [vmem:[%s359 + $0x438] sm:$0xff] %v2960
        %3098 = vst [vmem:[%s359 + $0x450] sm:$0xff] %v2383
        %3099 = vst [vmem:[%s359 + $0x458] sm:$0xff] %v2385
        %3100 = vst [vmem:[%s359 + $0x460] sm:$0xff] %v2962
        %3101 = vst [vmem:[%s359 + $0x468] sm:$0xff] %v2964
        %3102 = vst [vmem:[%s359 + $0x480] sm:$0xff] %v2389
        %3103 = vst [vmem:[%s359 + $0x488] sm:$0xff] %v2391
        %3104 = vst [vmem:[%s359 + $0x490] sm:$0xff] %v2968
        %3105 = vst [vmem:[%s359 + $0x498] sm:$0xff] %v2970
        %3106 = vst [vmem:[%s359 + $0x4b0] sm:$0xff] %v2393
        %3107 = vst [vmem:[%s359 + $0x4b8] sm:$0xff] %v2395
        %3108 = vst [vmem:[%s359 + $0x4c0] sm:$0xff] %v2972
        %3109 = vst [vmem:[%s359 + $0x4c8] sm:$0xff] %v2974
        %3110 = vst [vmem:[%s359 + $0x4e0] sm:$0xff] %v2399
        %3111 = vst [vmem:[%s359 + $0x4e8] sm:$0xff] %v2401
        %3112 = vst [vmem:[%s359 + $0x4f0] sm:$0xff] %v2978
        %3113 = vst [vmem:[%s359 + $0x4f8] sm:$0xff] %v2980
        %3114 = vst [vmem:[%s359 + $0x510] sm:$0xff] %v2403
        %3115 = vst [vmem:[%s359 + $0x518] sm:$0xff] %v2405
        %3116 = vst [vmem:[%s359 + $0x520] sm:$0xff] %v2982
        %3117 = vst [vmem:[%s359 + $0x528] sm:$0xff] %v2984
        %3118 = vst [vmem:[%s359 + $0x540] sm:$0xff] %v2409
        %3119 = vst [vmem:[%s359 + $0x548] sm:$0xff] %v2411
        %3120 = vst [vmem:[%s359 + $0x550] sm:$0xff] %v2988
        %3121 = vst [vmem:[%s359 + $0x558] sm:$0xff] %v2990
        %3122 = vst [vmem:[%s359 + $0x570] sm:$0xff] %v2413
        %3123 = vst [vmem:[%s359 + $0x578] sm:$0xff] %v2415
        %3124 = vst [vmem:[%s359 + $0x580] sm:$0xff] %v2992
        %3125 = vst [vmem:[%s359 + $0x588] sm:$0xff] %v2994
        %3126 = vst [vmem:[%s359 + $0x5a0] sm:$0xff] %v2419
        %3127 = vst [vmem:[%s359 + $0x5a8] sm:$0xff] %v2421
        %3128 = vst [vmem:[%s359 + $0x5b0] sm:$0xff] %v2998
        %3129 = vst [vmem:[%s359 + $0x5b8] sm:$0xff] %v3000
        %3130 = vst [vmem:[%s359 + $0x5d0] sm:$0xff] %v2423
        %3131 = vst [vmem:[%s359 + $0x5d8] sm:$0xff] %v2425
        %3132 = vst [vmem:[%s359 + $0x5e0] sm:$0xff] %v3002
        %3133 = vst [vmem:[%s359 + $0x5e8] sm:$0xff] %v3004
        %v3134 = vld [vmem:[%s374] sm:$0xff]
        %v3135 = vld [vmem:[%s374 + $0x8] sm:$0xff]
        %v3136 = vld [vmem:[%s374 + $0x10] sm:$0xff]
        %v3137 = vld [vmem:[%s374 + $0x18] sm:$0xff]
        %v3138 = vld [vmem:[%s374 + $0x20] sm:$0xff]
        %v3139 = vld [vmem:[%s374 + $0x28] sm:$0xff]
        %v3140 = vld [vmem:[%s374 + $0x30] sm:$0xff]
        %v3141 = vld [vmem:[%s374 + $0x38] sm:$0xff]
        %v3142 = vld [vmem:[%s374 + $0x40] sm:$0xff]
        %v3143 = vld [vmem:[%s374 + $0x48] sm:$0xff]
        %v3144 = vld [vmem:[%s374 + $0x50] sm:$0xff]
        %v3145 = vld [vmem:[%s374 + $0x58] sm:$0xff]
        %v3146 = vld [vmem:[%s374 + $0x60] sm:$0xff]
        %v3147 = vld [vmem:[%s374 + $0x68] sm:$0xff]
        %v3148 = vld [vmem:[%s374 + $0x70] sm:$0xff]
        %v3149 = vld [vmem:[%s374 + $0x78] sm:$0xff]
        %v3150 = vld [vmem:[%s374 + $0x80] sm:$0xff]
        %v3151 = vld [vmem:[%s374 + $0x88] sm:$0xff]
        %v3152 = vld [vmem:[%s374 + $0x90] sm:$0xff]
        %v3153 = vld [vmem:[%s374 + $0x98] sm:$0xff]
        %v3154 = vld [vmem:[%s374 + $0xa0] sm:$0xff]
        %v3155 = vld [vmem:[%s374 + $0xa8] sm:$0xff]
        %v3156 = vld [vmem:[%s374 + $0xb0] sm:$0xff]
        %v3157 = vld [vmem:[%s374 + $0xb8] sm:$0xff]
        %v3158 = vld [vmem:[%s374 + $0xc0] sm:$0xff]
        %v3159 = vld [vmem:[%s374 + $0xc8] sm:$0xff]
        %v3160 = vld [vmem:[%s374 + $0xd0] sm:$0xff]
        %v3161 = vld [vmem:[%s374 + $0xd8] sm:$0xff]
        %v3162 = vld [vmem:[%s374 + $0xe0] sm:$0xff]
        %v3163 = vld [vmem:[%s374 + $0xe8] sm:$0xff]
        %v3164 = vld [vmem:[%s374 + $0xf0] sm:$0xff]
        %v3165 = vld [vmem:[%s374 + $0xf8] sm:$0xff]
        %v3166 = vlaneseq
        %v3167 = vand.u32 %v3166, 127
        %3168 = vset.pattern.permute.xlu0 0
        %3169 = vperm.xlu0 %3168, %v3134
        %v3170 = vpop.permute.xlu0 %3169
        %3171 = vset.pattern.permute.xlu0 0
        %3172 = vperm.xlu0 %3171, %v3135
        %v3173 = vpop.permute.xlu0 %3172
        %3174 = vset.pattern.permute.xlu0 0
        %3175 = vperm.xlu0 %3174, %v3136
        %v3176 = vpop.permute.xlu0 %3175
        %3177 = vset.pattern.permute.xlu0 0
        %3178 = vperm.xlu0 %3177, %v3137
        %v3179 = vpop.permute.xlu0 %3178
        %3180 = vset.pattern.permute.xlu0 0
        %3181 = vperm.xlu0 %3180, %v3138
        %v3182 = vpop.permute.xlu0 %3181
        %3183 = vset.pattern.permute.xlu0 0
        %3184 = vperm.xlu0 %3183, %v3139
        %v3185 = vpop.permute.xlu0 %3184
        %3186 = vset.pattern.permute.xlu0 0
        %3187 = vperm.xlu0 %3186, %v3140
        %v3188 = vpop.permute.xlu0 %3187
        %3189 = vset.pattern.permute.xlu0 0
        %3190 = vperm.xlu0 %3189, %v3141
        %v3191 = vpop.permute.xlu0 %3190
        %3192 = vset.pattern.permute.xlu0 0
        %3193 = vperm.xlu0 %3192, %v3142
        %v3194 = vpop.permute.xlu0 %3193
        %3195 = vset.pattern.permute.xlu0 0
        %3196 = vperm.xlu0 %3195, %v3143
        %v3197 = vpop.permute.xlu0 %3196
        %3198 = vset.pattern.permute.xlu0 0
        %3199 = vperm.xlu0 %3198, %v3144
        %v3200 = vpop.permute.xlu0 %3199
        %3201 = vset.pattern.permute.xlu0 0
        %3202 = vperm.xlu0 %3201, %v3145
        %v3203 = vpop.permute.xlu0 %3202
        %3204 = vset.pattern.permute.xlu0 0
        %3205 = vperm.xlu0 %3204, %v3146
        %v3206 = vpop.permute.xlu0 %3205
        %3207 = vset.pattern.permute.xlu0 0
        %3208 = vperm.xlu0 %3207, %v3147
        %v3209 = vpop.permute.xlu0 %3208
        %3210 = vset.pattern.permute.xlu0 0
        %3211 = vperm.xlu0 %3210, %v3148
        %v3212 = vpop.permute.xlu0 %3211
        %3213 = vset.pattern.permute.xlu0 0
        %3214 = vperm.xlu0 %3213, %v3149
        %v3215 = vpop.permute.xlu0 %3214
        %3216 = vset.pattern.permute.xlu0 0
        %3217 = vperm.xlu0 %3216, %v3150
        %v3218 = vpop.permute.xlu0 %3217
        %3219 = vset.pattern.permute.xlu0 0
        %3220 = vperm.xlu0 %3219, %v3151
        %v3221 = vpop.permute.xlu0 %3220
        %3222 = vset.pattern.permute.xlu0 0
        %3223 = vperm.xlu0 %3222, %v3152
        %v3224 = vpop.permute.xlu0 %3223
        %3225 = vset.pattern.permute.xlu0 0
        %3226 = vperm.xlu0 %3225, %v3153
        %v3227 = vpop.permute.xlu0 %3226
        %3228 = vset.pattern.permute.xlu0 0
        %3229 = vperm.xlu0 %3228, %v3154
        %v3230 = vpop.permute.xlu0 %3229
        %3231 = vset.pattern.permute.xlu0 0
        %3232 = vperm.xlu0 %3231, %v3155
        %v3233 = vpop.permute.xlu0 %3232
        %3234 = vset.pattern.permute.xlu0 0
        %3235 = vperm.xlu0 %3234, %v3156
        %v3236 = vpop.permute.xlu0 %3235
        %3237 = vset.pattern.permute.xlu0 0
        %3238 = vperm.xlu0 %3237, %v3157
        %v3239 = vpop.permute.xlu0 %3238
        %3240 = vset.pattern.permute.xlu0 0
        %3241 = vperm.xlu0 %3240, %v3158
        %v3242 = vpop.permute.xlu0 %3241
        %3243 = vset.pattern.permute.xlu0 0
        %3244 = vperm.xlu0 %3243, %v3159
        %v3245 = vpop.permute.xlu0 %3244
        %3246 = vset.pattern.permute.xlu0 0
        %3247 = vperm.xlu0 %3246, %v3160
        %v3248 = vpop.permute.xlu0 %3247
        %3249 = vset.pattern.permute.xlu0 0
        %3250 = vperm.xlu0 %3249, %v3161
        %v3251 = vpop.permute.xlu0 %3250
        %3252 = vset.pattern.permute.xlu0 0
        %3253 = vperm.xlu0 %3252, %v3162
        %v3254 = vpop.permute.xlu0 %3253
        %3255 = vset.pattern.permute.xlu0 0
        %3256 = vperm.xlu0 %3255, %v3163
        %v3257 = vpop.permute.xlu0 %3256
        %3258 = vset.pattern.permute.xlu0 0
        %3259 = vperm.xlu0 %3258, %v3164
        %v3260 = vpop.permute.xlu0 %3259
        %3261 = vset.pattern.permute.xlu0 0
        %3262 = vperm.xlu0 %3261, %v3165
        %v3263 = vpop.permute.xlu0 %3262
        %vm3264 = vcmp.eq.s32.totalorder %v3170, %v3167
        %vm3265 = vcmp.eq.s32.totalorder %v3173, %v3167
        %vm3266 = vcmp.eq.s32.totalorder %v3176, %v3167
        %vm3267 = vcmp.eq.s32.totalorder %v3179, %v3167
        %vm3268 = vcmp.eq.s32.totalorder %v3182, %v3167
        %vm3269 = vcmp.eq.s32.totalorder %v3185, %v3167
        %vm3270 = vcmp.eq.s32.totalorder %v3188, %v3167
        %vm3271 = vcmp.eq.s32.totalorder %v3191, %v3167
        %vm3272 = vcmp.eq.s32.totalorder %v3194, %v3167
        %vm3273 = vcmp.eq.s32.totalorder %v3197, %v3167
        %vm3274 = vcmp.eq.s32.totalorder %v3200, %v3167
        %vm3275 = vcmp.eq.s32.totalorder %v3203, %v3167
        %vm3276 = vcmp.eq.s32.totalorder %v3206, %v3167
        %vm3277 = vcmp.eq.s32.totalorder %v3209, %v3167
        %vm3278 = vcmp.eq.s32.totalorder %v3212, %v3167
        %vm3279 = vcmp.eq.s32.totalorder %v3215, %v3167
        %vm3280 = vcmp.eq.s32.totalorder %v3218, %v3167
        %vm3281 = vcmp.eq.s32.totalorder %v3221, %v3167
        %vm3282 = vcmp.eq.s32.totalorder %v3224, %v3167
        %vm3283 = vcmp.eq.s32.totalorder %v3227, %v3167
        %vm3284 = vcmp.eq.s32.totalorder %v3230, %v3167
        %vm3285 = vcmp.eq.s32.totalorder %v3233, %v3167
        %vm3286 = vcmp.eq.s32.totalorder %v3236, %v3167
        %vm3287 = vcmp.eq.s32.totalorder %v3239, %v3167
        %vm3288 = vcmp.eq.s32.totalorder %v3242, %v3167
        %vm3289 = vcmp.eq.s32.totalorder %v3245, %v3167
        %vm3290 = vcmp.eq.s32.totalorder %v3248, %v3167
        %vm3291 = vcmp.eq.s32.totalorder %v3251, %v3167
        %vm3292 = vcmp.eq.s32.totalorder %v3254, %v3167
        %vm3293 = vcmp.eq.s32.totalorder %v3257, %v3167
        %vm3294 = vcmp.eq.s32.totalorder %v3260, %v3167
        %vm3295 = vcmp.eq.s32.totalorder %v3263, %v3167
        %v3296 = vsel %vm3264, 1, 0
        %v3297 = vsel %vm3265, 1, 0
        %v3298 = vsel %vm3266, 1, 0
        %v3299 = vsel %vm3267, 1, 0
        %v3300 = vsel %vm3268, 1, 0
        %v3301 = vsel %vm3269, 1, 0
        %v3302 = vsel %vm3270, 1, 0
        %v3303 = vsel %vm3271, 1, 0
        %v3304 = vsel %vm3272, 1, 0
        %v3305 = vsel %vm3273, 1, 0
        %v3306 = vsel %vm3274, 1, 0
        %v3307 = vsel %vm3275, 1, 0
        %v3308 = vsel %vm3276, 1, 0
        %v3309 = vsel %vm3277, 1, 0
        %v3310 = vsel %vm3278, 1, 0
        %v3311 = vsel %vm3279, 1, 0
        %v3312 = vsel %vm3280, 1, 0
        %v3313 = vsel %vm3281, 1, 0
        %v3314 = vsel %vm3282, 1, 0
        %v3315 = vsel %vm3283, 1, 0
        %v3316 = vsel %vm3284, 1, 0
        %v3317 = vsel %vm3285, 1, 0
        %v3318 = vsel %vm3286, 1, 0
        %v3319 = vsel %vm3287, 1, 0
        %v3320 = vsel %vm3288, 1, 0
        %v3321 = vsel %vm3289, 1, 0
        %v3322 = vsel %vm3290, 1, 0
        %v3323 = vsel %vm3291, 1, 0
        %v3324 = vsel %vm3292, 1, 0
        %v3325 = vsel %vm3293, 1, 0
        %v3326 = vsel %vm3294, 1, 0
        %v3327 = vsel %vm3295, 1, 0
        %v3328 = vcvt.s32.f32 %v3296
        %v3329 = vcvt.s32.f32 %v3297
        %v3330 = vcvt.s32.f32 %v3298
        %v3331 = vcvt.s32.f32 %v3299
        %v3332 = vcvt.s32.f32 %v3300
        %v3333 = vcvt.s32.f32 %v3301
        %v3334 = vcvt.s32.f32 %v3302
        %v3335 = vcvt.s32.f32 %v3303
        %v3336 = vcvt.s32.f32 %v3304
        %v3337 = vcvt.s32.f32 %v3305
        %v3338 = vcvt.s32.f32 %v3306
        %v3339 = vcvt.s32.f32 %v3307
        %v3340 = vcvt.s32.f32 %v3308
        %v3341 = vcvt.s32.f32 %v3309
        %v3342 = vcvt.s32.f32 %v3310
        %v3343 = vcvt.s32.f32 %v3311
        %v3344 = vcvt.s32.f32 %v3312
        %v3345 = vcvt.s32.f32 %v3313
        %v3346 = vcvt.s32.f32 %v3314
        %v3347 = vcvt.s32.f32 %v3315
        %v3348 = vcvt.s32.f32 %v3316
        %v3349 = vcvt.s32.f32 %v3317
        %v3350 = vcvt.s32.f32 %v3318
        %v3351 = vcvt.s32.f32 %v3319
        %v3352 = vcvt.s32.f32 %v3320
        %v3353 = vcvt.s32.f32 %v3321
        %v3354 = vcvt.s32.f32 %v3322
        %v3355 = vcvt.s32.f32 %v3323
        %v3356 = vcvt.s32.f32 %v3324
        %v3357 = vcvt.s32.f32 %v3325
        %v3358 = vcvt.s32.f32 %v3326
        %v3359 = vcvt.s32.f32 %v3327
        %v3360 = vld [vmem:[#allocation8] sm:$0xff]
        %v3361 = vld [vmem:[#allocation8 + $0x8] sm:$0xff]
        %vm3362 = vcmask 130048
        %v3364 = vsel %vm3362, %v3328, 0
        %v3367 = vsel %vm3362, %v3329, 0
        %v3370 = vsel %vm3362, %v3330, 0
        %v3373 = vsel %vm3362, %v3331, 0
        %v3376 = vsel %vm3362, %v3332, 0
        %v3379 = vsel %vm3362, %v3333, 0
        %v3382 = vsel %vm3362, %v3334, 0
        %v3385 = vsel %vm3362, %v3335, 0
        %v3388 = vsel %vm3362, %v3336, 0
        %v3391 = vsel %vm3362, %v3337, 0
        %v3394 = vsel %vm3362, %v3338, 0
        %v3397 = vsel %vm3362, %v3339, 0
        %v3400 = vsel %vm3362, %v3340, 0
        %v3403 = vsel %vm3362, %v3341, 0
        %v3406 = vsel %vm3362, %v3342, 0
        %v3409 = vsel %vm3362, %v3343, 0
        %v3412 = vsel %vm3362, %v3344, 0
        %v3415 = vsel %vm3362, %v3345, 0
        %v3418 = vsel %vm3362, %v3346, 0
        %v3421 = vsel %vm3362, %v3347, 0
        %v3424 = vsel %vm3362, %v3348, 0
        %v3427 = vsel %vm3362, %v3349, 0
        %v3430 = vsel %vm3362, %v3350, 0
        %v3433 = vsel %vm3362, %v3351, 0
        %v3436 = vsel %vm3362, %v3352, 0
        %v3439 = vsel %vm3362, %v3353, 0
        %v3442 = vsel %vm3362, %v3354, 0
        %v3445 = vsel %vm3362, %v3355, 0
        %v3448 = vsel %vm3362, %v3356, 0
        %v3451 = vsel %vm3362, %v3357, 0
        %v3454 = vsel %vm3362, %v3358, 0
        %v3457 = vsel %vm3362, %v3359, 0
        %3459 = vmatprep.subr.mxu0 0.0
        %3460 = vmatpush1.msra.mxu0 %v3360
        %3461 = vmatprep.subr.mxu0 0.0
        %3462 = vmatpush1.msra.mxu0 %v3361
        %3463 = vmatprep.subr.mxu0 0.0
        %3464 = vmatpush1.msra.mxu0 0.0
        %3465 = vmatprep.subr.mxu0 0.0
        %3466 = vmatpush1.msra.mxu0 0.0
        %3467 = vmatprep.subr.mxu0 0.0
        %3468 = vmatpush1.msra.mxu0 0.0
        %3469 = vmatprep.subr.mxu0 0.0
        %3470 = vmatpush1.msra.mxu0 0.0
        %3471 = vmatprep.subr.mxu0 0.0
        %3472 = vmatpush1.msra.mxu0 0.0
        %3473 = vmatprep.subr.mxu0 0.0
        %3474 = vmatpush1.msra.mxu0 0.0
        %3475 = vmatprep.subr.mxu0 0.0
        %3476 = vmatpush1.msra.mxu0 0.0
        %3477 = vmatprep.subr.mxu0 0.0
        %3478 = vmatpush1.msra.mxu0 0.0
        %3479 = vmatprep.subr.mxu0 0.0
        %3480 = vmatpush1.msra.mxu0 0.0
        %3481 = vmatprep.subr.mxu0 0.0
        %3482 = vmatpush1.msra.mxu0 0.0
        %3483 = vmatprep.subr.mxu0 0.0
        %3484 = vmatpush1.msra.mxu0 0.0
        %3485 = vmatprep.subr.mxu0 0.0
        %3486 = vmatpush1.msra.mxu0 0.0
        %3487 = vmatprep.subr.mxu0 0.0
        %3488 = vmatpush1.msra.mxu0 0.0
        %3489 = vmatprep.subr.mxu0 0.0
        %3490 = vmatpush1.msra.mxu0 0.0
        %3491 = vmatprep.subr.mxu0 0.0
        %3492 = vmatpush1.msra.mxu0 0.0
        %3493 = vmatprep.subr.mxu0 0.0
        %3494 = vmatpush1.msra.mxu0 0.0
        %3495 = vmatprep.subr.mxu0 0.0
        %3496 = vmatpush1.msra.mxu0 0.0
        %3497 = vmatprep.subr.mxu0 0.0
        %3498 = vmatpush1.msra.mxu0 0.0
        %3499 = vmatprep.subr.mxu0 0.0
        %3500 = vmatpush1.msra.mxu0 0.0
        %3501 = vmatprep.subr.mxu0 0.0
        %3502 = vmatpush1.msra.mxu0 0.0
        %3503 = vmatprep.subr.mxu0 0.0
        %3504 = vmatpush1.msra.mxu0 0.0
        %3505 = vmatprep.subr.mxu0 0.0
        %3506 = vmatpush1.msra.mxu0 0.0
        %3507 = vmatprep.subr.mxu0 0.0
        %3508 = vmatpush1.msra.mxu0 0.0
        %3509 = vmatprep.subr.mxu0 0.0
        %3510 = vmatpush1.msra.mxu0 0.0
        %3511 = vmatprep.subr.mxu0 0.0
        %3512 = vmatpush1.msra.mxu0 0.0
        %3513 = vmatprep.subr.mxu0 0.0
        %3514 = vmatpush1.msra.mxu0 0.0
        %3515 = vmatprep.subr.mxu0 0.0
        %3516 = vmatpush1.msra.mxu0 0.0
        %3517 = vmatprep.subr.mxu0 0.0
        %3518 = vmatpush1.msra.mxu0 0.0
        %3519 = vmatprep.subr.mxu0 0.0
        %3520 = vmatpush1.msra.mxu0 0.0
        %3521 = vmatprep.subr.mxu0 0.0
        %3522 = vmatpush1.msra.mxu0 0.0
        %3523 = vmatprep.mubr.f32.mxu0 0.0
        %3524 = vmatmul.mubr.f32.gmra.mrb[0].mxu0 %v3364
        %v3525 = vpop.f32.mrb[0].mxu0
        %v3526 = vadd.f32 0.0, %v3525
        %v3527 = vpop.f32.mrb[0].mxu0
        %3528 = vmatprep.mubr.f32.mxu0 0.0
        %3529 = vmatmul.mubr.f32.gmra.mrb[0].mxu0 %v3367
        %v3530 = vpop.f32.mrb[0].mxu0
        %v3531 = vadd.f32 0.0, %v3530
        %v3532 = vpop.f32.mrb[0].mxu0
        %3533 = vmatprep.mubr.f32.mxu0 0.0
        %3534 = vmatmul.mubr.f32.gmra.mrb[0].mxu0 %v3370
        %v3535 = vpop.f32.mrb[0].mxu0
        %v3536 = vadd.f32 0.0, %v3535
        %v3537 = vpop.f32.mrb[0].mxu0
        %3538 = vmatprep.mubr.f32.mxu0 0.0
        %3539 = vmatmul.mubr.f32.gmra.mrb[0].mxu0 %v3373
        %v3540 = vpop.f32.mrb[0].mxu0
        %v3541 = vadd.f32 0.0, %v3540
        %v3542 = vpop.f32.mrb[0].mxu0
        %3543 = vmatprep.mubr.f32.mxu0 0.0
        %3544 = vmatmul.mubr.f32.gmra.mrb[0].mxu0 %v3376
        %v3545 = vpop.f32.mrb[0].mxu0
        %v3546 = vadd.f32 0.0, %v3545
        %v3547 = vpop.f32.mrb[0].mxu0
        %3548 = vmatprep.mubr.f32.mxu0 0.0
        %3549 = vmatmul.mubr.f32.gmra.mrb[0].mxu0 %v3379
        %v3550 = vpop.f32.mrb[0].mxu0
        %v3551 = vadd.f32 0.0, %v3550
        %v3552 = vpop.f32.mrb[0].mxu0
        %3553 = vmatprep.mubr.f32.mxu0 0.0
        %3554 = vmatmul.mubr.f32.gmra.mrb[0].mxu0 %v3382
        %v3555 = vpop.f32.mrb[0].mxu0
        %v3556 = vadd.f32 0.0, %v3555
        %v3557 = vpop.f32.mrb[0].mxu0
        %3558 = vmatprep.mubr.f32.mxu0 0.0
        %3559 = vmatmul.mubr.f32.gmra.mrb[0].mxu0 %v3385
        %v3560 = vpop.f32.mrb[0].mxu0
        %v3561 = vadd.f32 0.0, %v3560
        %v3562 = vpop.f32.mrb[0].mxu0
        %3563 = vmatprep.mubr.f32.mxu0 0.0
        %3564 = vmatmul.mubr.f32.gmra.mrb[0].mxu0 %v3388
        %v3565 = vpop.f32.mrb[0].mxu0
        %v3566 = vadd.f32 0.0, %v3565
        %v3567 = vpop.f32.mrb[0].mxu0
        %3568 = vmatprep.mubr.f32.mxu0 0.0
        %3569 = vmatmul.mubr.f32.gmra.mrb[0].mxu0 %v3391
        %v3570 = vpop.f32.mrb[0].mxu0
        %v3571 = vadd.f32 0.0, %v3570
        %v3572 = vpop.f32.mrb[0].mxu0
        %3573 = vmatprep.mubr.f32.mxu0 0.0
        %3574 = vmatmul.mubr.f32.gmra.mrb[0].mxu0 %v3394
        %v3575 = vpop.f32.mrb[0].mxu0
        %v3576 = vadd.f32 0.0, %v3575
        %v3577 = vpop.f32.mrb[0].mxu0
        %3578 = vmatprep.mubr.f32.mxu0 0.0
        %3579 = vmatmul.mubr.f32.gmra.mrb[0].mxu0 %v3397
        %v3580 = vpop.f32.mrb[0].mxu0
        %v3581 = vadd.f32 0.0, %v3580
        %v3582 = vpop.f32.mrb[0].mxu0
        %3583 = vmatprep.mubr.f32.mxu0 0.0
        %3584 = vmatmul.mubr.f32.gmra.mrb[0].mxu0 %v3400
        %v3585 = vpop.f32.mrb[0].mxu0
        %v3586 = vadd.f32 0.0, %v3585
        %v3587 = vpop.f32.mrb[0].mxu0
        %3588 = vmatprep.mubr.f32.mxu0 0.0
        %3589 = vmatmul.mubr.f32.gmra.mrb[0].mxu0 %v3403
        %v3590 = vpop.f32.mrb[0].mxu0
        %v3591 = vadd.f32 0.0, %v3590
        %v3592 = vpop.f32.mrb[0].mxu0
        %3593 = vmatprep.mubr.f32.mxu0 0.0
        %3594 = vmatmul.mubr.f32.gmra.mrb[0].mxu0 %v3406
        %v3595 = vpop.f32.mrb[0].mxu0
        %v3596 = vadd.f32 0.0, %v3595
        %v3597 = vpop.f32.mrb[0].mxu0
        %3598 = vmatprep.mubr.f32.mxu0 0.0
        %3599 = vmatmul.mubr.f32.gmra.mrb[0].mxu0 %v3409
        %v3600 = vpop.f32.mrb[0].mxu0
        %v3601 = vadd.f32 0.0, %v3600
        %v3602 = vpop.f32.mrb[0].mxu0
        %3603 = vmatprep.mubr.f32.mxu0 0.0
        %3604 = vmatmul.mubr.f32.gmra.mrb[0].mxu0 %v3412
        %v3605 = vpop.f32.mrb[0].mxu0
        %v3606 = vadd.f32 0.0, %v3605
        %v3607 = vpop.f32.mrb[0].mxu0
        %3608 = vmatprep.mubr.f32.mxu0 0.0
        %3609 = vmatmul.mubr.f32.gmra.mrb[0].mxu0 %v3415
        %v3610 = vpop.f32.mrb[0].mxu0
        %v3611 = vadd.f32 0.0, %v3610
        %v3612 = vpop.f32.mrb[0].mxu0
        %3613 = vmatprep.mubr.f32.mxu0 0.0
        %3614 = vmatmul.mubr.f32.gmra.mrb[0].mxu0 %v3418
        %v3615 = vpop.f32.mrb[0].mxu0
        %v3616 = vadd.f32 0.0, %v3615
        %v3617 = vpop.f32.mrb[0].mxu0
        %3618 = vmatprep.mubr.f32.mxu0 0.0
        %3619 = vmatmul.mubr.f32.gmra.mrb[0].mxu0 %v3421
        %v3620 = vpop.f32.mrb[0].mxu0
        %v3621 = vadd.f32 0.0, %v3620
        %v3622 = vpop.f32.mrb[0].mxu0
        %3623 = vmatprep.mubr.f32.mxu0 0.0
        %3624 = vmatmul.mubr.f32.gmra.mrb[0].mxu0 %v3424
        %v3625 = vpop.f32.mrb[0].mxu0
        %v3626 = vadd.f32 0.0, %v3625
        %v3627 = vpop.f32.mrb[0].mxu0
        %3628 = vmatprep.mubr.f32.mxu0 0.0
        %3629 = vmatmul.mubr.f32.gmra.mrb[0].mxu0 %v3427
        %v3630 = vpop.f32.mrb[0].mxu0
        %v3631 = vadd.f32 0.0, %v3630
        %v3632 = vpop.f32.mrb[0].mxu0
        %3633 = vmatprep.mubr.f32.mxu0 0.0
        %3634 = vmatmul.mubr.f32.gmra.mrb[0].mxu0 %v3430
        %v3635 = vpop.f32.mrb[0].mxu0
        %v3636 = vadd.f32 0.0, %v3635
        %v3637 = vpop.f32.mrb[0].mxu0
        %3638 = vmatprep.mubr.f32.mxu0 0.0
        %3639 = vmatmul.mubr.f32.gmra.mrb[0].mxu0 %v3433
        %v3640 = vpop.f32.mrb[0].mxu0
        %v3641 = vadd.f32 0.0, %v3640
        %v3642 = vpop.f32.mrb[0].mxu0
        %3643 = vmatprep.mubr.f32.mxu0 0.0
        %3644 = vmatmul.mubr.f32.gmra.mrb[0].mxu0 %v3436
        %v3645 = vpop.f32.mrb[0].mxu0
        %v3646 = vadd.f32 0.0, %v3645
        %v3647 = vpop.f32.mrb[0].mxu0
        %3648 = vmatprep.mubr.f32.mxu0 0.0
        %3649 = vmatmul.mubr.f32.gmra.mrb[0].mxu0 %v3439
        %v3650 = vpop.f32.mrb[0].mxu0
        %v3651 = vadd.f32 0.0, %v3650
        %v3652 = vpop.f32.mrb[0].mxu0
        %3653 = vmatprep.mubr.f32.mxu0 0.0
        %3654 = vmatmul.mubr.f32.gmra.mrb[0].mxu0 %v3442
        %v3655 = vpop.f32.mrb[0].mxu0
        %v3656 = vadd.f32 0.0, %v3655
        %v3657 = vpop.f32.mrb[0].mxu0
        %3658 = vmatprep.mubr.f32.mxu0 0.0
        %3659 = vmatmul.mubr.f32.gmra.mrb[0].mxu0 %v3445
        %v3660 = vpop.f32.mrb[0].mxu0
        %v3661 = vadd.f32 0.0, %v3660
        %v3662 = vpop.f32.mrb[0].mxu0
        %3663 = vmatprep.mubr.f32.mxu0 0.0
        %3664 = vmatmul.mubr.f32.gmra.mrb[0].mxu0 %v3448
        %v3665 = vpop.f32.mrb[0].mxu0
        %v3666 = vadd.f32 0.0, %v3665
        %v3667 = vpop.f32.mrb[0].mxu0
        %3668 = vmatprep.mubr.f32.mxu0 0.0
        %3669 = vmatmul.mubr.f32.gmra.mrb[0].mxu0 %v3451
        %v3670 = vpop.f32.mrb[0].mxu0
        %v3671 = vadd.f32 0.0, %v3670
        %v3672 = vpop.f32.mrb[0].mxu0
        %3673 = vmatprep.mubr.f32.mxu0 0.0
        %3674 = vmatmul.mubr.f32.gmra.mrb[0].mxu0 %v3454
        %v3675 = vpop.f32.mrb[0].mxu0
        %v3676 = vadd.f32 0.0, %v3675
        %v3677 = vpop.f32.mrb[0].mxu0
        %3678 = vmatprep.mubr.f32.mxu0 0.0
        %3679 = vmatmul.mubr.f32.gmra.mrb[0].mxu0 %v3457
        %v3680 = vpop.f32.mrb[0].mxu0
        %v3681 = vadd.f32 0.0, %v3680
        %v3682 = vpop.f32.mrb[0].mxu0
        %3683 = vdwg.mxu0
        %3684 = vst [vmem:[%s359 + $0x20] sm:$0xff] %v3526
        %3685 = vst [vmem:[%s359 + $0x50] sm:$0xff] %v3531
        %3686 = vst [vmem:[%s359 + $0x80] sm:$0xff] %v3536
        %3687 = vst [vmem:[%s359 + $0xb0] sm:$0xff] %v3541
        %3688 = vst [vmem:[%s359 + $0xe0] sm:$0xff] %v3546
        %3689 = vst [vmem:[%s359 + $0x110] sm:$0xff] %v3551
        %3690 = vst [vmem:[%s359 + $0x140] sm:$0xff] %v3556
        %3691 = vst [vmem:[%s359 + $0x170] sm:$0xff] %v3561
        %3692 = vst [vmem:[%s359 + $0x1a0] sm:$0xff] %v3566
        %3693 = vst [vmem:[%s359 + $0x1d0] sm:$0xff] %v3571
        %3694 = vst [vmem:[%s359 + $0x200] sm:$0xff] %v3576
        %3695 = vst [vmem:[%s359 + $0x230] sm:$0xff] %v3581
        %3696 = vst [vmem:[%s359 + $0x260] sm:$0xff] %v3586
        %3697 = vst [vmem:[%s359 + $0x290] sm:$0xff] %v3591
        %3698 = vst [vmem:[%s359 + $0x2c0] sm:$0xff] %v3596
        %3699 = vst [vmem:[%s359 + $0x2f0] sm:$0xff] %v3601
        %3700 = vst [vmem:[%s359 + $0x320] sm:$0xff] %v3606
        %3701 = vst [vmem:[%s359 + $0x350] sm:$0xff] %v3611
        %3702 = vst [vmem:[%s359 + $0x380] sm:$0xff] %v3616
        %3703 = vst [vmem:[%s359 + $0x3b0] sm:$0xff] %v3621
        %3704 = vst [vmem:[%s359 + $0x3e0] sm:$0xff] %v3626
        %3705 = vst [vmem:[%s359 + $0x410] sm:$0xff] %v3631
        %3706 = vst [vmem:[%s359 + $0x440] sm:$0xff] %v3636
        %3707 = vst [vmem:[%s359 + $0x470] sm:$0xff] %v3641
        %3708 = vst [vmem:[%s359 + $0x4a0] sm:$0xff] %v3646
        %3709 = vst [vmem:[%s359 + $0x4d0] sm:$0xff] %v3651
        %3710 = vst [vmem:[%s359 + $0x500] sm:$0xff] %v3656
        %3711 = vst [vmem:[%s359 + $0x530] sm:$0xff] %v3661
        %3712 = vst [vmem:[%s359 + $0x560] sm:$0xff] %v3666
        %3713 = vst [vmem:[%s359 + $0x590] sm:$0xff] %v3671
        %3714 = vst [vmem:[%s359 + $0x5c0] sm:$0xff] %v3676
        %3715 = vst [vmem:[%s359 + $0x5f0] sm:$0xff] %v3681
        %v3716 = vld [vmem:[#allocation10] sm:$0x1]
        %v3717 = vld [vmem:[#allocation10 + $0x1] sm:$0x1]
        %vm3718 = vcmp.eq.s32.totalorder %v3134, 1
        %vm3719 = vcmp.eq.s32.totalorder %v3135, 1
        %vm3720 = vcmp.eq.s32.totalorder %v3136, 1
        %vm3721 = vcmp.eq.s32.totalorder %v3137, 1
        %vm3722 = vcmp.eq.s32.totalorder %v3138, 1
        %vm3723 = vcmp.eq.s32.totalorder %v3139, 1
        %vm3724 = vcmp.eq.s32.totalorder %v3140, 1
        %vm3725 = vcmp.eq.s32.totalorder %v3141, 1
        %vm3726 = vcmp.eq.s32.totalorder %v3142, 1
        %vm3727 = vcmp.eq.s32.totalorder %v3143, 1
        %vm3728 = vcmp.eq.s32.totalorder %v3144, 1
        %vm3729 = vcmp.eq.s32.totalorder %v3145, 1
        %vm3730 = vcmp.eq.s32.totalorder %v3146, 1
        %vm3731 = vcmp.eq.s32.totalorder %v3147, 1
        %vm3732 = vcmp.eq.s32.totalorder %v3148, 1
        %vm3733 = vcmp.eq.s32.totalorder %v3149, 1
        %vm3734 = vcmp.eq.s32.totalorder %v3150, 1
        %vm3735 = vcmp.eq.s32.totalorder %v3151, 1
        %vm3736 = vcmp.eq.s32.totalorder %v3152, 1
        %vm3737 = vcmp.eq.s32.totalorder %v3153, 1
        %vm3738 = vcmp.eq.s32.totalorder %v3154, 1
        %vm3739 = vcmp.eq.s32.totalorder %v3155, 1
        %vm3740 = vcmp.eq.s32.totalorder %v3156, 1
        %vm3741 = vcmp.eq.s32.totalorder %v3157, 1
        %vm3742 = vcmp.eq.s32.totalorder %v3158, 1
        %vm3743 = vcmp.eq.s32.totalorder %v3159, 1
        %vm3744 = vcmp.eq.s32.totalorder %v3160, 1
        %vm3745 = vcmp.eq.s32.totalorder %v3161, 1
        %vm3746 = vcmp.eq.s32.totalorder %v3162, 1
        %vm3747 = vcmp.eq.s32.totalorder %v3163, 1
        %vm3748 = vcmp.eq.s32.totalorder %v3164, 1
        %vm3749 = vcmp.eq.s32.totalorder %v3165, 1
        %v3750 = vsel %vm3718, 1, 0
        %v3751 = vsel %vm3719, 1, 0
        %v3752 = vsel %vm3720, 1, 0
        %v3753 = vsel %vm3721, 1, 0
        %v3754 = vsel %vm3722, 1, 0
        %v3755 = vsel %vm3723, 1, 0
        %v3756 = vsel %vm3724, 1, 0
        %v3757 = vsel %vm3725, 1, 0
        %v3758 = vsel %vm3726, 1, 0
        %v3759 = vsel %vm3727, 1, 0
        %v3760 = vsel %vm3728, 1, 0
        %v3761 = vsel %vm3729, 1, 0
        %v3762 = vsel %vm3730, 1, 0
        %v3763 = vsel %vm3731, 1, 0
        %v3764 = vsel %vm3732, 1, 0
        %v3765 = vsel %vm3733, 1, 0
        %v3766 = vsel %vm3734, 1, 0
        %v3767 = vsel %vm3735, 1, 0
        %v3768 = vsel %vm3736, 1, 0
        %v3769 = vsel %vm3737, 1, 0
        %v3770 = vsel %vm3738, 1, 0
        %v3771 = vsel %vm3739, 1, 0
        %v3772 = vsel %vm3740, 1, 0
        %v3773 = vsel %vm3741, 1, 0
        %v3774 = vsel %vm3742, 1, 0
        %v3775 = vsel %vm3743, 1, 0
        %v3776 = vsel %vm3744, 1, 0
        %v3777 = vsel %vm3745, 1, 0
        %v3778 = vsel %vm3746, 1, 0
        %v3779 = vsel %vm3747, 1, 0
        %v3780 = vsel %vm3748, 1, 0
        %v3781 = vsel %vm3749, 1, 0
        %3782 = vset.pattern.permute.xlu0 1
        %3783 = vperm.xlu0 %3782, %v3750
        %v3784 = vpop.permute.xlu0 %3783
        %3785 = vset.pattern.permute.xlu0 1
        %3786 = vperm.xlu0 %3785, %v3751
        %v3787 = vpop.permute.xlu0 %3786
        %3788 = vset.pattern.permute.xlu0 1
        %3789 = vperm.xlu0 %3788, %v3752
        %v3790 = vpop.permute.xlu0 %3789
        %3791 = vset.pattern.permute.xlu0 1
        %3792 = vperm.xlu0 %3791, %v3753
        %v3793 = vpop.permute.xlu0 %3792
        %3794 = vset.pattern.permute.xlu0 1
        %3795 = vperm.xlu0 %3794, %v3754
        %v3796 = vpop.permute.xlu0 %3795
        %3797 = vset.pattern.permute.xlu0 1
        %3798 = vperm.xlu0 %3797, %v3755
        %v3799 = vpop.permute.xlu0 %3798
        %3800 = vset.pattern.permute.xlu0 1
        %3801 = vperm.xlu0 %3800, %v3756
        %v3802 = vpop.permute.xlu0 %3801
        %3803 = vset.pattern.permute.xlu0 1
        %3804 = vperm.xlu0 %3803, %v3757
        %v3805 = vpop.permute.xlu0 %3804
        %3806 = vset.pattern.permute.xlu0 1
        %3807 = vperm.xlu0 %3806, %v3758
        %v3808 = vpop.permute.xlu0 %3807
        %3809 = vset.pattern.permute.xlu0 1
        %3810 = vperm.xlu0 %3809, %v3759
        %v3811 = vpop.permute.xlu0 %3810
        %3812 = vset.pattern.permute.xlu0 1
        %3813 = vperm.xlu0 %3812, %v3760
        %v3814 = vpop.permute.xlu0 %3813
        %3815 = vset.pattern.permute.xlu0 1
        %3816 = vperm.xlu0 %3815, %v3761
        %v3817 = vpop.permute.xlu0 %3816
        %3818 = vset.pattern.permute.xlu0 1
        %3819 = vperm.xlu0 %3818, %v3762
        %v3820 = vpop.permute.xlu0 %3819
        %3821 = vset.pattern.permute.xlu0 1
        %3822 = vperm.xlu0 %3821, %v3763
        %v3823 = vpop.permute.xlu0 %3822
        %3824 = vset.pattern.permute.xlu0 1
        %3825 = vperm.xlu0 %3824, %v3764
        %v3826 = vpop.permute.xlu0 %3825
        %3827 = vset.pattern.permute.xlu0 1
        %3828 = vperm.xlu0 %3827, %v3765
        %v3829 = vpop.permute.xlu0 %3828
        %3830 = vset.pattern.permute.xlu0 1
        %3831 = vperm.xlu0 %3830, %v3766
        %v3832 = vpop.permute.xlu0 %3831
        %3833 = vset.pattern.permute.xlu0 1
        %3834 = vperm.xlu0 %3833, %v3767
        %v3835 = vpop.permute.xlu0 %3834
        %3836 = vset.pattern.permute.xlu0 1
        %3837 = vperm.xlu0 %3836, %v3768
        %v3838 = vpop.permute.xlu0 %3837
        %3839 = vset.pattern.permute.xlu0 1
        %3840 = vperm.xlu0 %3839, %v3769
        %v3841 = vpop.permute.xlu0 %3840
        %3842 = vset.pattern.permute.xlu0 1
        %3843 = vperm.xlu0 %3842, %v3770
        %v3844 = vpop.permute.xlu0 %3843
        %3845 = vset.pattern.permute.xlu0 1
        %3846 = vperm.xlu0 %3845, %v3771
        %v3847 = vpop.permute.xlu0 %3846
        %3848 = vset.pattern.permute.xlu0 1
        %3849 = vperm.xlu0 %3848, %v3772
        %v3850 = vpop.permute.xlu0 %3849
        %3851 = vset.pattern.permute.xlu0 1
        %3852 = vperm.xlu0 %3851, %v3773
        %v3853 = vpop.permute.xlu0 %3852
        %3854 = vset.pattern.permute.xlu0 1
        %3855 = vperm.xlu0 %3854, %v3774
        %v3856 = vpop.permute.xlu0 %3855
        %3857 = vset.pattern.permute.xlu0 1
        %3858 = vperm.xlu0 %3857, %v3775
        %v3859 = vpop.permute.xlu0 %3858
        %3860 = vset.pattern.permute.xlu0 1
        %3861 = vperm.xlu0 %3860, %v3776
        %v3862 = vpop.permute.xlu0 %3861
        %3863 = vset.pattern.permute.xlu0 1
        %3864 = vperm.xlu0 %3863, %v3777
        %v3865 = vpop.permute.xlu0 %3864
        %3866 = vset.pattern.permute.xlu0 1
        %3867 = vperm.xlu0 %3866, %v3778
        %v3868 = vpop.permute.xlu0 %3867
        %3869 = vset.pattern.permute.xlu0 1
        %3870 = vperm.xlu0 %3869, %v3779
        %v3871 = vpop.permute.xlu0 %3870
        %3872 = vset.pattern.permute.xlu0 1
        %3873 = vperm.xlu0 %3872, %v3780
        %v3874 = vpop.permute.xlu0 %3873
        %3875 = vset.pattern.permute.xlu0 1
        %3876 = vperm.xlu0 %3875, %v3781
        %v3877 = vpop.permute.xlu0 %3876
        %vm3878 = vcmp.eq.s32.totalorder %v3784, 1
        %vm3879 = vcmp.eq.s32.totalorder %v3787, 1
        %vm3880 = vcmp.eq.s32.totalorder %v3790, 1
        %vm3881 = vcmp.eq.s32.totalorder %v3793, 1
        %vm3882 = vcmp.eq.s32.totalorder %v3796, 1
        %vm3883 = vcmp.eq.s32.totalorder %v3799, 1
        %vm3884 = vcmp.eq.s32.totalorder %v3802, 1
        %vm3885 = vcmp.eq.s32.totalorder %v3805, 1
        %vm3886 = vcmp.eq.s32.totalorder %v3808, 1
        %vm3887 = vcmp.eq.s32.totalorder %v3811, 1
        %vm3888 = vcmp.eq.s32.totalorder %v3814, 1
        %vm3889 = vcmp.eq.s32.totalorder %v3817, 1
        %vm3890 = vcmp.eq.s32.totalorder %v3820, 1
        %vm3891 = vcmp.eq.s32.totalorder %v3823, 1
        %vm3892 = vcmp.eq.s32.totalorder %v3826, 1
        %vm3893 = vcmp.eq.s32.totalorder %v3829, 1
        %vm3894 = vcmp.eq.s32.totalorder %v3832, 1
        %vm3895 = vcmp.eq.s32.totalorder %v3835, 1
        %vm3896 = vcmp.eq.s32.totalorder %v3838, 1
        %vm3897 = vcmp.eq.s32.totalorder %v3841, 1
        %vm3898 = vcmp.eq.s32.totalorder %v3844, 1
        %vm3899 = vcmp.eq.s32.totalorder %v3847, 1
        %vm3900 = vcmp.eq.s32.totalorder %v3850, 1
        %vm3901 = vcmp.eq.s32.totalorder %v3853, 1
        %vm3902 = vcmp.eq.s32.totalorder %v3856, 1
        %vm3903 = vcmp.eq.s32.totalorder %v3859, 1
        %vm3904 = vcmp.eq.s32.totalorder %v3862, 1
        %vm3905 = vcmp.eq.s32.totalorder %v3865, 1
        %vm3906 = vcmp.eq.s32.totalorder %v3868, 1
        %vm3907 = vcmp.eq.s32.totalorder %v3871, 1
        %vm3908 = vcmp.eq.s32.totalorder %v3874, 1
        %vm3909 = vcmp.eq.s32.totalorder %v3877, 1
        %v3910 = vlaneseq
        %v3911 = vshrl.u32 %v3910, 7
        %v3912 = vsub.s32 0, %v3911
        %v3913 = vrot.slane %v3717, %v3912
        %v3914 = vlaneseq
        %v3915 = vshrl.u32 %v3914, 7
        %v3916 = vsub.s32 0, %v3915
        %v3917 = vrot.slane %v3716, %v3916
        %v3918 = vsel %vm3878, %v3913, %v3917
        %v3919 = vsel %vm3879, %v3913, %v3917
        %v3920 = vsel %vm3880, %v3913, %v3917
        %v3921 = vsel %vm3881, %v3913, %v3917
        %v3922 = vsel %vm3882, %v3913, %v3917
        %v3923 = vsel %vm3883, %v3913, %v3917
        %v3924 = vsel %vm3884, %v3913, %v3917
        %v3925 = vsel %vm3885, %v3913, %v3917
        %v3926 = vsel %vm3886, %v3913, %v3917
        %v3927 = vsel %vm3887, %v3913, %v3917
        %v3928 = vsel %vm3888, %v3913, %v3917
        %v3929 = vsel %vm3889, %v3913, %v3917
        %v3930 = vsel %vm3890, %v3913, %v3917
        %v3931 = vsel %vm3891, %v3913, %v3917
        %v3932 = vsel %vm3892, %v3913, %v3917
        %v3933 = vsel %vm3893, %v3913, %v3917
        %v3934 = vsel %vm3894, %v3913, %v3917
        %v3935 = vsel %vm3895, %v3913, %v3917
        %v3936 = vsel %vm3896, %v3913, %v3917
        %v3937 = vsel %vm3897, %v3913, %v3917
        %v3938 = vsel %vm3898, %v3913, %v3917
        %v3939 = vsel %vm3899, %v3913, %v3917
        %v3940 = vsel %vm3900, %v3913, %v3917
        %v3941 = vsel %vm3901, %v3913, %v3917
        %v3942 = vsel %vm3902, %v3913, %v3917
        %v3943 = vsel %vm3903, %v3913, %v3917
        %v3944 = vsel %vm3904, %v3913, %v3917
        %v3945 = vsel %vm3905, %v3913, %v3917
        %v3946 = vsel %vm3906, %v3913, %v3917
        %v3947 = vsel %vm3907, %v3913, %v3917
        %v3948 = vsel %vm3908, %v3913, %v3917
        %v3949 = vsel %vm3909, %v3913, %v3917
        %3950 = vst [vmem:[%s359 + $0x28] sm:$0xff] %v3918
        %3951 = vst [vmem:[%s359 + $0x58] sm:$0xff] %v3919
        %3952 = vst [vmem:[%s359 + $0x88] sm:$0xff] %v3920
        %3953 = vst [vmem:[%s359 + $0xb8] sm:$0xff] %v3921
        %3954 = vst [vmem:[%s359 + $0xe8] sm:$0xff] %v3922
        %3955 = vst [vmem:[%s359 + $0x118] sm:$0xff] %v3923
        %3956 = vst [vmem:[%s359 + $0x148] sm:$0xff] %v3924
        %3957 = vst [vmem:[%s359 + $0x178] sm:$0xff] %v3925
        %3958 = vst [vmem:[%s359 + $0x1a8] sm:$0xff] %v3926
        %3959 = vst [vmem:[%s359 + $0x1d8] sm:$0xff] %v3927
        %3960 = vst [vmem:[%s359 + $0x208] sm:$0xff] %v3928
        %3961 = vst [vmem:[%s359 + $0x238] sm:$0xff] %v3929
        %3962 = vst [vmem:[%s359 + $0x268] sm:$0xff] %v3930
        %3963 = vst [vmem:[%s359 + $0x298] sm:$0xff] %v3931
        %3964 = vst [vmem:[%s359 + $0x2c8] sm:$0xff] %v3932
        %3965 = vst [vmem:[%s359 + $0x2f8] sm:$0xff] %v3933
        %3966 = vst [vmem:[%s359 + $0x328] sm:$0xff] %v3934
        %3967 = vst [vmem:[%s359 + $0x358] sm:$0xff] %v3935
        %3968 = vst [vmem:[%s359 + $0x388] sm:$0xff] %v3936
        %3969 = vst [vmem:[%s359 + $0x3b8] sm:$0xff] %v3937
        %3970 = vst [vmem:[%s359 + $0x3e8] sm:$0xff] %v3938
        %3971 = vst [vmem:[%s359 + $0x418] sm:$0xff] %v3939
        %3972 = vst [vmem:[%s359 + $0x448] sm:$0xff] %v3940
        %3973 = vst [vmem:[%s359 + $0x478] sm:$0xff] %v3941
        %3974 = vst [vmem:[%s359 + $0x4a8] sm:$0xff] %v3942
        %3975 = vst [vmem:[%s359 + $0x4d8] sm:$0xff] %v3943
        %3976 = vst [vmem:[%s359 + $0x508] sm:$0xff] %v3944
        %3977 = vst [vmem:[%s359 + $0x538] sm:$0xff] %v3945
        %3978 = vst [vmem:[%s359 + $0x568] sm:$0xff] %v3946
        %3979 = vst [vmem:[%s359 + $0x598] sm:$0xff] %v3947
        %3980 = vst [vmem:[%s359 + $0x5c8] sm:$0xff] %v3948
        %3981 = vst [vmem:[%s359 + $0x5f8] sm:$0xff] %v3949
        %s3982 = sand.u32 %s169, 1
        %s3983 = scalar_lea.sflag [#allocation4], %s3982
        %s3984 = sand.u32 %s169, 1
        %s3985 = smul.addr %s3984, 1536
        %s3986 = scalar_lea.vmem [#allocation11], %s3985
        // Predicated region
        $region65: #{embedding_layer_concat.1} parent=43 // pred_check
          %p3987 = pneg %p179
        $region66: #{embedding_layer_concat.1} parent=43 // pred_check_branch
          %3989 = sbr.rel (%p3987) target = $region68
        $region67: #{embedding_layer_concat.1} parent=43 // pred_region
          %s3990 = smul.u32 32, %s25
          %s3991 = ssub.s32 50, %s3990
          %p3992 = scmp.lt.s32.totalorder %s3991, 32
          %s3993 = scalar_select %p3992, %s3991, 32
          %s3994 = smul.u32 128, %s3993
          %s3995 = smul.u32 %s3994, 6
          %s3997 = ssub.s32 24576, %s3995
          %3998 = vsyncadd %s3983, %s3997
          %p3999 = scmp.ne.s32.totalorder 0, %s3995
          %s4000 = smul.addr %s3990, 6
          %s4001 = smul.addr %s4000, 128
          %s4002 = scalar_lea.hbm %s6, %s4001
          %s4003 = smul.u32 48, %s3993
          %s4004 = sshll.u32 %s3986, 4
          %s4005 = int_to_ptr.vmem [resolvable:$true] %s4004
          %s4006 = sshll.u32 %s4003, 4
          %4010 = dma.vmem_to_hbm [thread:$0]  (%p3999), %s4005, %s4006, %s4002, %s3983, 768, 768, 48
        $region68: #{embedding_layer_concat.1} parent=43 // pred_fallthru
          _
      $region44: #{embedding_layer_concat.1} parent=5 // pred_fallthru
        _
      %p4011 = scmp.le.s32.totalorder 2, %s20
      // Predicated region
      $region69: #{embedding_layer_concat.1} parent=5 // pred_check
        %p4012 = pneg %p4011
      $region70: #{embedding_layer_concat.1} parent=5 // pred_check_branch
        %4014 = sbr.rel (%p4012) target = $region72
      $region71: #{embedding_layer_concat.1} parent=5 // pred_region
        %s4015 = ssub.s32 %s20, 2
        // Predicated region
        $region73: #{embedding_layer_concat.1} parent=71 // pred_check
          %p4016 = pneg %p185
        $region74: #{embedding_layer_concat.1} parent=71 // pred_check_branch
          %4018 = sbr.rel (%p4016) target = $region76
        $region75: #{embedding_layer_concat.1} parent=71 // pred_region
          %s4019 = sand.u32 %s170, 1
          %s4020 = scalar_lea.sflag [#allocation4], %s4019
          %s4021 = sand.u32 %s170, 1
          %s4022 = smul.addr %s4021, 1536
          %s4023 = scalar_lea.vmem [#allocation11], %s4022
          %4024 = dma.done %s4020, 24576
        $region76: #{embedding_layer_concat.1} parent=71 // pred_fallthru
          _
      $region72: #{embedding_layer_concat.1} parent=5 // pred_fallthru
        _
    $region6: #{embedding_layer_concat.1} parent=1 // loop_footer
      %s24 = sadd.s32 1, %s20
    $region7: #{embedding_layer_concat.1} parent=1 // loop_footer_branch
      %19 = sbr.rel target = $region3
    $region8: #{embedding_layer_concat.1} parent=1 // loop_exit
      _
    %4025 = vsyncpa [#allocation3], 1
    %s4026 = scalar_lea.sflag [#allocation3], 1
    %4027 = vsyncpa %s4026, 1
    %4028 = vsyncpa [#allocation6], 1
    %4029 = vsyncpa [#allocation9], 1
    %4030 = vsyncpa [#allocation4], 1
    %s4031 = scalar_lea.sflag [#allocation4], 1
    %4032 = vsyncpa %s4031, 1

</llo_original>
